<compile_context>
chip_gen: v7x
topology: tpu7x:2x2x1
jax: 0.10.0
libtpu: 0.0.40
codegen_flags: <defaults>
</compile_context>

<pallas_src>
import functools
import math

import jax
import jax.numpy as jnp
from jax.experimental import pallas as pl
from jax.experimental.pallas import tpu as pltpu


# ---------------------------------------------------------------------------
# Fused decoder-stack kernel
# ---------------------------------------------------------------------------

def _layer_norm(z, g, b):
    # One-pass statistics: E[z], E[z^2].  eps = 1e-5 (PyTorch default), f32.
    mu = jnp.mean(z, axis=-1, keepdims=True)
    ms = jnp.mean(z * z, axis=-1, keepdims=True)
    var = jnp.maximum(ms - mu * mu, 0.0)
    return (z - mu) * jax.lax.rsqrt(var + 1e-5) * g + b


def _decoder_stack_kernel(tgt_ref, mem_ref, pos_ref, qpos_ref,
                          w_attn_ref, b_attn_ref,
                          w1_ref, b1_ref, w2_ref, b2_ref,
                          ln_g_ref, ln_b_ref,
                          o_ref,
                          x_scr, kc_scr, vc_scr, attn_scr,
                          *, nhead, apply_final_norm):
    layer = pl.program_id(1)
    n_layers = pl.num_programs(1)

    e = x_scr.shape[-1]
    dh = e // nhead

    def proj(inp_b16, s_idx, j_idx):
        # bf16 MXU matmul, f32 accumulation; weights pre-transposed (in, out).
        return (jnp.dot(inp_b16, w_attn_ref[s_idx, j_idx],
                        preferred_element_type=jnp.float32)
                + b_attn_ref[s_idx, j_idx])

    # ---- per-batch-element init: running state + cached cross-attn K/V ----
    # NOTE: correctness of the x_scr carry (and the K/V cache) relies on the
    # layer axis being the inner "arbitrary" grid axis and this re-init
    # running for every new batch index.
    @pl.when(layer == 0)
    def _():
        x_scr[...] = tgt_ref[0].astype(jnp.float32)
        mem_b = mem_ref[0]                                    # (Lk, E) bf16
        kin = (mem_b.astype(jnp.float32)
               + pos_ref[0].astype(jnp.float32)).astype(jnp.bfloat16)
        # Layer-invariant (deepcopy-shared weights): computed once, reused by
        # every layer's cross-attention.
        kc_scr[...] = proj(kin, 1, 1).astype(jnp.bfloat16)
        vc_scr[...] = proj(mem_b, 1, 2).astype(jnp.bfloat16)

    x = x_scr[...]                               # (Lq, E) f32 running state
    qpos = qpos_ref[0]                           # (Lq, E) f32

    def mha(s_idx, q_f32, k_b16, v_b16):
        # Per-head lane slices; each head's (Lq, dh) output is stored at its
        # static lane offset in attn_scr (no concat), then one dense K=E
        # out-projection.
        q_b16 = q_f32.astype(jnp.bfloat16)
        for h in range(nhead):                   # static head loop
            lo = h * dh
            qh = q_b16[:, lo:lo + dh]            # (Lq, dh) bf16
            kh = k_b16[:, lo:lo + dh]            # (Lkv, dh) bf16
            vh = v_b16[:, lo:lo + dh]            # (Lkv, dh) bf16
            sc = jax.lax.dot_general(
                qh, kh, (((1,), (1,)), ((), ())),
                preferred_element_type=jnp.float32)           # (Lq, Lkv) f32
            sc = sc - jnp.max(sc, axis=-1, keepdims=True)
            p = jnp.exp(sc)
            p = p * pl.reciprocal(jnp.sum(p, axis=-1, keepdims=True),
                                  approx=True)
            attn_scr[:, lo:lo + dh] = jnp.dot(
                p.astype(jnp.bfloat16), vh,
                preferred_element_type=jnp.float32)
        return proj(attn_scr[...].astype(jnp.bfloat16), s_idx, 3)

    # ----- self-attention block (q = k = x + query_pos, v = x) -----
    xq_b16 = (x + qpos).astype(jnp.bfloat16)     # cast once, reused for Q and K
    x_b16 = x.astype(jnp.bfloat16)
    q_s = proj(xq_b16, 0, 0)                     # 1/sqrt(dh) folded into Wq/bq
    k_s = proj(xq_b16, 0, 1).astype(jnp.bfloat16)
    v_s = proj(x_b16, 0, 2).astype(jnp.bfloat16)
    t2 = mha(0, q_s, k_s, v_s)
    x = _layer_norm(t2 + x, ln_g_ref[0], ln_b_ref[0])

    # ----- cross-attention block (K/V cached at layer 0) -----
    q_c = proj((x + qpos).astype(jnp.bfloat16), 1, 0)
    t2 = mha(1, q_c, kc_scr[...], vc_scr[...])
    x = _layer_norm(t2 + x, ln_g_ref[1], ln_b_ref[1])

    # ----- feed-forward block -----
    hdn = jnp.dot(x.astype(jnp.bfloat16), w1_ref[...],
                  preferred_element_type=jnp.float32) + b1_ref[...]
    hdn = jnp.maximum(hdn, 0.0)
    y = jnp.dot(hdn.astype(jnp.bfloat16), w2_ref[...],
                preferred_element_type=jnp.float32) + b2_ref[...]
    x = _layer_norm(y + x, ln_g_ref[2], ln_b_ref[2])

    x_scr[...] = x                               # carry to next layer

    @pl.when(layer == n_layers - 1)
    def _():
        out = x
        if apply_final_norm:
            out = _layer_norm(out, ln_g_ref[3], ln_b_ref[3])
        o_ref[0] = out.astype(o_ref.dtype)


# ---------------------------------------------------------------------------
# Wrapper: one pallas_call for the whole stacked decoder
# ---------------------------------------------------------------------------

def transformer_decoder(tgt, memory, pos, query_pos, params, *,
                        n_layers, nhead, apply_final_norm=True):
    lq, b, e = tgt.shape
    lk = memory.shape[0]
    dff = params["w1"].shape[1]
    assert e % nhead == 0

    # One-time layout change to batch-major so batch is a "parallel" grid axis
    # with lane-dense (L, E) blocks.  The bf16 cast of the two large (Lk, E)
    # operands is fused into the same transpose op (halves bytes written here
    # and the kernel's per-batch DMA / VMEM).  tgt / query_pos stay f32 since
    # they seed / feed the f32 residual carry.  In a full DETR pipeline the
    # encoder should emit batch-major bf16 directly, removing these copies.
    tgt_b = jnp.transpose(tgt, (1, 0, 2))                        # (B, Lq, E) f32
    qpos_b = jnp.transpose(query_pos, (1, 0, 2))                 # (B, Lq, E) f32
    mem_b = jnp.transpose(memory, (1, 0, 2)).astype(jnp.bfloat16)  # (B, Lk, E)
    pos_b = jnp.transpose(pos, (1, 0, 2)).astype(jnp.bfloat16)     # (B, Lk, E)

    # --- explicit VMEM budget (double-buffered blocks + resident weights +
    # scratch + rough temporaries), floored at 32 MiB for compiler headroom.
    def nbytes(shape, dtype):
        n = 1
        for s in shape:
            n *= int(s)
        return n * jnp.dtype(dtype).itemsize

    blocks = 2 * (2 * nbytes((1, lq, e), jnp.float32)            # tgt, query_pos
                  + 2 * nbytes((1, lk, e), jnp.bfloat16)         # memory, pos
                  + nbytes((1, lq, e), tgt.dtype))               # output
    weights = 2 * (nbytes((2, 4, e, e), jnp.bfloat16)
                   + nbytes((2, 4, 1, e), jnp.float32)
                   + nbytes((e, dff), jnp.bfloat16) + nbytes((1, dff), jnp.float32)
                   + nbytes((dff, e), jnp.bfloat16) + nbytes((1, e), jnp.float32)
                   + 2 * nbytes((4, 1, e), jnp.float32))
    scratch = (2 * nbytes((lq, e), jnp.float32)                  # x_scr, attn_scr
               + 2 * nbytes((lk, e), jnp.bfloat16))              # K/V cache
    temps = ((nhead + 2) * nbytes((lq, lk), jnp.float32)
             + 8 * nbytes((lq, max(e, dff)), jnp.float32))
    vmem_limit = int(min(120 * 1024 * 1024,
                         max(32 * 1024 * 1024,
                             2 * (blocks + weights + scratch + temps))))

    kern = functools.partial(_decoder_stack_kernel, nhead=nhead,
                             apply_final_norm=apply_final_norm)

    seq_q_spec = pl.BlockSpec((1, lq, e), lambda bi, li: (bi, 0, 0))
    seq_k_spec = pl.BlockSpec((1, lk, e), lambda bi, li: (bi, 0, 0))

    # Weight blocks: constant index maps -> DMA'd into VMEM once, resident
    # across all (batch, layer) grid steps.
    in_specs = [
        seq_q_spec,                                                   # tgt
        seq_k_spec,                                                   # memory (bf16)
        seq_k_spec,                                                   # pos (bf16)
        seq_q_spec,                                                   # query_pos
        pl.BlockSpec((2, 4, e, e), lambda bi, li: (0, 0, 0, 0)),      # W_attn
        pl.BlockSpec((2, 4, 1, e), lambda bi, li: (0, 0, 0, 0)),      # b_attn
        pl.BlockSpec((e, dff), lambda bi, li: (0, 0)),                # w1
        pl.BlockSpec((1, dff), lambda bi, li: (0, 0)),                # b1
        pl.BlockSpec((dff, e), lambda bi, li: (0, 0)),                # w2
        pl.BlockSpec((1, e), lambda bi, li: (0, 0)),                  # b2
        pl.BlockSpec((4, 1, e), lambda bi, li: (0, 0, 0)),            # ln_g
        pl.BlockSpec((4, 1, e), lambda bi, li: (0, 0, 0)),            # ln_b
    ]

    out = pl.pallas_call(
        kern,
        out_shape=jax.ShapeDtypeStruct((b, lq, e), tgt.dtype),
        grid=(b, n_layers),
        in_specs=in_specs,
        out_specs=pl.BlockSpec((1, lq, e), lambda bi, li: (bi, 0, 0)),
        scratch_shapes=[
            pltpu.VMEM((lq, e), jnp.float32),      # running tgt state (carry)
            pltpu.VMEM((lk, e), jnp.bfloat16),     # cached cross-attn K
            pltpu.VMEM((lk, e), jnp.bfloat16),     # cached cross-attn V
            pltpu.VMEM((lq, e), jnp.float32),      # merged attention heads
        ],
        compiler_params=pltpu.CompilerParams(
            dimension_semantics=("parallel", "arbitrary"),
            vmem_limit_bytes=vmem_limit),
    )(tgt_b, mem_b, pos_b, qpos_b,
      params["w_attn"], params["b_attn"],
      params["w1"], params["b1"], params["w2"], params["b2"],
      params["ln_g"], params["ln_b"])

    out = jnp.transpose(out, (1, 0, 2))          # back to (Lq, B, E)
    # return_intermediate_dec=False -> out.unsqueeze(0)
    return out[None, ...]
    # TODO(synk): return_intermediate_dec=True path (stack of per-layer norms)
    # not exercised here.


# ---------------------------------------------------------------------------
# Deterministic parameter construction (PyTorch convention) + kernel packing
# ---------------------------------------------------------------------------

def make_params(key, d_model, nhead, dim_ff):
    ks = jax.random.split(key, 8)
    s = 0.02

    def attn_params(k):
        k1, k2 = jax.random.split(k)
        return {
            "in_proj_w": s * jax.random.normal(k1, (3 * d_model, d_model), jnp.float32),
            "in_proj_b": jnp.zeros((3 * d_model,), jnp.float32),
            "out_proj_w": s * jax.random.normal(k2, (d_model, d_model), jnp.float32),
            "out_proj_b": jnp.zeros((d_model,), jnp.float32),
        }

    layer = {
        "self_attn": attn_params(ks[0]),
        "cross_attn": attn_params(ks[1]),
        "lin1_w": s * jax.random.normal(ks[2], (dim_ff, d_model), jnp.float32),
        "lin1_b": jnp.zeros((dim_ff,), jnp.float32),
        "lin2_w": s * jax.random.normal(ks[3], (d_model, dim_ff), jnp.float32),
        "lin2_b": jnp.zeros((d_model,), jnp.float32),
        "norm1_g": jnp.ones((d_model,), jnp.float32),
        "norm1_b": jnp.zeros((d_model,), jnp.float32),
        "norm2_g": jnp.ones((d_model,), jnp.float32),
        "norm2_b": jnp.zeros((d_model,), jnp.float32),
        "norm3_g": jnp.ones((d_model,), jnp.float32),
        "norm3_b": jnp.zeros((d_model,), jnp.float32),
    }
    final_norm = {"g": jnp.ones((d_model,), jnp.float32),
                  "b": jnp.zeros((d_model,), jnp.float32)}
    return layer, final_norm


def pack_params(layer, final_norm, d_model, nhead):
    """Pre-transpose to (d_in, d_out), fold the 1/sqrt(dh) scale into Wq/bq,
    cast matmul weights to bf16, and stack into a few kernel-ready arrays."""
    dh = d_model // nhead
    scale = 1.0 / math.sqrt(dh)

    def attn_pack(p):
        wq, wk, wv = jnp.split(p["in_proj_w"], 3, axis=0)   # (E, E), (out, in)
        bq, bk, bv = jnp.split(p["in_proj_b"], 3, axis=0)
        ws = jnp.stack([wq.T * scale, wk.T, wv.T, p["out_proj_w"].T], axis=0)
        bs = jnp.stack([bq * scale, bk, bv, p["out_proj_b"]], axis=0)
        return ws, bs                                       # (4,E,E), (4,E)

    ws_s, bs_s = attn_pack(layer["self_attn"])
    ws_c, bs_c = attn_pack(layer["cross_attn"])

    fg = final_norm["g"] if final_norm is not None else jnp.ones((d_model,), jnp.float32)
    fb = final_norm["b"] if final_norm is not None else jnp.zeros((d_model,), jnp.float32)

    return {
        "w_attn": jnp.stack([ws_s, ws_c], axis=0).astype(jnp.bfloat16),     # (2,4,E,E)
        "b_attn": jnp.stack([bs_s, bs_c], axis=0)
                     .reshape(2, 4, 1, d_model).astype(jnp.float32),        # (2,4,1,E)
        "w1": layer["lin1_w"].T.astype(jnp.bfloat16),                       # (E, dff)
        "b1": layer["lin1_b"].reshape(1, -1).astype(jnp.float32),
        "w2": layer["lin2_w"].T.astype(jnp.bfloat16),                       # (dff, E)
        "b2": layer["lin2_b"].reshape(1, -1).astype(jnp.float32),
        "ln_g": jnp.stack([layer["norm1_g"], layer["norm2_g"],
                           layer["norm3_g"], fg], axis=0)
                   .reshape(4, 1, d_model).astype(jnp.float32),
        "ln_b": jnp.stack([layer["norm1_b"], layer["norm2_b"],
                           layer["norm3_b"], fb], axis=0)
                   .reshape(4, 1, d_model).astype(jnp.float32),
    }


# ---------------------------------------------------------------------------

if __name__ == "__main__":
    # E=128 keeps every block lane-dense (no masked partial stores) while
    # staying small; batch=2 gives two independent "parallel" grid units.
    d_model, nhead, dim_ff = 128, 4, 256
    n_layers = 2
    lq, lk, batch = 16, 32, 2

    key = jax.random.PRNGKey(0)
    k_tgt, k_mem, k_pos, k_qpos, k_par = jax.random.split(key, 5)

    tgt = jax.random.normal(k_tgt, (lq, batch, d_model), jnp.float32)
    memory = jax.random.normal(k_mem, (lk, batch, d_model), jnp.float32)
    pos = jax.random.normal(k_pos, (lk, batch, d_model), jnp.float32)
    query_pos = jax.random.normal(k_qpos, (lq, batch, d_model), jnp.float32)

    layer_params, final_norm = make_params(k_par, d_model, nhead, dim_ff)
    packed = pack_params(layer_params, final_norm, d_model, nhead)

    fwd = jax.jit(functools.partial(transformer_decoder,
                                    n_layers=n_layers, nhead=nhead,
                                    apply_final_norm=True))
    out = fwd(tgt, memory, pos, query_pos, packed)
    out = jax.block_until_ready(out)

    assert out.shape == (1, lq, batch, d_model), out.shape
    assert bool(jnp.all(jnp.isfinite(out)))
    print("KERNEL_OK")
</pallas_src>

<mosaic_0001>
module attributes {stable_mosaic.version = 11 : i64} {
  func.func @_decoder_stack_kernel(%arg0: i32, %arg1: i32, %arg2: memref<1x16x128xf32, #tpu.memory_space<vmem>>, %arg3: memref<1x32x128xbf16, #tpu.memory_space<vmem>>, %arg4: memref<1x32x128xbf16, #tpu.memory_space<vmem>>, %arg5: memref<1x16x128xf32, #tpu.memory_space<vmem>>, %arg6: memref<2x4x128x128xbf16, #tpu.memory_space<vmem>>, %arg7: memref<2x4x1x128xf32, #tpu.memory_space<vmem>>, %arg8: memref<128x256xbf16, #tpu.memory_space<vmem>>, %arg9: memref<1x256xf32, #tpu.memory_space<vmem>>, %arg10: memref<256x128xbf16, #tpu.memory_space<vmem>>, %arg11: memref<1x128xf32, #tpu.memory_space<vmem>>, %arg12: memref<4x1x128xf32, #tpu.memory_space<vmem>>, %arg13: memref<4x1x128xf32, #tpu.memory_space<vmem>>, %arg14: memref<1x16x128xf32, #tpu.memory_space<vmem>>, %arg15: memref<16x128xf32, #tpu.memory_space<vmem>>, %arg16: memref<32x128xbf16, #tpu.memory_space<vmem>>, %arg17: memref<32x128xbf16, #tpu.memory_space<vmem>>, %arg18: memref<16x128xf32, #tpu.memory_space<vmem>>) attributes {dimension_semantics = [#tpu.dimension_semantics<parallel>, #tpu.dimension_semantics<arbitrary>], iteration_bounds = array<i64: 2, 2>, scalar_prefetch = 0 : i64, scratch_operands = 4 : i64, tpu.core_type = #tpu.core_type<tc>, window_params = [{transform_indices = @transform_0, window_bounds = array<i64: 1, 16, 128>}, {transform_indices = @transform_1, window_bounds = array<i64: 1, 32, 128>}, {transform_indices = @transform_2, window_bounds = array<i64: 1, 32, 128>}, {transform_indices = @transform_3, window_bounds = array<i64: 1, 16, 128>}, {pipeline_mode = #tpu.pipeline_mode<synchronous>, transform_indices = @transform_4, window_bounds = array<i64: 2, 4, 128, 128>}, {pipeline_mode = #tpu.pipeline_mode<synchronous>, transform_indices = @transform_5, window_bounds = array<i64: 2, 4, 1, 128>}, {pipeline_mode = #tpu.pipeline_mode<synchronous>, transform_indices = @transform_6, window_bounds = array<i64: 128, 256>}, {pipeline_mode = #tpu.pipeline_mode<synchronous>, transform_indices = @transform_7, window_bounds = array<i64: 1, 256>}, {pipeline_mode = #tpu.pipeline_mode<synchronous>, transform_indices = @transform_8, window_bounds = array<i64: 256, 128>}, {pipeline_mode = #tpu.pipeline_mode<synchronous>, transform_indices = @transform_9, window_bounds = array<i64: 1, 128>}, {pipeline_mode = #tpu.pipeline_mode<synchronous>, transform_indices = @transform_10, window_bounds = array<i64: 4, 1, 128>}, {pipeline_mode = #tpu.pipeline_mode<synchronous>, transform_indices = @transform_11, window_bounds = array<i64: 4, 1, 128>}, {transform_indices = @transform_12, window_bounds = array<i64: 1, 16, 128>}]} {
    %c0_i32 = arith.constant 0 : i32
    %0 = arith.cmpi eq, %arg1, %c0_i32 : i32
    %1 = arith.extui %0 : i1 to i32
    %c0_i32_0 = arith.constant 0 : i32
    %2 = arith.cmpi ne, %1, %c0_i32_0 : i32
    scf.if %2 {
      %c0_158 = arith.constant 0 : index
      %c0_159 = arith.constant 0 : index
      %c0_160 = arith.constant 0 : index
      %304 = vector.load %arg2[%c0_158, %c0_159, %c0_160] : memref<1x16x128xf32, #tpu.memory_space<vmem>>, vector<1x16x128xf32>
      %305 = vector.shape_cast %304 : vector<1x16x128xf32> to vector<16x128xf32>
      %c0_161 = arith.constant 0 : index
      %c0_162 = arith.constant 0 : index
      %306 = vector.load %arg15[%c0_161, %c0_162] : memref<16x128xf32, #tpu.memory_space<vmem>>, vector<16x128xf32>
      tpu.vector_store %arg15[%c0_161, %c0_162], %305 {strides = array<i32>} : memref<16x128xf32, #tpu.memory_space<vmem>>, vector<16x128xf32>,
      %c0_163 = arith.constant 0 : index
      %c0_164 = arith.constant 0 : index
      %c0_165 = arith.constant 0 : index
      %307 = vector.load %arg3[%c0_163, %c0_164, %c0_165] : memref<1x32x128xbf16, #tpu.memory_space<vmem>>, vector<1x32x128xbf16>
      %308 = vector.shape_cast %307 : vector<1x32x128xbf16> to vector<32x128xbf16>
      %309 = arith.extf %308 : vector<32x128xbf16> to vector<32x128xf32>
      %c0_166 = arith.constant 0 : index
      %c0_167 = arith.constant 0 : index
      %c0_168 = arith.constant 0 : index
      %310 = vector.load %arg4[%c0_166, %c0_167, %c0_168] : memref<1x32x128xbf16, #tpu.memory_space<vmem>>, vector<1x32x128xbf16>
      %311 = vector.shape_cast %310 : vector<1x32x128xbf16> to vector<32x128xbf16>
      %312 = arith.extf %311 : vector<32x128xbf16> to vector<32x128xf32>
      %313 = arith.addf %309, %312 : vector<32x128xf32>
      %314 = arith.truncf %313 : vector<32x128xf32> to vector<32x128xbf16>
      %c1_169 = arith.constant 1 : index
      %c1_170 = arith.constant 1 : index
      %c0_171 = arith.constant 0 : index
      %c0_172 = arith.constant 0 : index
      %315 = vector.load %arg6[%c1_169, %c1_170, %c0_171, %c0_172] : memref<2x4x128x128xbf16, #tpu.memory_space<vmem>>, vector<1x1x128x128xbf16>
      %316 = vector.shape_cast %315 : vector<1x1x128x128xbf16> to vector<128x128xbf16>
      %cst_173 = arith.constant dense<0.000000e+00> : vector<32x128xf32>
      %317 = tpu.matmul %314, %316, %cst_173 {dimension_numbers = #tpu.dot_dimension_numbers<[1], [0], [0], [1], [0, 0, 1, 1], [], []>} : vector<32x128xbf16>, vector<128x128xbf16>, vector<32x128xf32> -> vector<32x128xf32>
      %c1_174 = arith.constant 1 : index
      %c1_175 = arith.constant 1 : index
      %c0_176 = arith.constant 0 : index
      %c0_177 = arith.constant 0 : index
      %318 = vector.load %arg7[%c1_174, %c1_175, %c0_176, %c0_177] : memref<2x4x1x128xf32, #tpu.memory_space<vmem>>, vector<1x1x1x128xf32>
      %319 = vector.shape_cast %318 : vector<1x1x1x128xf32> to vector<1x128xf32>
      %320 = vector.broadcast %319 : vector<1x128xf32> to vector<32x128xf32>
      %321 = arith.addf %317, %320 : vector<32x128xf32>
      %322 = arith.truncf %321 : vector<32x128xf32> to vector<32x128xbf16>
      %c0_178 = arith.constant 0 : index
      %c0_179 = arith.constant 0 : index
      %323 = vector.load %arg16[%c0_178, %c0_179] : memref<32x128xbf16, #tpu.memory_space<vmem>>, vector<32x128xbf16>
      tpu.vector_store %arg16[%c0_178, %c0_179], %322 {strides = array<i32>} : memref<32x128xbf16, #tpu.memory_space<vmem>>, vector<32x128xbf16>,
      %c1_180 = arith.constant 1 : index
      %c2_181 = arith.constant 2 : index
      %c0_182 = arith.constant 0 : index
      %c0_183 = arith.constant 0 : index
      %324 = vector.load %arg6[%c1_180, %c2_181, %c0_182, %c0_183] : memref<2x4x128x128xbf16, #tpu.memory_space<vmem>>, vector<1x1x128x128xbf16>
      %325 = vector.shape_cast %324 : vector<1x1x128x128xbf16> to vector<128x128xbf16>
      %cst_184 = arith.constant dense<0.000000e+00> : vector<32x128xf32>
      %326 = tpu.matmul %308, %325, %cst_184 {dimension_numbers = #tpu.dot_dimension_numbers<[1], [0], [0], [1], [0, 0, 1, 1], [], []>} : vector<32x128xbf16>, vector<128x128xbf16>, vector<32x128xf32> -> vector<32x128xf32>
      %c1_185 = arith.constant 1 : index
      %c2_186 = arith.constant 2 : index
      %c0_187 = arith.constant 0 : index
      %c0_188 = arith.constant 0 : index
      %327 = vector.load %arg7[%c1_185, %c2_186, %c0_187, %c0_188] : memref<2x4x1x128xf32, #tpu.memory_space<vmem>>, vector<1x1x1x128xf32>
      %328 = vector.shape_cast %327 : vector<1x1x1x128xf32> to vector<1x128xf32>
      %329 = vector.broadcast %328 : vector<1x128xf32> to vector<32x128xf32>
      %330 = arith.addf %326, %329 : vector<32x128xf32>
      %331 = arith.truncf %330 : vector<32x128xf32> to vector<32x128xbf16>
      %c0_189 = arith.constant 0 : index
      %c0_190 = arith.constant 0 : index
      %332 = vector.load %arg17[%c0_189, %c0_190] : memref<32x128xbf16, #tpu.memory_space<vmem>>, vector<32x128xbf16>
      tpu.vector_store %arg17[%c0_189, %c0_190], %331 {strides = array<i32>} : memref<32x128xbf16, #tpu.memory_space<vmem>>, vector<32x128xbf16>,
    } else {
    }
    %c0 = arith.constant 0 : index
    %c0_1 = arith.constant 0 : index
    %3 = vector.load %arg15[%c0, %c0_1] : memref<16x128xf32, #tpu.memory_space<vmem>>, vector<16x128xf32>
    %c0_2 = arith.constant 0 : index
    %c0_3 = arith.constant 0 : index
    %c0_4 = arith.constant 0 : index
    %4 = vector.load %arg5[%c0_2, %c0_3, %c0_4] : memref<1x16x128xf32, #tpu.memory_space<vmem>>, vector<1x16x128xf32>
    %5 = vector.shape_cast %4 : vector<1x16x128xf32> to vector<16x128xf32>
    %6 = arith.addf %3, %5 : vector<16x128xf32>
    %7 = arith.truncf %6 : vector<16x128xf32> to vector<16x128xbf16>
    %8 = arith.truncf %3 : vector<16x128xf32> to vector<16x128xbf16>
    %c0_5 = arith.constant 0 : index
    %c0_6 = arith.constant 0 : index
    %c0_7 = arith.constant 0 : index
    %c0_8 = arith.constant 0 : index
    %9 = vector.load %arg6[%c0_5, %c0_6, %c0_7, %c0_8] : memref<2x4x128x128xbf16, #tpu.memory_space<vmem>>, vector<1x1x128x128xbf16>
    %10 = vector.shape_cast %9 : vector<1x1x128x128xbf16> to vector<128x128xbf16>
    %cst = arith.constant dense<0.000000e+00> : vector<16x128xf32>
    %11 = tpu.matmul %7, %10, %cst {dimension_numbers = #tpu.dot_dimension_numbers<[1], [0], [0], [1], [0, 0, 1, 1], [], []>} : vector<16x128xbf16>, vector<128x128xbf16>, vector<16x128xf32> -> vector<16x128xf32>
    %c0_9 = arith.constant 0 : index
    %c0_10 = arith.constant 0 : index
    %c0_11 = arith.constant 0 : index
    %c0_12 = arith.constant 0 : index
    %12 = vector.load %arg7[%c0_9, %c0_10, %c0_11, %c0_12] : memref<2x4x1x128xf32, #tpu.memory_space<vmem>>, vector<1x1x1x128xf32>
    %13 = vector.shape_cast %12 : vector<1x1x1x128xf32> to vector<1x128xf32>
    %14 = vector.broadcast %13 : vector<1x128xf32> to vector<16x128xf32>
    %15 = arith.addf %11, %14 : vector<16x128xf32>
    %c0_13 = arith.constant 0 : index
    %c1 = arith.constant 1 : index
    %c0_14 = arith.constant 0 : index
    %c0_15 = arith.constant 0 : index
    %16 = vector.load %arg6[%c0_13, %c1, %c0_14, %c0_15] : memref<2x4x128x128xbf16, #tpu.memory_space<vmem>>, vector<1x1x128x128xbf16>
    %17 = vector.shape_cast %16 : vector<1x1x128x128xbf16> to vector<128x128xbf16>
    %cst_16 = arith.constant dense<0.000000e+00> : vector<16x128xf32>
    %18 = tpu.matmul %7, %17, %cst_16 {dimension_numbers = #tpu.dot_dimension_numbers<[1], [0], [0], [1], [0, 0, 1, 1], [], []>} : vector<16x128xbf16>, vector<128x128xbf16>, vector<16x128xf32> -> vector<16x128xf32>
    %c0_17 = arith.constant 0 : index
    %c1_18 = arith.constant 1 : index
    %c0_19 = arith.constant 0 : index
    %c0_20 = arith.constant 0 : index
    %19 = vector.load %arg7[%c0_17, %c1_18, %c0_19, %c0_20] : memref<2x4x1x128xf32, #tpu.memory_space<vmem>>, vector<1x1x1x128xf32>
    %20 = vector.shape_cast %19 : vector<1x1x1x128xf32> to vector<1x128xf32>
    %21 = vector.broadcast %20 : vector<1x128xf32> to vector<16x128xf32>
    %22 = arith.addf %18, %21 : vector<16x128xf32>
    %23 = arith.truncf %22 : vector<16x128xf32> to vector<16x128xbf16>
    %c0_21 = arith.constant 0 : index
    %c2 = arith.constant 2 : index
    %c0_22 = arith.constant 0 : index
    %c0_23 = arith.constant 0 : index
    %24 = vector.load %arg6[%c0_21, %c2, %c0_22, %c0_23] : memref<2x4x128x128xbf16, #tpu.memory_space<vmem>>, vector<1x1x128x128xbf16>
    %25 = vector.shape_cast %24 : vector<1x1x128x128xbf16> to vector<128x128xbf16>
    %cst_24 = arith.constant dense<0.000000e+00> : vector<16x128xf32>
    %26 = tpu.matmul %8, %25, %cst_24 {dimension_numbers = #tpu.dot_dimension_numbers<[1], [0], [0], [1], [0, 0, 1, 1], [], []>} : vector<16x128xbf16>, vector<128x128xbf16>, vector<16x128xf32> -> vector<16x128xf32>
    %c0_25 = arith.constant 0 : index
    %c2_26 = arith.constant 2 : index
    %c0_27 = arith.constant 0 : index
    %c0_28 = arith.constant 0 : index
    %27 = vector.load %arg7[%c0_25, %c2_26, %c0_27, %c0_28] : memref<2x4x1x128xf32, #tpu.memory_space<vmem>>, vector<1x1x1x128xf32>
    %28 = vector.shape_cast %27 : vector<1x1x1x128xf32> to vector<1x128xf32>
    %29 = vector.broadcast %28 : vector<1x128xf32> to vector<16x128xf32>
    %30 = arith.addf %26, %29 : vector<16x128xf32>
    %31 = arith.truncf %30 : vector<16x128xf32> to vector<16x128xbf16>
    %32 = arith.truncf %15 : vector<16x128xf32> to vector<16x128xbf16>
    %33 = vector.extract_strided_slice %32 {offsets = [0, 0], sizes = [16, 32], strides = [1, 1]} : vector<16x128xbf16> to vector<16x32xbf16>
    %34 = vector.extract_strided_slice %23 {offsets = [0, 0], sizes = [16, 32], strides = [1, 1]} : vector<16x128xbf16> to vector<16x32xbf16>
    %35 = vector.extract_strided_slice %31 {offsets = [0, 0], sizes = [16, 32], strides = [1, 1]} : vector<16x128xbf16> to vector<16x32xbf16>
    %cst_29 = arith.constant dense<0.000000e+00> : vector<16x16xf32>
    %36 = tpu.matmul %33, %34, %cst_29 {dimension_numbers = #tpu.dot_dimension_numbers<[1], [1], [0], [0], [0, 0, 1, 0], [], []>} : vector<16x32xbf16>, vector<16x32xbf16>, vector<16x16xf32> -> vector<16x16xf32>
    %cst_30 = arith.constant dense<0xFF800000> : vector<16xf32>
    %37 = vector.multi_reduction <maximumf>, %36, %cst_30 [1] : vector<16x16xf32> to vector<16xf32>
    %38 = vector.shape_cast %37 : vector<16xf32> to vector<16x1xf32>
    %39 = vector.broadcast %38 : vector<16x1xf32> to vector<16x16xf32>
    %40 = arith.subf %36, %39 : vector<16x16xf32>
    %41 = math.exp %40 : vector<16x16xf32>
    %cst_31 = arith.constant dense<0.000000e+00> : vector<16xf32>
    %42 = vector.multi_reduction <add>, %41, %cst_31 [1] : vector<16x16xf32> to vector<16xf32>
    %43 = vector.shape_cast %42 : vector<16xf32> to vector<16x1xf32>
    %44 = tpu.reciprocal %43 {approx = true} : vector<16x1xf32> -> vector<16x1xf32>
    %45 = vector.broadcast %44 : vector<16x1xf32> to vector<16x16xf32>
    %46 = arith.mulf %41, %45 : vector<16x16xf32>
    %47 = arith.truncf %46 : vector<16x16xf32> to vector<16x16xbf16>
    %cst_32 = arith.constant dense<0.000000e+00> : vector<16x32xf32>
    %48 = tpu.matmul %47, %35, %cst_32 {dimension_numbers = #tpu.dot_dimension_numbers<[1], [0], [0], [1], [0, 0, 1, 1], [], []>} : vector<16x16xbf16>, vector<16x32xbf16>, vector<16x32xf32> -> vector<16x32xf32>
    %c0_33 = arith.constant 0 : index
    %c0_34 = arith.constant 0 : index
    %49 = vector.load %arg18[%c0_33, %c0_34] : memref<16x128xf32, #tpu.memory_space<vmem>>, vector<16x32xf32>
    tpu.vector_store %arg18[%c0_33, %c0_34], %48 {strides = array<i32>} : memref<16x128xf32, #tpu.memory_space<vmem>>, vector<16x32xf32>,
    %50 = vector.extract_strided_slice %32 {offsets = [0, 32], sizes = [16, 32], strides = [1, 1]} : vector<16x128xbf16> to vector<16x32xbf16>
    %51 = vector.extract_strided_slice %23 {offsets = [0, 32], sizes = [16, 32], strides = [1, 1]} : vector<16x128xbf16> to vector<16x32xbf16>
    %52 = vector.extract_strided_slice %31 {offsets = [0, 32], sizes = [16, 32], strides = [1, 1]} : vector<16x128xbf16> to vector<16x32xbf16>
    %cst_35 = arith.constant dense<0.000000e+00> : vector<16x16xf32>
    %53 = tpu.matmul %50, %51, %cst_35 {dimension_numbers = #tpu.dot_dimension_numbers<[1], [1], [0], [0], [0, 0, 1, 0], [], []>} : vector<16x32xbf16>, vector<16x32xbf16>, vector<16x16xf32> -> vector<16x16xf32>
    %cst_36 = arith.constant dense<0xFF800000> : vector<16xf32>
    %54 = vector.multi_reduction <maximumf>, %53, %cst_36 [1] : vector<16x16xf32> to vector<16xf32>
    %55 = vector.shape_cast %54 : vector<16xf32> to vector<16x1xf32>
    %56 = vector.broadcast %55 : vector<16x1xf32> to vector<16x16xf32>
    %57 = arith.subf %53, %56 : vector<16x16xf32>
    %58 = math.exp %57 : vector<16x16xf32>
    %cst_37 = arith.constant dense<0.000000e+00> : vector<16xf32>
    %59 = vector.multi_reduction <add>, %58, %cst_37 [1] : vector<16x16xf32> to vector<16xf32>
    %60 = vector.shape_cast %59 : vector<16xf32> to vector<16x1xf32>
    %61 = tpu.reciprocal %60 {approx = true} : vector<16x1xf32> -> vector<16x1xf32>
    %62 = vector.broadcast %61 : vector<16x1xf32> to vector<16x16xf32>
    %63 = arith.mulf %58, %62 : vector<16x16xf32>
    %64 = arith.truncf %63 : vector<16x16xf32> to vector<16x16xbf16>
    %cst_38 = arith.constant dense<0.000000e+00> : vector<16x32xf32>
    %65 = tpu.matmul %64, %52, %cst_38 {dimension_numbers = #tpu.dot_dimension_numbers<[1], [0], [0], [1], [0, 0, 1, 1], [], []>} : vector<16x16xbf16>, vector<16x32xbf16>, vector<16x32xf32> -> vector<16x32xf32>
    %c0_39 = arith.constant 0 : index
    %c32 = arith.constant 32 : index
    %66 = vector.load %arg18[%c0_39, %c32] : memref<16x128xf32, #tpu.memory_space<vmem>>, vector<16x32xf32>
    tpu.vector_store %arg18[%c0_39, %c32], %65 {strides = array<i32>} : memref<16x128xf32, #tpu.memory_space<vmem>>, vector<16x32xf32>,
    %67 = vector.extract_strided_slice %32 {offsets = [0, 64], sizes = [16, 32], strides = [1, 1]} : vector<16x128xbf16> to vector<16x32xbf16>
    %68 = vector.extract_strided_slice %23 {offsets = [0, 64], sizes = [16, 32], strides = [1, 1]} : vector<16x128xbf16> to vector<16x32xbf16>
    %69 = vector.extract_strided_slice %31 {offsets = [0, 64], sizes = [16, 32], strides = [1, 1]} : vector<16x128xbf16> to vector<16x32xbf16>
    %cst_40 = arith.constant dense<0.000000e+00> : vector<16x16xf32>
    %70 = tpu.matmul %67, %68, %cst_40 {dimension_numbers = #tpu.dot_dimension_numbers<[1], [1], [0], [0], [0, 0, 1, 0], [], []>} : vector<16x32xbf16>, vector<16x32xbf16>, vector<16x16xf32> -> vector<16x16xf32>
    %cst_41 = arith.constant dense<0xFF800000> : vector<16xf32>
    %71 = vector.multi_reduction <maximumf>, %70, %cst_41 [1] : vector<16x16xf32> to vector<16xf32>
    %72 = vector.shape_cast %71 : vector<16xf32> to vector<16x1xf32>
    %73 = vector.broadcast %72 : vector<16x1xf32> to vector<16x16xf32>
    %74 = arith.subf %70, %73 : vector<16x16xf32>
    %75 = math.exp %74 : vector<16x16xf32>
    %cst_42 = arith.constant dense<0.000000e+00> : vector<16xf32>
    %76 = vector.multi_reduction <add>, %75, %cst_42 [1] : vector<16x16xf32> to vector<16xf32>
    %77 = vector.shape_cast %76 : vector<16xf32> to vector<16x1xf32>
    %78 = tpu.reciprocal %77 {approx = true} : vector<16x1xf32> -> vector<16x1xf32>
    %79 = vector.broadcast %78 : vector<16x1xf32> to vector<16x16xf32>
    %80 = arith.mulf %75, %79 : vector<16x16xf32>
    %81 = arith.truncf %80 : vector<16x16xf32> to vector<16x16xbf16>
    %cst_43 = arith.constant dense<0.000000e+00> : vector<16x32xf32>
    %82 = tpu.matmul %81, %69, %cst_43 {dimension_numbers = #tpu.dot_dimension_numbers<[1], [0], [0], [1], [0, 0, 1, 1], [], []>} : vector<16x16xbf16>, vector<16x32xbf16>, vector<16x32xf32> -> vector<16x32xf32>
    %c0_44 = arith.constant 0 : index
    %c64 = arith.constant 64 : index
    %83 = vector.load %arg18[%c0_44, %c64] : memref<16x128xf32, #tpu.memory_space<vmem>>, vector<16x32xf32>
    tpu.vector_store %arg18[%c0_44, %c64], %82 {strides = array<i32>} : memref<16x128xf32, #tpu.memory_space<vmem>>, vector<16x32xf32>,
    %84 = vector.extract_strided_slice %32 {offsets = [0, 96], sizes = [16, 32], strides = [1, 1]} : vector<16x128xbf16> to vector<16x32xbf16>
    %85 = vector.extract_strided_slice %23 {offsets = [0, 96], sizes = [16, 32], strides = [1, 1]} : vector<16x128xbf16> to vector<16x32xbf16>
    %86 = vector.extract_strided_slice %31 {offsets = [0, 96], sizes = [16, 32], strides = [1, 1]} : vector<16x128xbf16> to vector<16x32xbf16>
    %cst_45 = arith.constant dense<0.000000e+00> : vector<16x16xf32>
    %87 = tpu.matmul %84, %85, %cst_45 {dimension_numbers = #tpu.dot_dimension_numbers<[1], [1], [0], [0], [0, 0, 1, 0], [], []>} : vector<16x32xbf16>, vector<16x32xbf16>, vector<16x16xf32> -> vector<16x16xf32>
    %cst_46 = arith.constant dense<0xFF800000> : vector<16xf32>
    %88 = vector.multi_reduction <maximumf>, %87, %cst_46 [1] : vector<16x16xf32> to vector<16xf32>
    %89 = vector.shape_cast %88 : vector<16xf32> to vector<16x1xf32>
    %90 = vector.broadcast %89 : vector<16x1xf32> to vector<16x16xf32>
    %91 = arith.subf %87, %90 : vector<16x16xf32>
    %92 = math.exp %91 : vector<16x16xf32>
    %cst_47 = arith.constant dense<0.000000e+00> : vector<16xf32>
    %93 = vector.multi_reduction <add>, %92, %cst_47 [1] : vector<16x16xf32> to vector<16xf32>
    %94 = vector.shape_cast %93 : vector<16xf32> to vector<16x1xf32>
    %95 = tpu.reciprocal %94 {approx = true} : vector<16x1xf32> -> vector<16x1xf32>
    %96 = vector.broadcast %95 : vector<16x1xf32> to vector<16x16xf32>
    %97 = arith.mulf %92, %96 : vector<16x16xf32>
    %98 = arith.truncf %97 : vector<16x16xf32> to vector<16x16xbf16>
    %cst_48 = arith.constant dense<0.000000e+00> : vector<16x32xf32>
    %99 = tpu.matmul %98, %86, %cst_48 {dimension_numbers = #tpu.dot_dimension_numbers<[1], [0], [0], [1], [0, 0, 1, 1], [], []>} : vector<16x16xbf16>, vector<16x32xbf16>, vector<16x32xf32> -> vector<16x32xf32>
    %c0_49 = arith.constant 0 : index
    %c96 = arith.constant 96 : index
    %100 = vector.load %arg18[%c0_49, %c96] : memref<16x128xf32, #tpu.memory_space<vmem>>, vector<16x32xf32>
    tpu.vector_store %arg18[%c0_49, %c96], %99 {strides = array<i32>} : memref<16x128xf32, #tpu.memory_space<vmem>>, vector<16x32xf32>,
    %c0_50 = arith.constant 0 : index
    %c0_51 = arith.constant 0 : index
    %101 = vector.load %arg18[%c0_50, %c0_51] : memref<16x128xf32, #tpu.memory_space<vmem>>, vector<16x128xf32>
    %102 = arith.truncf %101 : vector<16x128xf32> to vector<16x128xbf16>
    %c0_52 = arith.constant 0 : index
    %c3 = arith.constant 3 : index
    %c0_53 = arith.constant 0 : index
    %c0_54 = arith.constant 0 : index
    %103 = vector.load %arg6[%c0_52, %c3, %c0_53, %c0_54] : memref<2x4x128x128xbf16, #tpu.memory_space<vmem>>, vector<1x1x128x128xbf16>
    %104 = vector.shape_cast %103 : vector<1x1x128x128xbf16> to vector<128x128xbf16>
    %cst_55 = arith.constant dense<0.000000e+00> : vector<16x128xf32>
    %105 = tpu.matmul %102, %104, %cst_55 {dimension_numbers = #tpu.dot_dimension_numbers<[1], [0], [0], [1], [0, 0, 1, 1], [], []>} : vector<16x128xbf16>, vector<128x128xbf16>, vector<16x128xf32> -> vector<16x128xf32>
    %c0_56 = arith.constant 0 : index
    %c3_57 = arith.constant 3 : index
    %c0_58 = arith.constant 0 : index
    %c0_59 = arith.constant 0 : index
    %106 = vector.load %arg7[%c0_56, %c3_57, %c0_58, %c0_59] : memref<2x4x1x128xf32, #tpu.memory_space<vmem>>, vector<1x1x1x128xf32>
    %107 = vector.shape_cast %106 : vector<1x1x1x128xf32> to vector<1x128xf32>
    %108 = vector.broadcast %107 : vector<1x128xf32> to vector<16x128xf32>
    %109 = arith.addf %105, %108 : vector<16x128xf32>
    %110 = arith.addf %109, %3 : vector<16x128xf32>
    %c0_60 = arith.constant 0 : index
    %c0_61 = arith.constant 0 : index
    %c0_62 = arith.constant 0 : index
    %111 = vector.load %arg12[%c0_60, %c0_61, %c0_62] : memref<4x1x128xf32, #tpu.memory_space<vmem>>, vector<1x1x128xf32>
    %112 = vector.shape_cast %111 : vector<1x1x128xf32> to vector<1x128xf32>
    %c0_63 = arith.constant 0 : index
    %c0_64 = arith.constant 0 : index
    %c0_65 = arith.constant 0 : index
    %113 = vector.load %arg13[%c0_63, %c0_64, %c0_65] : memref<4x1x128xf32, #tpu.memory_space<vmem>>, vector<1x1x128xf32>
    %114 = vector.shape_cast %113 : vector<1x1x128xf32> to vector<1x128xf32>
    %cst_66 = arith.constant dense<0.000000e+00> : vector<16xf32>
    %115 = vector.multi_reduction <add>, %110, %cst_66 [1] : vector<16x128xf32> to vector<16xf32>
    %116 = vector.shape_cast %115 : vector<16xf32> to vector<16x1xf32>
    %cst_67 = arith.constant 1.280000e+02 : f32
    %117 = vector.broadcast %cst_67 : f32 to vector<16x1xf32>
    %118 = arith.divf %116, %117 : vector<16x1xf32>
    %119 = arith.mulf %110, %110 : vector<16x128xf32>
    %cst_68 = arith.constant dense<0.000000e+00> : vector<16xf32>
    %120 = vector.multi_reduction <add>, %119, %cst_68 [1] : vector<16x128xf32> to vector<16xf32>
    %121 = vector.shape_cast %120 : vector<16xf32> to vector<16x1xf32>
    %cst_69 = arith.constant 1.280000e+02 : f32
    %122 = vector.broadcast %cst_69 : f32 to vector<16x1xf32>
    %123 = arith.divf %121, %122 : vector<16x1xf32>
    %124 = arith.mulf %118, %118 : vector<16x1xf32>
    %125 = arith.subf %123, %124 : vector<16x1xf32>
    %cst_70 = arith.constant 0.000000e+00 : f32
    %126 = vector.broadcast %cst_70 : f32 to vector<16x1xf32>
    %127 = arith.maximumf %125, %126 : vector<16x1xf32>
    %128 = vector.broadcast %118 : vector<16x1xf32> to vector<16x128xf32>
    %129 = arith.subf %110, %128 : vector<16x128xf32>
    %cst_71 = arith.constant 9.99999974E-6 : f32
    %130 = vector.broadcast %cst_71 : f32 to vector<16x1xf32>
    %131 = arith.addf %127, %130 : vector<16x1xf32>
    %132 = math.rsqrt %131 : vector<16x1xf32>
    %133 = vector.broadcast %132 : vector<16x1xf32> to vector<16x128xf32>
    %134 = arith.mulf %129, %133 : vector<16x128xf32>
    %135 = vector.broadcast %112 : vector<1x128xf32> to vector<16x128xf32>
    %136 = arith.mulf %134, %135 : vector<16x128xf32>
    %137 = vector.broadcast %114 : vector<1x128xf32> to vector<16x128xf32>
    %138 = arith.addf %136, %137 : vector<16x128xf32>
    %139 = arith.addf %138, %5 : vector<16x128xf32>
    %140 = arith.truncf %139 : vector<16x128xf32> to vector<16x128xbf16>
    %c1_72 = arith.constant 1 : index
    %c0_73 = arith.constant 0 : index
    %c0_74 = arith.constant 0 : index
    %c0_75 = arith.constant 0 : index
    %141 = vector.load %arg6[%c1_72, %c0_73, %c0_74, %c0_75] : memref<2x4x128x128xbf16, #tpu.memory_space<vmem>>, vector<1x1x128x128xbf16>
    %142 = vector.shape_cast %141 : vector<1x1x128x128xbf16> to vector<128x128xbf16>
    %cst_76 = arith.constant dense<0.000000e+00> : vector<16x128xf32>
    %143 = tpu.matmul %140, %142, %cst_76 {dimension_numbers = #tpu.dot_dimension_numbers<[1], [0], [0], [1], [0, 0, 1, 1], [], []>} : vector<16x128xbf16>, vector<128x128xbf16>, vector<16x128xf32> -> vector<16x128xf32>
    %c1_77 = arith.constant 1 : index
    %c0_78 = arith.constant 0 : index
    %c0_79 = arith.constant 0 : index
    %c0_80 = arith.constant 0 : index
    %144 = vector.load %arg7[%c1_77, %c0_78, %c0_79, %c0_80] : memref<2x4x1x128xf32, #tpu.memory_space<vmem>>, vector<1x1x1x128xf32>
    %145 = vector.shape_cast %144 : vector<1x1x1x128xf32> to vector<1x128xf32>
    %146 = vector.broadcast %145 : vector<1x128xf32> to vector<16x128xf32>
    %147 = arith.addf %143, %146 : vector<16x128xf32>
    %c0_81 = arith.constant 0 : index
    %c0_82 = arith.constant 0 : index
    %148 = vector.load %arg16[%c0_81, %c0_82] : memref<32x128xbf16, #tpu.memory_space<vmem>>, vector<32x128xbf16>
    %c0_83 = arith.constant 0 : index
    %c0_84 = arith.constant 0 : index
    %149 = vector.load %arg17[%c0_83, %c0_84] : memref<32x128xbf16, #tpu.memory_space<vmem>>, vector<32x128xbf16>
    %150 = arith.truncf %147 : vector<16x128xf32> to vector<16x128xbf16>
    %151 = vector.extract_strided_slice %150 {offsets = [0, 0], sizes = [16, 32], strides = [1, 1]} : vector<16x128xbf16> to vector<16x32xbf16>
    %152 = vector.extract_strided_slice %148 {offsets = [0, 0], sizes = [32, 32], strides = [1, 1]} : vector<32x128xbf16> to vector<32x32xbf16>
    %153 = vector.extract_strided_slice %149 {offsets = [0, 0], sizes = [32, 32], strides = [1, 1]} : vector<32x128xbf16> to vector<32x32xbf16>
    %cst_85 = arith.constant dense<0.000000e+00> : vector<16x32xf32>
    %154 = tpu.matmul %151, %152, %cst_85 {dimension_numbers = #tpu.dot_dimension_numbers<[1], [1], [0], [0], [0, 0, 1, 0], [], []>} : vector<16x32xbf16>, vector<32x32xbf16>, vector<16x32xf32> -> vector<16x32xf32>
    %cst_86 = arith.constant dense<0xFF800000> : vector<16xf32>
    %155 = vector.multi_reduction <maximumf>, %154, %cst_86 [1] : vector<16x32xf32> to vector<16xf32>
    %156 = vector.shape_cast %155 : vector<16xf32> to vector<16x1xf32>
    %157 = vector.broadcast %156 : vector<16x1xf32> to vector<16x32xf32>
    %158 = arith.subf %154, %157 : vector<16x32xf32>
    %159 = math.exp %158 : vector<16x32xf32>
    %cst_87 = arith.constant dense<0.000000e+00> : vector<16xf32>
    %160 = vector.multi_reduction <add>, %159, %cst_87 [1] : vector<16x32xf32> to vector<16xf32>
    %161 = vector.shape_cast %160 : vector<16xf32> to vector<16x1xf32>
    %162 = tpu.reciprocal %161 {approx = true} : vector<16x1xf32> -> vector<16x1xf32>
    %163 = vector.broadcast %162 : vector<16x1xf32> to vector<16x32xf32>
    %164 = arith.mulf %159, %163 : vector<16x32xf32>
    %165 = arith.truncf %164 : vector<16x32xf32> to vector<16x32xbf16>
    %cst_88 = arith.constant dense<0.000000e+00> : vector<16x32xf32>
    %166 = tpu.matmul %165, %153, %cst_88 {dimension_numbers = #tpu.dot_dimension_numbers<[1], [0], [0], [1], [0, 0, 1, 1], [], []>} : vector<16x32xbf16>, vector<32x32xbf16>, vector<16x32xf32> -> vector<16x32xf32>
    %c0_89 = arith.constant 0 : index
    %c0_90 = arith.constant 0 : index
    %167 = vector.load %arg18[%c0_89, %c0_90] : memref<16x128xf32, #tpu.memory_space<vmem>>, vector<16x32xf32>
    tpu.vector_store %arg18[%c0_89, %c0_90], %166 {strides = array<i32>} : memref<16x128xf32, #tpu.memory_space<vmem>>, vector<16x32xf32>,
    %168 = vector.extract_strided_slice %150 {offsets = [0, 32], sizes = [16, 32], strides = [1, 1]} : vector<16x128xbf16> to vector<16x32xbf16>
    %169 = vector.extract_strided_slice %148 {offsets = [0, 32], sizes = [32, 32], strides = [1, 1]} : vector<32x128xbf16> to vector<32x32xbf16>
    %170 = vector.extract_strided_slice %149 {offsets = [0, 32], sizes = [32, 32], strides = [1, 1]} : vector<32x128xbf16> to vector<32x32xbf16>
    %cst_91 = arith.constant dense<0.000000e+00> : vector<16x32xf32>
    %171 = tpu.matmul %168, %169, %cst_91 {dimension_numbers = #tpu.dot_dimension_numbers<[1], [1], [0], [0], [0, 0, 1, 0], [], []>} : vector<16x32xbf16>, vector<32x32xbf16>, vector<16x32xf32> -> vector<16x32xf32>
    %cst_92 = arith.constant dense<0xFF800000> : vector<16xf32>
    %172 = vector.multi_reduction <maximumf>, %171, %cst_92 [1] : vector<16x32xf32> to vector<16xf32>
    %173 = vector.shape_cast %172 : vector<16xf32> to vector<16x1xf32>
    %174 = vector.broadcast %173 : vector<16x1xf32> to vector<16x32xf32>
    %175 = arith.subf %171, %174 : vector<16x32xf32>
    %176 = math.exp %175 : vector<16x32xf32>
    %cst_93 = arith.constant dense<0.000000e+00> : vector<16xf32>
    %177 = vector.multi_reduction <add>, %176, %cst_93 [1] : vector<16x32xf32> to vector<16xf32>
    %178 = vector.shape_cast %177 : vector<16xf32> to vector<16x1xf32>
    %179 = tpu.reciprocal %178 {approx = true} : vector<16x1xf32> -> vector<16x1xf32>
    %180 = vector.broadcast %179 : vector<16x1xf32> to vector<16x32xf32>
    %181 = arith.mulf %176, %180 : vector<16x32xf32>
    %182 = arith.truncf %181 : vector<16x32xf32> to vector<16x32xbf16>
    %cst_94 = arith.constant dense<0.000000e+00> : vector<16x32xf32>
    %183 = tpu.matmul %182, %170, %cst_94 {dimension_numbers = #tpu.dot_dimension_numbers<[1], [0], [0], [1], [0, 0, 1, 1], [], []>} : vector<16x32xbf16>, vector<32x32xbf16>, vector<16x32xf32> -> vector<16x32xf32>
    %c0_95 = arith.constant 0 : index
    %c32_96 = arith.constant 32 : index
    %184 = vector.load %arg18[%c0_95, %c32_96] : memref<16x128xf32, #tpu.memory_space<vmem>>, vector<16x32xf32>
    tpu.vector_store %arg18[%c0_95, %c32_96], %183 {strides = array<i32>} : memref<16x128xf32, #tpu.memory_space<vmem>>, vector<16x32xf32>,
    %185 = vector.extract_strided_slice %150 {offsets = [0, 64], sizes = [16, 32], strides = [1, 1]} : vector<16x128xbf16> to vector<16x32xbf16>
    %186 = vector.extract_strided_slice %148 {offsets = [0, 64], sizes = [32, 32], strides = [1, 1]} : vector<32x128xbf16> to vector<32x32xbf16>
    %187 = vector.extract_strided_slice %149 {offsets = [0, 64], sizes = [32, 32], strides = [1, 1]} : vector<32x128xbf16> to vector<32x32xbf16>
    %cst_97 = arith.constant dense<0.000000e+00> : vector<16x32xf32>
    %188 = tpu.matmul %185, %186, %cst_97 {dimension_numbers = #tpu.dot_dimension_numbers<[1], [1], [0], [0], [0, 0, 1, 0], [], []>} : vector<16x32xbf16>, vector<32x32xbf16>, vector<16x32xf32> -> vector<16x32xf32>
    %cst_98 = arith.constant dense<0xFF800000> : vector<16xf32>
    %189 = vector.multi_reduction <maximumf>, %188, %cst_98 [1] : vector<16x32xf32> to vector<16xf32>
    %190 = vector.shape_cast %189 : vector<16xf32> to vector<16x1xf32>
    %191 = vector.broadcast %190 : vector<16x1xf32> to vector<16x32xf32>
    %192 = arith.subf %188, %191 : vector<16x32xf32>
    %193 = math.exp %192 : vector<16x32xf32>
    %cst_99 = arith.constant dense<0.000000e+00> : vector<16xf32>
    %194 = vector.multi_reduction <add>, %193, %cst_99 [1] : vector<16x32xf32> to vector<16xf32>
    %195 = vector.shape_cast %194 : vector<16xf32> to vector<16x1xf32>
    %196 = tpu.reciprocal %195 {approx = true} : vector<16x1xf32> -> vector<16x1xf32>
    %197 = vector.broadcast %196 : vector<16x1xf32> to vector<16x32xf32>
    %198 = arith.mulf %193, %197 : vector<16x32xf32>
    %199 = arith.truncf %198 : vector<16x32xf32> to vector<16x32xbf16>
    %cst_100 = arith.constant dense<0.000000e+00> : vector<16x32xf32>
    %200 = tpu.matmul %199, %187, %cst_100 {dimension_numbers = #tpu.dot_dimension_numbers<[1], [0], [0], [1], [0, 0, 1, 1], [], []>} : vector<16x32xbf16>, vector<32x32xbf16>, vector<16x32xf32> -> vector<16x32xf32>
    %c0_101 = arith.constant 0 : index
    %c64_102 = arith.constant 64 : index
    %201 = vector.load %arg18[%c0_101, %c64_102] : memref<16x128xf32, #tpu.memory_space<vmem>>, vector<16x32xf32>
    tpu.vector_store %arg18[%c0_101, %c64_102], %200 {strides = array<i32>} : memref<16x128xf32, #tpu.memory_space<vmem>>, vector<16x32xf32>,
    %202 = vector.extract_strided_slice %150 {offsets = [0, 96], sizes = [16, 32], strides = [1, 1]} : vector<16x128xbf16> to vector<16x32xbf16>
    %203 = vector.extract_strided_slice %148 {offsets = [0, 96], sizes = [32, 32], strides = [1, 1]} : vector<32x128xbf16> to vector<32x32xbf16>
    %204 = vector.extract_strided_slice %149 {offsets = [0, 96], sizes = [32, 32], strides = [1, 1]} : vector<32x128xbf16> to vector<32x32xbf16>
    %cst_103 = arith.constant dense<0.000000e+00> : vector<16x32xf32>
    %205 = tpu.matmul %202, %203, %cst_103 {dimension_numbers = #tpu.dot_dimension_numbers<[1], [1], [0], [0], [0, 0, 1, 0], [], []>} : vector<16x32xbf16>, vector<32x32xbf16>, vector<16x32xf32> -> vector<16x32xf32>
    %cst_104 = arith.constant dense<0xFF800000> : vector<16xf32>
    %206 = vector.multi_reduction <maximumf>, %205, %cst_104 [1] : vector<16x32xf32> to vector<16xf32>
    %207 = vector.shape_cast %206 : vector<16xf32> to vector<16x1xf32>
    %208 = vector.broadcast %207 : vector<16x1xf32> to vector<16x32xf32>
    %209 = arith.subf %205, %208 : vector<16x32xf32>
    %210 = math.exp %209 : vector<16x32xf32>
    %cst_105 = arith.constant dense<0.000000e+00> : vector<16xf32>
    %211 = vector.multi_reduction <add>, %210, %cst_105 [1] : vector<16x32xf32> to vector<16xf32>
    %212 = vector.shape_cast %211 : vector<16xf32> to vector<16x1xf32>
    %213 = tpu.reciprocal %212 {approx = true} : vector<16x1xf32> -> vector<16x1xf32>
    %214 = vector.broadcast %213 : vector<16x1xf32> to vector<16x32xf32>
    %215 = arith.mulf %210, %214 : vector<16x32xf32>
    %216 = arith.truncf %215 : vector<16x32xf32> to vector<16x32xbf16>
    %cst_106 = arith.constant dense<0.000000e+00> : vector<16x32xf32>
    %217 = tpu.matmul %216, %204, %cst_106 {dimension_numbers = #tpu.dot_dimension_numbers<[1], [0], [0], [1], [0, 0, 1, 1], [], []>} : vector<16x32xbf16>, vector<32x32xbf16>, vector<16x32xf32> -> vector<16x32xf32>
    %c0_107 = arith.constant 0 : index
    %c96_108 = arith.constant 96 : index
    %218 = vector.load %arg18[%c0_107, %c96_108] : memref<16x128xf32, #tpu.memory_space<vmem>>, vector<16x32xf32>
    tpu.vector_store %arg18[%c0_107, %c96_108], %217 {strides = array<i32>} : memref<16x128xf32, #tpu.memory_space<vmem>>, vector<16x32xf32>,
    %c0_109 = arith.constant 0 : index
    %c0_110 = arith.constant 0 : index
    %219 = vector.load %arg18[%c0_109, %c0_110] : memref<16x128xf32, #tpu.memory_space<vmem>>, vector<16x128xf32>
    %220 = arith.truncf %219 : vector<16x128xf32> to vector<16x128xbf16>
    %c1_111 = arith.constant 1 : index
    %c3_112 = arith.constant 3 : index
    %c0_113 = arith.constant 0 : index
    %c0_114 = arith.constant 0 : index
    %221 = vector.load %arg6[%c1_111, %c3_112, %c0_113, %c0_114] : memref<2x4x128x128xbf16, #tpu.memory_space<vmem>>, vector<1x1x128x128xbf16>
    %222 = vector.shape_cast %221 : vector<1x1x128x128xbf16> to vector<128x128xbf16>
    %cst_115 = arith.constant dense<0.000000e+00> : vector<16x128xf32>
    %223 = tpu.matmul %220, %222, %cst_115 {dimension_numbers = #tpu.dot_dimension_numbers<[1], [0], [0], [1], [0, 0, 1, 1], [], []>} : vector<16x128xbf16>, vector<128x128xbf16>, vector<16x128xf32> -> vector<16x128xf32>
    %c1_116 = arith.constant 1 : index
    %c3_117 = arith.constant 3 : index
    %c0_118 = arith.constant 0 : index
    %c0_119 = arith.constant 0 : index
    %224 = vector.load %arg7[%c1_116, %c3_117, %c0_118, %c0_119] : memref<2x4x1x128xf32, #tpu.memory_space<vmem>>, vector<1x1x1x128xf32>
    %225 = vector.shape_cast %224 : vector<1x1x1x128xf32> to vector<1x128xf32>
    %226 = vector.broadcast %225 : vector<1x128xf32> to vector<16x128xf32>
    %227 = arith.addf %223, %226 : vector<16x128xf32>
    %228 = arith.addf %227, %138 : vector<16x128xf32>
    %c1_120 = arith.constant 1 : index
    %c0_121 = arith.constant 0 : index
    %c0_122 = arith.constant 0 : index
    %229 = vector.load %arg12[%c1_120, %c0_121, %c0_122] : memref<4x1x128xf32, #tpu.memory_space<vmem>>, vector<1x1x128xf32>
    %230 = vector.shape_cast %229 : vector<1x1x128xf32> to vector<1x128xf32>
    %c1_123 = arith.constant 1 : index
    %c0_124 = arith.constant 0 : index
    %c0_125 = arith.constant 0 : index
    %231 = vector.load %arg13[%c1_123, %c0_124, %c0_125] : memref<4x1x128xf32, #tpu.memory_space<vmem>>, vector<1x1x128xf32>
    %232 = vector.shape_cast %231 : vector<1x1x128xf32> to vector<1x128xf32>
    %cst_126 = arith.constant dense<0.000000e+00> : vector<16xf32>
    %233 = vector.multi_reduction <add>, %228, %cst_126 [1] : vector<16x128xf32> to vector<16xf32>
    %234 = vector.shape_cast %233 : vector<16xf32> to vector<16x1xf32>
    %cst_127 = arith.constant 1.280000e+02 : f32
    %235 = vector.broadcast %cst_127 : f32 to vector<16x1xf32>
    %236 = arith.divf %234, %235 : vector<16x1xf32>
    %237 = arith.mulf %228, %228 : vector<16x128xf32>
    %cst_128 = arith.constant dense<0.000000e+00> : vector<16xf32>
    %238 = vector.multi_reduction <add>, %237, %cst_128 [1] : vector<16x128xf32> to vector<16xf32>
    %239 = vector.shape_cast %238 : vector<16xf32> to vector<16x1xf32>
    %cst_129 = arith.constant 1.280000e+02 : f32
    %240 = vector.broadcast %cst_129 : f32 to vector<16x1xf32>
    %241 = arith.divf %239, %240 : vector<16x1xf32>
    %242 = arith.mulf %236, %236 : vector<16x1xf32>
    %243 = arith.subf %241, %242 : vector<16x1xf32>
    %cst_130 = arith.constant 0.000000e+00 : f32
    %244 = vector.broadcast %cst_130 : f32 to vector<16x1xf32>
    %245 = arith.maximumf %243, %244 : vector<16x1xf32>
    %246 = vector.broadcast %236 : vector<16x1xf32> to vector<16x128xf32>
    %247 = arith.subf %228, %246 : vector<16x128xf32>
    %cst_131 = arith.constant 9.99999974E-6 : f32
    %248 = vector.broadcast %cst_131 : f32 to vector<16x1xf32>
    %249 = arith.addf %245, %248 : vector<16x1xf32>
    %250 = math.rsqrt %249 : vector<16x1xf32>
    %251 = vector.broadcast %250 : vector<16x1xf32> to vector<16x128xf32>
    %252 = arith.mulf %247, %251 : vector<16x128xf32>
    %253 = vector.broadcast %230 : vector<1x128xf32> to vector<16x128xf32>
    %254 = arith.mulf %252, %253 : vector<16x128xf32>
    %255 = vector.broadcast %232 : vector<1x128xf32> to vector<16x128xf32>
    %256 = arith.addf %254, %255 : vector<16x128xf32>
    %257 = arith.truncf %256 : vector<16x128xf32> to vector<16x128xbf16>
    %c0_132 = arith.constant 0 : index
    %c0_133 = arith.constant 0 : index
    %258 = vector.load %arg8[%c0_132, %c0_133] : memref<128x256xbf16, #tpu.memory_space<vmem>>, vector<128x256xbf16>
    %cst_134 = arith.constant dense<0.000000e+00> : vector<16x256xf32>
    %259 = tpu.matmul %257, %258, %cst_134 {dimension_numbers = #tpu.dot_dimension_numbers<[1], [0], [0], [1], [0, 0, 1, 1], [], []>} : vector<16x128xbf16>, vector<128x256xbf16>, vector<16x256xf32> -> vector<16x256xf32>
    %c0_135 = arith.constant 0 : index
    %c0_136 = arith.constant 0 : index
    %260 = vector.load %arg9[%c0_135, %c0_136] : memref<1x256xf32, #tpu.memory_space<vmem>>, vector<1x256xf32>
    %261 = vector.broadcast %260 : vector<1x256xf32> to vector<16x256xf32>
    %262 = arith.addf %259, %261 : vector<16x256xf32>
    %cst_137 = arith.constant 0.000000e+00 : f32
    %263 = vector.broadcast %cst_137 : f32 to vector<16x256xf32>
    %264 = arith.maximumf %262, %263 : vector<16x256xf32>
    %265 = arith.truncf %264 : vector<16x256xf32> to vector<16x256xbf16>
    %c0_138 = arith.constant 0 : index
    %c0_139 = arith.constant 0 : index
    %266 = vector.load %arg10[%c0_138, %c0_139] : memref<256x128xbf16, #tpu.memory_space<vmem>>, vector<256x128xbf16>
    %cst_140 = arith.constant dense<0.000000e+00> : vector<16x128xf32>
    %267 = tpu.matmul %265, %266, %cst_140 {dimension_numbers = #tpu.dot_dimension_numbers<[1], [0], [0], [1], [0, 0, 1, 1], [], []>} : vector<16x256xbf16>, vector<256x128xbf16>, vector<16x128xf32> -> vector<16x128xf32>
    %c0_141 = arith.constant 0 : index
    %c0_142 = arith.constant 0 : index
    %268 = vector.load %arg11[%c0_141, %c0_142] : memref<1x128xf32, #tpu.memory_space<vmem>>, vector<1x128xf32>
    %269 = vector.broadcast %268 : vector<1x128xf32> to vector<16x128xf32>
    %270 = arith.addf %267, %269 : vector<16x128xf32>
    %271 = arith.addf %270, %256 : vector<16x128xf32>
    %c2_143 = arith.constant 2 : index
    %c0_144 = arith.constant 0 : index
    %c0_145 = arith.constant 0 : index
    %272 = vector.load %arg12[%c2_143, %c0_144, %c0_145] : memref<4x1x128xf32, #tpu.memory_space<vmem>>, vector<1x1x128xf32>
    %273 = vector.shape_cast %272 : vector<1x1x128xf32> to vector<1x128xf32>
    %c2_146 = arith.constant 2 : index
    %c0_147 = arith.constant 0 : index
    %c0_148 = arith.constant 0 : index
    %274 = vector.load %arg13[%c2_146, %c0_147, %c0_148] : memref<4x1x128xf32, #tpu.memory_space<vmem>>, vector<1x1x128xf32>
    %275 = vector.shape_cast %274 : vector<1x1x128xf32> to vector<1x128xf32>
    %cst_149 = arith.constant dense<0.000000e+00> : vector<16xf32>
    %276 = vector.multi_reduction <add>, %271, %cst_149 [1] : vector<16x128xf32> to vector<16xf32>
    %277 = vector.shape_cast %276 : vector<16xf32> to vector<16x1xf32>
    %cst_150 = arith.constant 1.280000e+02 : f32
    %278 = vector.broadcast %cst_150 : f32 to vector<16x1xf32>
    %279 = arith.divf %277, %278 : vector<16x1xf32>
    %280 = arith.mulf %271, %271 : vector<16x128xf32>
    %cst_151 = arith.constant dense<0.000000e+00> : vector<16xf32>
    %281 = vector.multi_reduction <add>, %280, %cst_151 [1] : vector<16x128xf32> to vector<16xf32>
    %282 = vector.shape_cast %281 : vector<16xf32> to vector<16x1xf32>
    %cst_152 = arith.constant 1.280000e+02 : f32
    %283 = vector.broadcast %cst_152 : f32 to vector<16x1xf32>
    %284 = arith.divf %282, %283 : vector<16x1xf32>
    %285 = arith.mulf %279, %279 : vector<16x1xf32>
    %286 = arith.subf %284, %285 : vector<16x1xf32>
    %cst_153 = arith.constant 0.000000e+00 : f32
    %287 = vector.broadcast %cst_153 : f32 to vector<16x1xf32>
    %288 = arith.maximumf %286, %287 : vector<16x1xf32>
    %289 = vector.broadcast %279 : vector<16x1xf32> to vector<16x128xf32>
    %290 = arith.subf %271, %289 : vector<16x128xf32>
    %cst_154 = arith.constant 9.99999974E-6 : f32
    %291 = vector.broadcast %cst_154 : f32 to vector<16x1xf32>
    %292 = arith.addf %288, %291 : vector<16x1xf32>
    %293 = math.rsqrt %292 : vector<16x1xf32>
    %294 = vector.broadcast %293 : vector<16x1xf32> to vector<16x128xf32>
    %295 = arith.mulf %290, %294 : vector<16x128xf32>
    %296 = vector.broadcast %273 : vector<1x128xf32> to vector<16x128xf32>
    %297 = arith.mulf %295, %296 : vector<16x128xf32>
    %298 = vector.broadcast %275 : vector<1x128xf32> to vector<16x128xf32>
    %299 = arith.addf %297, %298 : vector<16x128xf32>
    %c0_155 = arith.constant 0 : index
    %c0_156 = arith.constant 0 : index
    %300 = vector.load %arg15[%c0_155, %c0_156] : memref<16x128xf32, #tpu.memory_space<vmem>>, vector<16x128xf32>
    tpu.vector_store %arg15[%c0_155, %c0_156], %299 {strides = array<i32>} : memref<16x128xf32, #tpu.memory_space<vmem>>, vector<16x128xf32>,
    %c1_i32 = arith.constant 1 : i32
    %301 = arith.cmpi eq, %arg1, %c1_i32 : i32
    %302 = arith.extui %301 : i1 to i32
    %c0_i32_157 = arith.constant 0 : i32
    %303 = arith.cmpi ne, %302, %c0_i32_157 : i32
    scf.if %303 {
      %c3_158 = arith.constant 3 : index
      %c0_159 = arith.constant 0 : index
      %c0_160 = arith.constant 0 : index
      %304 = vector.load %arg12[%c3_158, %c0_159, %c0_160] : memref<4x1x128xf32, #tpu.memory_space<vmem>>, vector<1x1x128xf32>
      %305 = vector.shape_cast %304 : vector<1x1x128xf32> to vector<1x128xf32>
      %c3_161 = arith.constant 3 : index
      %c0_162 = arith.constant 0 : index
      %c0_163 = arith.constant 0 : index
      %306 = vector.load %arg13[%c3_161, %c0_162, %c0_163] : memref<4x1x128xf32, #tpu.memory_space<vmem>>, vector<1x1x128xf32>
      %307 = vector.shape_cast %306 : vector<1x1x128xf32> to vector<1x128xf32>
      %cst_164 = arith.constant dense<0.000000e+00> : vector<16xf32>
      %308 = vector.multi_reduction <add>, %299, %cst_164 [1] : vector<16x128xf32> to vector<16xf32>
      %309 = vector.shape_cast %308 : vector<16xf32> to vector<16x1xf32>
      %cst_165 = arith.constant 1.280000e+02 : f32
      %310 = vector.broadcast %cst_165 : f32 to vector<16x1xf32>
      %311 = arith.divf %309, %310 : vector<16x1xf32>
      %312 = arith.mulf %299, %299 : vector<16x128xf32>
      %cst_166 = arith.constant dense<0.000000e+00> : vector<16xf32>
      %313 = vector.multi_reduction <add>, %312, %cst_166 [1] : vector<16x128xf32> to vector<16xf32>
      %314 = vector.shape_cast %313 : vector<16xf32> to vector<16x1xf32>
      %cst_167 = arith.constant 1.280000e+02 : f32
      %315 = vector.broadcast %cst_167 : f32 to vector<16x1xf32>
      %316 = arith.divf %314, %315 : vector<16x1xf32>
      %317 = arith.mulf %311, %311 : vector<16x1xf32>
      %318 = arith.subf %316, %317 : vector<16x1xf32>
      %cst_168 = arith.constant 0.000000e+00 : f32
      %319 = vector.broadcast %cst_168 : f32 to vector<16x1xf32>
      %320 = arith.maximumf %318, %319 : vector<16x1xf32>
      %321 = vector.broadcast %311 : vector<16x1xf32> to vector<16x128xf32>
      %322 = arith.subf %299, %321 : vector<16x128xf32>
      %cst_169 = arith.constant 9.99999974E-6 : f32
      %323 = vector.broadcast %cst_169 : f32 to vector<16x1xf32>
      %324 = arith.addf %320, %323 : vector<16x1xf32>
      %325 = math.rsqrt %324 : vector<16x1xf32>
      %326 = vector.broadcast %325 : vector<16x1xf32> to vector<16x128xf32>
      %327 = arith.mulf %322, %326 : vector<16x128xf32>
      %328 = vector.broadcast %305 : vector<1x128xf32> to vector<16x128xf32>
      %329 = arith.mulf %327, %328 : vector<16x128xf32>
      %330 = vector.broadcast %307 : vector<1x128xf32> to vector<16x128xf32>
      %331 = arith.addf %329, %330 : vector<16x128xf32>
      %c0_170 = arith.constant 0 : index
      %c0_171 = arith.constant 0 : index
      %c0_172 = arith.constant 0 : index
      %332 = vector.load %arg14[%c0_170, %c0_171, %c0_172] : memref<1x16x128xf32, #tpu.memory_space<vmem>>, vector<1x16x128xf32>
      %333 = vector.shape_cast %332 : vector<1x16x128xf32> to vector<16x128xf32>
      %334 = vector.shape_cast %331 : vector<16x128xf32> to vector<1x16x128xf32>
      tpu.vector_store %arg14[%c0_170, %c0_171, %c0_172], %334 {strides = array<i32>} : memref<1x16x128xf32, #tpu.memory_space<vmem>>, vector<1x16x128xf32>,
    } else {
    }
    return
  }
  func.func @transform_0(%arg0: i32, %arg1: i32) -> (i32, i32, i32) {
    %c0_i32 = arith.constant 0 : i32
    %c0_i32_0 = arith.constant 0 : i32
    %c0_i32_1 = arith.constant 0 : i32
    return %arg0, %c0_i32, %c0_i32_0 : i32, i32, i32
  }
  func.func @transform_1(%arg0: i32, %arg1: i32) -> (i32, i32, i32) {
    %c0_i32 = arith.constant 0 : i32
    %c0_i32_0 = arith.constant 0 : i32
    %c0_i32_1 = arith.constant 0 : i32
    return %arg0, %c0_i32, %c0_i32_0 : i32, i32, i32
  }
  func.func @transform_2(%arg0: i32, %arg1: i32) -> (i32, i32, i32) {
    %c0_i32 = arith.constant 0 : i32
    %c0_i32_0 = arith.constant 0 : i32
    %c0_i32_1 = arith.constant 0 : i32
    return %arg0, %c0_i32, %c0_i32_0 : i32, i32, i32
  }
  func.func @transform_3(%arg0: i32, %arg1: i32) -> (i32, i32, i32) {
    %c0_i32 = arith.constant 0 : i32
    %c0_i32_0 = arith.constant 0 : i32
    %c0_i32_1 = arith.constant 0 : i32
    return %arg0, %c0_i32, %c0_i32_0 : i32, i32, i32
  }
  func.func @transform_4(%arg0: i32, %arg1: i32) -> (i32, i32, i32, i32) {
    %c0_i32 = arith.constant 0 : i32
    %c0_i32_0 = arith.constant 0 : i32
    %c0_i32_1 = arith.constant 0 : i32
    %c0_i32_2 = arith.constant 0 : i32
    %c0_i32_3 = arith.constant 0 : i32
    return %c0_i32, %c0_i32_0, %c0_i32_1, %c0_i32_2 : i32, i32, i32, i32
  }
  func.func @transform_5(%arg0: i32, %arg1: i32) -> (i32, i32, i32, i32) {
    %c0_i32 = arith.constant 0 : i32
    %c0_i32_0 = arith.constant 0 : i32
    %c0_i32_1 = arith.constant 0 : i32
    %c0_i32_2 = arith.constant 0 : i32
    %c0_i32_3 = arith.constant 0 : i32
    return %c0_i32, %c0_i32_0, %c0_i32_1, %c0_i32_2 : i32, i32, i32, i32
  }
  func.func @transform_6(%arg0: i32, %arg1: i32) -> (i32, i32) {
    %c0_i32 = arith.constant 0 : i32
    %c0_i32_0 = arith.constant 0 : i32
    %c0_i32_1 = arith.constant 0 : i32
    return %c0_i32, %c0_i32_0 : i32, i32
  }
  func.func @transform_7(%arg0: i32, %arg1: i32) -> (i32, i32) {
    %c0_i32 = arith.constant 0 : i32
    %c0_i32_0 = arith.constant 0 : i32
    %c0_i32_1 = arith.constant 0 : i32
    return %c0_i32, %c0_i32_0 : i32, i32
  }
  func.func @transform_8(%arg0: i32, %arg1: i32) -> (i32, i32) {
    %c0_i32 = arith.constant 0 : i32
    %c0_i32_0 = arith.constant 0 : i32
    %c0_i32_1 = arith.constant 0 : i32
    return %c0_i32, %c0_i32_0 : i32, i32
  }
  func.func @transform_9(%arg0: i32, %arg1: i32) -> (i32, i32) {
    %c0_i32 = arith.constant 0 : i32
    %c0_i32_0 = arith.constant 0 : i32
    %c0_i32_1 = arith.constant 0 : i32
    return %c0_i32, %c0_i32_0 : i32, i32
  }
  func.func @transform_10(%arg0: i32, %arg1: i32) -> (i32, i32, i32) {
    %c0_i32 = arith.constant 0 : i32
    %c0_i32_0 = arith.constant 0 : i32
    %c0_i32_1 = arith.constant 0 : i32
    %c0_i32_2 = arith.constant 0 : i32
    return %c0_i32, %c0_i32_0, %c0_i32_1 : i32, i32, i32
  }
  func.func @transform_11(%arg0: i32, %arg1: i32) -> (i32, i32, i32) {
    %c0_i32 = arith.constant 0 : i32
    %c0_i32_0 = arith.constant 0 : i32
    %c0_i32_1 = arith.constant 0 : i32
    %c0_i32_2 = arith.constant 0 : i32
    return %c0_i32, %c0_i32_0, %c0_i32_1 : i32, i32, i32
  }
  func.func @transform_12(%arg0: i32, %arg1: i32) -> (i32, i32, i32) {
    %c0_i32 = arith.constant 0 : i32
    %c0_i32_0 = arith.constant 0 : i32
    %c0_i32_1 = arith.constant 0 : i32
    return %arg0, %c0_i32, %c0_i32_0 : i32, i32, i32
  }
}

</mosaic_0001>

<llo_original>
// kernel: transformer_decoder.1
$region0: #{transformer_decoder.1}
  #allocation0 [shape = 'u32[]', space=smem, size = 0x4, offset = 0x4, fixed_abs, tag = 'smem constant byte address 0x4 - core index']
  #allocation1 [shape = 'u32[144,128]{1,0:T(1,128)}', space=vmem, size = 0x12000, scoped, tag = 'internal scratch']
  #allocation2 [shape = 'f32[16,128]{1,0:T(8,128)}', space=vmem, size = 0x2000, scoped, tag = 'scratch operand']
  #allocation3 [shape = 'bf16[32,128]{1,0:T(16,128)(2,1)}', space=vmem, size = 0x2000, scoped, tag = 'scratch operand']
  #allocation4 [shape = 'bf16[32,128]{1,0:T(16,128)(2,1)}', space=vmem, size = 0x2000, scoped, tag = 'scratch operand']
  #allocation5 [shape = 'f32[16,128]{1,0:T(8,128)}', space=vmem, size = 0x2000, scoped, tag = 'scratch operand']
  %s0 = inlined_call_operand.vmem [shape: f32[2,16,128], index: 0, kind: input, shape index: {}]
  %s1 = inlined_call_operand.vmem [shape: bf16[2,32,128], index: 1, kind: input, shape index: {}]
  %s2 = inlined_call_operand.vmem [shape: bf16[2,32,128], index: 2, kind: input, shape index: {}]
  %s3 = inlined_call_operand.vmem [shape: f32[2,16,128], index: 3, kind: input, shape index: {}]
  %s4 = inlined_call_operand.hbm [shape: bf16[2,4,128,128], index: 4, kind: input, shape index: {}]
  %s5 = inlined_call_operand.vmem [shape: f32[2,4,1,128], index: 5, kind: input, shape index: {}]
  %s6 = inlined_call_operand.vmem [shape: bf16[128,256], index: 6, kind: input, shape index: {}]
  %s7 = inlined_call_operand.vmem [shape: f32[1,256], index: 7, kind: input, shape index: {}]
  %s8 = inlined_call_operand.vmem [shape: bf16[256,128], index: 8, kind: input, shape index: {}]
  %s9 = inlined_call_operand.vmem [shape: f32[1,128], index: 9, kind: input, shape index: {}]
  %s10 = inlined_call_operand.vmem [shape: f32[4,1,128], index: 10, kind: input, shape index: {}]
  %s11 = inlined_call_operand.vmem [shape: f32[4,1,128], index: 11, kind: input, shape index: {}]
  %s12 = inlined_call_operand.vmem [shape: f32[2,16,128], index: 12, kind: output, shape index: {}]
  %s13 = sld [smem:[#allocation0]]
  $region93: #{transformer_decoder.1} parent=0
    _
  %s15 = ssub.s32 1, %s13
  %s16 = scalar_select 0, %s15, %s13
  $region1: #{transformer_decoder.1} parent=0
    #allocation6 [shape = 'u8[262144]{0}', space=vmem, size = 0x40000, scoped, tag = 'input window, operand 4, single buffered']
    #allocation7 [shape = 's32[2]{0}', space=sflag, size = 0x8, scoped, tag = 'scoped memory for transformer_decoder.1']
    %17 = vsyncpa [#allocation7], 0
    loop: start=0, step=1, limit=6
    $region2: #{transformer_decoder.1} parent=1 // loop_pre_header
      _
    $region3: #{transformer_decoder.1} parent=1 // loop_header
      %s19 = sphi 0, %s23
      %p20 = scmp.ge.s32.totalorder %s19, 6
      %s26 = sphi 0, %s38
      %s27 = sphi 0, %s34
      %s28 = sphi 0, %s26
      %s29 = sphi 0, %s27
      %s30 = sphi 0, %s28
      %s31 = sphi 0, %s29
      %s41 = sphi 0, %s43
      %s44 = sphi 0, %s41
      %s45 = sphi 0, %s44
      %s61 = sphi 0, %s45
      %s67 = sphi 0, %s69
      %s70 = sphi 0, %s67
      %s71 = sphi 0, %s70
      %s87 = sphi 0, %s71
      %s93 = sphi 0, %s95
      %s96 = sphi 0, %s93
      %s97 = sphi 0, %s96
      %s113 = sphi 0, %s97
      %s119 = sphi 0, %s121
      %s122 = sphi 0, %s119
      %s123 = sphi 0, %s122
      %s139 = sphi 0, %s123
      %s143 = sphi 0, %s143
      %s145 = sphi 0, %s143
      %s146 = sphi 0, %s145
      %s160 = sphi 0, %s146
      %s164 = sphi 0, %s164
      %s166 = sphi 0, %s164
      %s167 = sphi 0, %s166
      %s181 = sphi 0, %s167
      %s185 = sphi 0, %s185
      %s187 = sphi 0, %s185
      %s188 = sphi 0, %s187
      %s202 = sphi 0, %s188
      %s206 = sphi 0, %s206
      %s208 = sphi 0, %s206
      %s209 = sphi 0, %s208
      %s223 = sphi 0, %s209
      %s227 = sphi 0, %s227
      %s229 = sphi 0, %s227
      %s230 = sphi 0, %s229
      %s244 = sphi 0, %s230
      %s248 = sphi 0, %s248
      %s250 = sphi 0, %s248
      %s251 = sphi 0, %s250
      %s265 = sphi 0, %s251
      %s269 = sphi 0, %s269
      %s271 = sphi 0, %s269
      %s272 = sphi 0, %s271
      %s286 = sphi 0, %s272
      %s290 = sphi 0, %s290
      %s292 = sphi 0, %s290
      %s293 = sphi 0, %s292
      %s307 = sphi 0, %s293
      %s313 = sphi 0, %s315
      %s316 = sphi 0, %s313
      %s317 = sphi 0, %s316
      %s333 = sphi 0, %s317
    $region4: #{transformer_decoder.1} parent=1 // loop_header_branch
      %22 = sbr.rel (%p20) target = $region8
    $region5: #{transformer_decoder.1} parent=1 // loop_body
      %s24 = ssub.s32 %s19, 1
      %s25 = ssub.s32 %s19, 2
      %s32 = sadd.s32 1, %s27
      %p33 = scmp.ge.s32.totalorder %s32, 2
      %s34 = scalar_select %p33, 0, %s32
      %s35 = sadd.s32 1, %s26
      %s36 = scalar_select %p33, %s35, %s26
      %p37 = scmp.ge.s32.totalorder %s36, 2
      %s38 = scalar_select %p37, 0, %s36
      %s39 = ssub.s32 %s26, %s38
      %p40 = scmp.eq.s32.totalorder %s39, 0
      %s42 = sadd.s32 %s41, 1
      %s43 = scalar_select %p40, %s41, %s42
      %p46 = pneg %p40
      %p47 = scmp.eq.s32.totalorder %s19, 3
      %p48 = por %p46, %p47
      %p49 = scmp.ne.s32.totalorder %s41, %s44
      %p50 = scmp.eq.s32.totalorder %s19, 0
      %p51 = por %p49, %p50
      %p52 = scmp.ne.s32.totalorder %s41, %s44
      %p53 = scmp.eq.s32.totalorder %s24, 3
      %p54 = por %p52, %p53
      %p55 = scmp.ne.s32.totalorder %s44, %s45
      %p56 = scmp.eq.s32.totalorder %s24, 0
      %p57 = por %p55, %p56
      %p58 = scmp.ne.s32.totalorder %s44, %s45
      %p59 = scmp.eq.s32.totalorder %s25, 3
      %p60 = por %p58, %p59
      %p62 = scmp.ne.s32.totalorder %s45, %s61
      %p63 = scmp.eq.s32.totalorder %s25, 0
      %p64 = por %p62, %p63
      %s65 = ssub.s32 %s26, %s38
      %p66 = scmp.eq.s32.totalorder %s65, 0
      %s68 = sadd.s32 %s67, 1
      %s69 = scalar_select %p66, %s67, %s68
      %p72 = pneg %p66
      %p73 = scmp.eq.s32.totalorder %s19, 3
      %p74 = por %p72, %p73
      %p75 = scmp.ne.s32.totalorder %s67, %s70
      %p76 = scmp.eq.s32.totalorder %s19, 0
      %p77 = por %p75, %p76
      %p78 = scmp.ne.s32.totalorder %s67, %s70
      %p79 = scmp.eq.s32.totalorder %s24, 3
      %p80 = por %p78, %p79
      %p81 = scmp.ne.s32.totalorder %s70, %s71
      %p82 = scmp.eq.s32.totalorder %s24, 0
      %p83 = por %p81, %p82
      %p84 = scmp.ne.s32.totalorder %s70, %s71
      %p85 = scmp.eq.s32.totalorder %s25, 3
      %p86 = por %p84, %p85
      %p88 = scmp.ne.s32.totalorder %s71, %s87
      %p89 = scmp.eq.s32.totalorder %s25, 0
      %p90 = por %p88, %p89
      %s91 = ssub.s32 %s26, %s38
      %p92 = scmp.eq.s32.totalorder %s91, 0
      %s94 = sadd.s32 %s93, 1
      %s95 = scalar_select %p92, %s93, %s94
      %p98 = pneg %p92
      %p99 = scmp.eq.s32.totalorder %s19, 3
      %p100 = por %p98, %p99
      %p101 = scmp.ne.s32.totalorder %s93, %s96
      %p102 = scmp.eq.s32.totalorder %s19, 0
      %p103 = por %p101, %p102
      %p104 = scmp.ne.s32.totalorder %s93, %s96
      %p105 = scmp.eq.s32.totalorder %s24, 3
      %p106 = por %p104, %p105
      %p107 = scmp.ne.s32.totalorder %s96, %s97
      %p108 = scmp.eq.s32.totalorder %s24, 0
      %p109 = por %p107, %p108
      %p110 = scmp.ne.s32.totalorder %s96, %s97
      %p111 = scmp.eq.s32.totalorder %s25, 3
      %p112 = por %p110, %p111
      %p114 = scmp.ne.s32.totalorder %s97, %s113
      %p115 = scmp.eq.s32.totalorder %s25, 0
      %p116 = por %p114, %p115
      %s117 = ssub.s32 %s26, %s38
      %p118 = scmp.eq.s32.totalorder %s117, 0
      %s120 = sadd.s32 %s119, 1
      %s121 = scalar_select %p118, %s119, %s120
      %p124 = pneg %p118
      %p125 = scmp.eq.s32.totalorder %s19, 3
      %p126 = por %p124, %p125
      %p127 = scmp.ne.s32.totalorder %s119, %s122
      %p128 = scmp.eq.s32.totalorder %s19, 0
      %p129 = por %p127, %p128
      %p130 = scmp.ne.s32.totalorder %s119, %s122
      %p131 = scmp.eq.s32.totalorder %s24, 3
      %p132 = por %p130, %p131
      %p133 = scmp.ne.s32.totalorder %s122, %s123
      %p134 = scmp.eq.s32.totalorder %s24, 0
      %p135 = por %p133, %p134
      %p136 = scmp.ne.s32.totalorder %s122, %s123
      %p137 = scmp.eq.s32.totalorder %s25, 3
      %p138 = por %p136, %p137
      %p140 = scmp.ne.s32.totalorder %s123, %s139
      %p141 = scmp.eq.s32.totalorder %s25, 0
      %p142 = por %p140, %p141
      %s144 = sadd.s32 %s143, 1
      %p147 = scmp.eq.s32.totalorder %s19, 3
      %p148 = scmp.ne.s32.totalorder %s143, %s145
      %p149 = scmp.eq.s32.totalorder %s19, 0
      %p150 = por %p148, %p149
      %p151 = scmp.ne.s32.totalorder %s143, %s145
      %p152 = scmp.eq.s32.totalorder %s24, 3
      %p153 = por %p151, %p152
      %p154 = scmp.ne.s32.totalorder %s145, %s146
      %p155 = scmp.eq.s32.totalorder %s24, 0
      %p156 = por %p154, %p155
      %p157 = scmp.ne.s32.totalorder %s145, %s146
      %p158 = scmp.eq.s32.totalorder %s25, 3
      %p159 = por %p157, %p158
      %p161 = scmp.ne.s32.totalorder %s146, %s160
      %p162 = scmp.eq.s32.totalorder %s25, 0
      %p163 = por %p161, %p162
      %s165 = sadd.s32 %s164, 1
      %p168 = scmp.eq.s32.totalorder %s19, 3
      %p169 = scmp.ne.s32.totalorder %s164, %s166
      %p170 = scmp.eq.s32.totalorder %s19, 0
      %p171 = por %p169, %p170
      %p172 = scmp.ne.s32.totalorder %s164, %s166
      %p173 = scmp.eq.s32.totalorder %s24, 3
      %p174 = por %p172, %p173
      %p175 = scmp.ne.s32.totalorder %s166, %s167
      %p176 = scmp.eq.s32.totalorder %s24, 0
      %p177 = por %p175, %p176
      %p178 = scmp.ne.s32.totalorder %s166, %s167
      %p179 = scmp.eq.s32.totalorder %s25, 3
      %p180 = por %p178, %p179
      %p182 = scmp.ne.s32.totalorder %s167, %s181
      %p183 = scmp.eq.s32.totalorder %s25, 0
      %p184 = por %p182, %p183
      %s186 = sadd.s32 %s185, 1
      %p189 = scmp.eq.s32.totalorder %s19, 3
      %p190 = scmp.ne.s32.totalorder %s185, %s187
      %p191 = scmp.eq.s32.totalorder %s19, 0
      %p192 = por %p190, %p191
      %p193 = scmp.ne.s32.totalorder %s185, %s187
      %p194 = scmp.eq.s32.totalorder %s24, 3
      %p195 = por %p193, %p194
      %p196 = scmp.ne.s32.totalorder %s187, %s188
      %p197 = scmp.eq.s32.totalorder %s24, 0
      %p198 = por %p196, %p197
      %p199 = scmp.ne.s32.totalorder %s187, %s188
      %p200 = scmp.eq.s32.totalorder %s25, 3
      %p201 = por %p199, %p200
      %p203 = scmp.ne.s32.totalorder %s188, %s202
      %p204 = scmp.eq.s32.totalorder %s25, 0
      %p205 = por %p203, %p204
      %s207 = sadd.s32 %s206, 1
      %p210 = scmp.eq.s32.totalorder %s19, 3
      %p211 = scmp.ne.s32.totalorder %s206, %s208
      %p212 = scmp.eq.s32.totalorder %s19, 0
      %p213 = por %p211, %p212
      %p214 = scmp.ne.s32.totalorder %s206, %s208
      %p215 = scmp.eq.s32.totalorder %s24, 3
      %p216 = por %p214, %p215
      %p217 = scmp.ne.s32.totalorder %s208, %s209
      %p218 = scmp.eq.s32.totalorder %s24, 0
      %p219 = por %p217, %p218
      %p220 = scmp.ne.s32.totalorder %s208, %s209
      %p221 = scmp.eq.s32.totalorder %s25, 3
      %p222 = por %p220, %p221
      %p224 = scmp.ne.s32.totalorder %s209, %s223
      %p225 = scmp.eq.s32.totalorder %s25, 0
      %p226 = por %p224, %p225
      %s228 = sadd.s32 %s227, 1
      %p231 = scmp.eq.s32.totalorder %s19, 3
      %p232 = scmp.ne.s32.totalorder %s227, %s229
      %p233 = scmp.eq.s32.totalorder %s19, 0
      %p234 = por %p232, %p233
      %p235 = scmp.ne.s32.totalorder %s227, %s229
      %p236 = scmp.eq.s32.totalorder %s24, 3
      %p237 = por %p235, %p236
      %p238 = scmp.ne.s32.totalorder %s229, %s230
      %p239 = scmp.eq.s32.totalorder %s24, 0
      %p240 = por %p238, %p239
      %p241 = scmp.ne.s32.totalorder %s229, %s230
      %p242 = scmp.eq.s32.totalorder %s25, 3
      %p243 = por %p241, %p242
      %p245 = scmp.ne.s32.totalorder %s230, %s244
      %p246 = scmp.eq.s32.totalorder %s25, 0
      %p247 = por %p245, %p246
      %s249 = sadd.s32 %s248, 1
      %p252 = scmp.eq.s32.totalorder %s19, 3
      %p253 = scmp.ne.s32.totalorder %s248, %s250
      %p254 = scmp.eq.s32.totalorder %s19, 0
      %p255 = por %p253, %p254
      %p256 = scmp.ne.s32.totalorder %s248, %s250
      %p257 = scmp.eq.s32.totalorder %s24, 3
      %p258 = por %p256, %p257
      %p259 = scmp.ne.s32.totalorder %s250, %s251
      %p260 = scmp.eq.s32.totalorder %s24, 0
      %p261 = por %p259, %p260
      %p262 = scmp.ne.s32.totalorder %s250, %s251
      %p263 = scmp.eq.s32.totalorder %s25, 3
      %p264 = por %p262, %p263
      %p266 = scmp.ne.s32.totalorder %s251, %s265
      %p267 = scmp.eq.s32.totalorder %s25, 0
      %p268 = por %p266, %p267
      %s270 = sadd.s32 %s269, 1
      %p273 = scmp.eq.s32.totalorder %s19, 3
      %p274 = scmp.ne.s32.totalorder %s269, %s271
      %p275 = scmp.eq.s32.totalorder %s19, 0
      %p276 = por %p274, %p275
      %p277 = scmp.ne.s32.totalorder %s269, %s271
      %p278 = scmp.eq.s32.totalorder %s24, 3
      %p279 = por %p277, %p278
      %p280 = scmp.ne.s32.totalorder %s271, %s272
      %p281 = scmp.eq.s32.totalorder %s24, 0
      %p282 = por %p280, %p281
      %p283 = scmp.ne.s32.totalorder %s271, %s272
      %p284 = scmp.eq.s32.totalorder %s25, 3
      %p285 = por %p283, %p284
      %p287 = scmp.ne.s32.totalorder %s272, %s286
      %p288 = scmp.eq.s32.totalorder %s25, 0
      %p289 = por %p287, %p288
      %s291 = sadd.s32 %s290, 1
      %p294 = scmp.eq.s32.totalorder %s19, 3
      %p295 = scmp.ne.s32.totalorder %s290, %s292
      %p296 = scmp.eq.s32.totalorder %s19, 0
      %p297 = por %p295, %p296
      %p298 = scmp.ne.s32.totalorder %s290, %s292
      %p299 = scmp.eq.s32.totalorder %s24, 3
      %p300 = por %p298, %p299
      %p301 = scmp.ne.s32.totalorder %s292, %s293
      %p302 = scmp.eq.s32.totalorder %s24, 0
      %p303 = por %p301, %p302
      %p304 = scmp.ne.s32.totalorder %s292, %s293
      %p305 = scmp.eq.s32.totalorder %s25, 3
      %p306 = por %p304, %p305
      %p308 = scmp.ne.s32.totalorder %s293, %s307
      %p309 = scmp.eq.s32.totalorder %s25, 0
      %p310 = por %p308, %p309
      %s311 = ssub.s32 %s26, %s38
      %p312 = scmp.eq.s32.totalorder %s311, 0
      %s314 = sadd.s32 %s313, 1
      %s315 = scalar_select %p312, %s313, %s314
      %p318 = pneg %p312
      %p319 = scmp.eq.s32.totalorder %s19, 3
      %p320 = por %p318, %p319
      %p321 = scmp.ne.s32.totalorder %s313, %s316
      %p322 = scmp.eq.s32.totalorder %s19, 0
      %p323 = por %p321, %p322
      %p324 = scmp.ne.s32.totalorder %s313, %s316
      %p325 = scmp.eq.s32.totalorder %s24, 3
      %p326 = por %p324, %p325
      %p327 = scmp.ne.s32.totalorder %s316, %s317
      %p328 = scmp.eq.s32.totalorder %s24, 0
      %p329 = por %p327, %p328
      %p330 = scmp.ne.s32.totalorder %s316, %s317
      %p331 = scmp.eq.s32.totalorder %s25, 3
      %p332 = por %p330, %p331
      %p334 = scmp.ne.s32.totalorder %s317, %s333
      %p335 = scmp.eq.s32.totalorder %s25, 0
      %p336 = por %p334, %p335
      %p337 = scmp.le.s32.totalorder 1, %s19
      %p338 = scmp.lt.s32.totalorder %s19, 5
      %p339 = pnand %p337, %p338
      %p340 = pneg %p339
      // Predicated region
      $region9: #{transformer_decoder.1} parent=5 // pred_check
        _
      $region10: #{transformer_decoder.1} parent=5 // pred_check_branch
        %342 = sbr.rel (%p339) target = $region12
      $region11: #{transformer_decoder.1} parent=5 // pred_region
        %s343 = ssub.s32 %s19, 1
        // Predicated region
        $region13: #{transformer_decoder.1} parent=11 // pred_check
          %p344 = pneg %p156
        $region14: #{transformer_decoder.1} parent=11 // pred_check_branch
          %346 = sbr.rel (%p344) target = $region16
        $region15: #{transformer_decoder.1} parent=11 // pred_region
          %s348 = ssub.s32 8192, 8192
          %349 = vsyncadd [#allocation7], %s348
          %s350 = sshll.u32 [#allocation6], 4
          %s351 = int_to_ptr.vmem [resolvable:$true] %s350
          %356 = dma.hbm_to_vmem [thread:$0]  %s4, 8192, %s351, [#allocation7], 64, 64, 4
        $region16: #{transformer_decoder.1} parent=11 // pred_fallthru
          _
        // Predicated region
        $region17: #{transformer_decoder.1} parent=11 // pred_check
          %p357 = pneg %p177
        $region18: #{transformer_decoder.1} parent=11 // pred_check_branch
          %359 = sbr.rel (%p357) target = $region20
        $region19: #{transformer_decoder.1} parent=11 // pred_region
          _
        $region20: #{transformer_decoder.1} parent=11 // pred_fallthru
          _
        // Predicated region
        $region21: #{transformer_decoder.1} parent=11 // pred_check
          %p360 = pneg %p198
        $region22: #{transformer_decoder.1} parent=11 // pred_check_branch
          %362 = sbr.rel (%p360) target = $region24
        $region23: #{transformer_decoder.1} parent=11 // pred_region
          _
        $region24: #{transformer_decoder.1} parent=11 // pred_fallthru
          _
        // Predicated region
        $region25: #{transformer_decoder.1} parent=11 // pred_check
          %p363 = pneg %p219
        $region26: #{transformer_decoder.1} parent=11 // pred_check_branch
          %365 = sbr.rel (%p363) target = $region28
        $region27: #{transformer_decoder.1} parent=11 // pred_region
          _
        $region28: #{transformer_decoder.1} parent=11 // pred_fallthru
          _
        // Predicated region
        $region29: #{transformer_decoder.1} parent=11 // pred_check
          %p366 = pneg %p240
        $region30: #{transformer_decoder.1} parent=11 // pred_check_branch
          %368 = sbr.rel (%p366) target = $region32
        $region31: #{transformer_decoder.1} parent=11 // pred_region
          _
        $region32: #{transformer_decoder.1} parent=11 // pred_fallthru
          _
        // Predicated region
        $region33: #{transformer_decoder.1} parent=11 // pred_check
          %p369 = pneg %p261
        $region34: #{transformer_decoder.1} parent=11 // pred_check_branch
          %371 = sbr.rel (%p369) target = $region36
        $region35: #{transformer_decoder.1} parent=11 // pred_region
          _
        $region36: #{transformer_decoder.1} parent=11 // pred_fallthru
          _
        // Predicated region
        $region37: #{transformer_decoder.1} parent=11 // pred_check
          %p372 = pneg %p282
        $region38: #{transformer_decoder.1} parent=11 // pred_check_branch
          %374 = sbr.rel (%p372) target = $region40
        $region39: #{transformer_decoder.1} parent=11 // pred_region
          _
        $region40: #{transformer_decoder.1} parent=11 // pred_fallthru
          _
        // Predicated region
        $region41: #{transformer_decoder.1} parent=11 // pred_check
          %p375 = pneg %p303
        $region42: #{transformer_decoder.1} parent=11 // pred_check_branch
          %377 = sbr.rel (%p375) target = $region44
        $region43: #{transformer_decoder.1} parent=11 // pred_region
          _
        $region44: #{transformer_decoder.1} parent=11 // pred_fallthru
          _
      $region12: #{transformer_decoder.1} parent=5 // pred_fallthru
        _
      %p378 = scmp.lt.s32.totalorder %s19, 4
      // Predicated region
      $region45: #{transformer_decoder.1} parent=5 // pred_check
        %p379 = pneg %p378
      $region46: #{transformer_decoder.1} parent=5 // pred_check_branch
        %381 = sbr.rel (%p379) target = $region48
      $region47: #{transformer_decoder.1} parent=5 // pred_region
        // Predicated region
        $region49: #{transformer_decoder.1} parent=47 // pred_check
          %p382 = pneg %p51
        $region50: #{transformer_decoder.1} parent=47 // pred_check_branch
          %384 = sbr.rel (%p382) target = $region52
        $region51: #{transformer_decoder.1} parent=47 // pred_region
          %p385 = scmp.lt.s32.totalorder %s26, 1
          %s386 = scalar_select %p385, %s26, 1
          %s387 = smul.addr %s386, 2
          %s388 = smul.addr %s387, 8
          %s389 = scalar_lea.vmem %s0, %s388
        $region52: #{transformer_decoder.1} parent=47 // pred_fallthru
          _
        // Predicated region
        $region53: #{transformer_decoder.1} parent=47 // pred_check
          %p390 = pneg %p77
        $region54: #{transformer_decoder.1} parent=47 // pred_check_branch
          %392 = sbr.rel (%p390) target = $region56
        $region55: #{transformer_decoder.1} parent=47 // pred_region
          %p393 = scmp.lt.s32.totalorder %s26, 1
          %s394 = scalar_select %p393, %s26, 1
          %s395 = smul.addr %s394, 4
          %s396 = smul.addr %s395, 4
          %s397 = scalar_lea.vmem %s1, %s396
        $region56: #{transformer_decoder.1} parent=47 // pred_fallthru
          _
        // Predicated region
        $region57: #{transformer_decoder.1} parent=47 // pred_check
          %p398 = pneg %p103
        $region58: #{transformer_decoder.1} parent=47 // pred_check_branch
          %400 = sbr.rel (%p398) target = $region60
        $region59: #{transformer_decoder.1} parent=47 // pred_region
          %p401 = scmp.lt.s32.totalorder %s26, 1
          %s402 = scalar_select %p401, %s26, 1
          %s403 = smul.addr %s402, 4
          %s404 = smul.addr %s403, 4
          %s405 = scalar_lea.vmem %s2, %s404
        $region60: #{transformer_decoder.1} parent=47 // pred_fallthru
          _
        // Predicated region
        $region61: #{transformer_decoder.1} parent=47 // pred_check
          %p406 = pneg %p129
        $region62: #{transformer_decoder.1} parent=47 // pred_check_branch
          %408 = sbr.rel (%p406) target = $region64
        $region63: #{transformer_decoder.1} parent=47 // pred_region
          %p409 = scmp.lt.s32.totalorder %s26, 1
          %s410 = scalar_select %p409, %s26, 1
          %s411 = smul.addr %s410, 2
          %s412 = smul.addr %s411, 8
          %s413 = scalar_lea.vmem %s3, %s412
        $region64: #{transformer_decoder.1} parent=47 // pred_fallthru
          _
      $region48: #{transformer_decoder.1} parent=5 // pred_fallthru
        _
      %p414 = scmp.le.s32.totalorder 1, %s19
      %p415 = scmp.lt.s32.totalorder %s19, 5
      %p416 = pnand %p414, %p415
      %p417 = pneg %p416
      // Predicated region
      $region65: #{transformer_decoder.1} parent=5 // pred_check
        _
      $region66: #{transformer_decoder.1} parent=5 // pred_check_branch
        %419 = sbr.rel (%p416) target = $region68
      $region67: #{transformer_decoder.1} parent=5 // pred_region
        %s420 = ssub.s32 %s19, 1
        // Predicated region
        $region69: #{transformer_decoder.1} parent=67 // pred_check
          %p421 = pneg %p156
        $region70: #{transformer_decoder.1} parent=67 // pred_check_branch
          %423 = sbr.rel (%p421) target = $region72
        $region71: #{transformer_decoder.1} parent=67 // pred_region
          %424 = dma.done [#allocation7], 8192
        $region72: #{transformer_decoder.1} parent=67 // pred_fallthru
          _
        %p425 = scmp.lt.s32.totalorder %s28, 1
        %s426 = scalar_select %p425, %s28, 1
        %s427 = smul.addr %s426, 2
        %s428 = smul.addr %s427, 8
        %s429 = scalar_lea.vmem %s0, %s428
        %p430 = pneg %p57
        %p431 = pneg %p54
        %p432 = scmp.lt.s32.totalorder %s28, 1
        %s433 = scalar_select %p432, %s28, 1
        %s434 = smul.addr %s433, 4
        %s435 = smul.addr %s434, 4
        %s436 = scalar_lea.vmem %s1, %s435
        %p437 = pneg %p83
        %p438 = pneg %p80
        %p439 = scmp.lt.s32.totalorder %s28, 1
        %s440 = scalar_select %p439, %s28, 1
        %s441 = smul.addr %s440, 4
        %s442 = smul.addr %s441, 4
        %s443 = scalar_lea.vmem %s2, %s442
        %p444 = pneg %p109
        %p445 = pneg %p106
        %p446 = scmp.lt.s32.totalorder %s28, 1
        %s447 = scalar_select %p446, %s28, 1
        %s448 = smul.addr %s447, 2
        %s449 = smul.addr %s448, 8
        %s450 = scalar_lea.vmem %s3, %s449
        %p451 = pneg %p135
        %p452 = pneg %p132
        %p453 = pneg %p156
        %p454 = pneg %p153
        %p455 = pneg %p177
        %p456 = pneg %p174
        %p457 = pneg %p198
        %p458 = pneg %p195
        %p459 = pneg %p219
        %p460 = pneg %p216
        %p461 = pneg %p240
        %p462 = pneg %p237
        %p463 = pneg %p261
        %p464 = pneg %p258
        %p465 = pneg %p282
        %p466 = pneg %p279
        %p467 = pneg %p303
        %p468 = pneg %p300
        %p469 = pneg %p329
        %p470 = pneg %p326
        %p471 = scmp.lt.s32.totalorder %s28, 1
        %s472 = scalar_select %p471, %s28, 1
        %s473 = smul.addr %s472, 2
        %s474 = smul.addr %s473, 8
        %s475 = scalar_lea.vmem %s12, %s474
        %p476 = scmp.lt.s32.totalorder %s28, 1
        %s477 = scalar_select %p476, %s28, 1
        %s478 = smul.addr %s477, 2
        %s479 = smul.addr %s478, 8
        %s480 = scalar_lea.vmem %s0, %s479
        %p481 = scmp.lt.s32.totalorder %s28, 1
        %s482 = scalar_select %p481, %s28, 1
        %s483 = smul.addr %s482, 4
        %s484 = smul.addr %s483, 4
        %s485 = scalar_lea.vmem %s1, %s484
        %p486 = scmp.lt.s32.totalorder %s28, 1
        %s487 = scalar_select %p486, %s28, 1
        %s488 = smul.addr %s487, 4
        %s489 = smul.addr %s488, 4
        %s490 = scalar_lea.vmem %s2, %s489
        %p491 = scmp.lt.s32.totalorder %s28, 1
        %s492 = scalar_select %p491, %s28, 1
        %s493 = smul.addr %s492, 2
        %s494 = smul.addr %s493, 8
        %s495 = scalar_lea.vmem %s3, %s494
        %p496 = scmp.lt.s32.totalorder %s28, 1
        %s497 = scalar_select %p496, %s28, 1
        %s498 = smul.addr %s497, 2
        %s499 = smul.addr %s498, 8
        %s500 = scalar_lea.vmem %s12, %s499
        %p502 = scmp.eq.s32.totalorder %s29, 0
        // Predicated region
        $region73: #{transformer_decoder.1} parent=67 // pred_check
          %p503 = pneg %p502
        $region74: #{transformer_decoder.1} parent=67 // pred_check_branch
          %505 = sbr.rel (%p503) target = $region76
        $region75: #{transformer_decoder.1} parent=67 // pred_region
          %v506 = vld [vmem:[%s480] sm:$0xff]
          %v507 = vld [vmem:[%s480 + $0x8] sm:$0xff]
          %508 = vst [vmem:[#allocation2] sm:$0xff] %v506
          %509 = vst [vmem:[#allocation2 + $0x8] sm:$0xff] %v507
          %v510 = vld [vmem:[%s485] sm:$0xf]
          %v511 = vld [vmem:[%s485 + $0x4] sm:$0xf]
          %v512 = vld [vmem:[%s485 + $0x8] sm:$0xf]
          %v513 = vld [vmem:[%s485 + $0xc] sm:$0xf]
          %v514 = vunpack.c.l.bf16 %v510
          %v515 = vunpack.c.l.bf16 %v511
          %v516 = vunpack.c.l.bf16 %v512
          %v517 = vunpack.c.l.bf16 %v513
          %v518 = vld [vmem:[%s490] sm:$0xf]
          %v519 = vld [vmem:[%s490 + $0x4] sm:$0xf]
          %v520 = vld [vmem:[%s490 + $0x8] sm:$0xf]
          %v521 = vld [vmem:[%s490 + $0xc] sm:$0xf]
          %v522 = vunpack.c.l.bf16 %v518
          %v523 = vunpack.c.l.bf16 %v519
          %v524 = vunpack.c.l.bf16 %v520
          %v525 = vunpack.c.l.bf16 %v521
          %v526 = vadd.f32 %v514, %v522
          %v527 = vadd.f32 %v515, %v523
          %v528 = vadd.f32 %v516, %v524
          %v529 = vadd.f32 %v517, %v525
          %v530 = vpack.c.bf16 %v527, %v526
          %v531 = vpack.c.bf16 %v529, %v528
          %s532 = scalar_lea.vmem [#allocation6], 320
          %v533 = vld [vmem:[%s532] sm:$0xf]
          %v534 = vld [vmem:[%s532 + $0x4] sm:$0xf]
          %v535 = vld [vmem:[%s532 + $0x8] sm:$0xf]
          %v536 = vld [vmem:[%s532 + $0xc] sm:$0xf]
          %v537 = vld [vmem:[%s532 + $0x10] sm:$0xf]
          %v538 = vld [vmem:[%s532 + $0x14] sm:$0xf]
          %v539 = vld [vmem:[%s532 + $0x18] sm:$0xf]
          %v540 = vld [vmem:[%s532 + $0x1c] sm:$0xf]
          %v541 = vld [vmem:[%s532 + $0x20] sm:$0xf]
          %v542 = vld [vmem:[%s532 + $0x24] sm:$0xf]
          %v543 = vld [vmem:[%s532 + $0x28] sm:$0xf]
          %v544 = vld [vmem:[%s532 + $0x2c] sm:$0xf]
          %v545 = vld [vmem:[%s532 + $0x30] sm:$0xf]
          %v546 = vld [vmem:[%s532 + $0x34] sm:$0xf]
          %v547 = vld [vmem:[%s532 + $0x38] sm:$0xf]
          %v548 = vld [vmem:[%s532 + $0x3c] sm:$0xf]
          %s549 = scalar_lea.vmem %s5, 5
          %v550 = vld [vmem:[%s549] sm:$0x1]
          %v552 = vlaneseq
          %v553 = vshrl.u32 %v552, 7
          %v554 = vsub.s32 0, %v553
          %v555 = vrot.slane %v550, %v554
          %v573 = vunpack.c.l.b16 %v533
          %v574 = vunpack.c.l.b16 %v534
          %v575 = vunpack.c.l.b16 %v535
          %v576 = vunpack.c.l.b16 %v536
          %v577 = vunpack.c.l.b16 %v537
          %v578 = vunpack.c.l.b16 %v538
          %v579 = vunpack.c.l.b16 %v539
          %v580 = vunpack.c.l.b16 %v540
          %v581 = vunpack.c.l.b16 %v541
          %v582 = vunpack.c.l.b16 %v542
          %v583 = vunpack.c.l.b16 %v543
          %v584 = vunpack.c.l.b16 %v544
          %v585 = vunpack.c.l.b16 %v545
          %v586 = vunpack.c.l.b16 %v546
          %v587 = vunpack.c.l.b16 %v547
          %v588 = vunpack.c.l.b16 %v548
          %v589 = vpack.c.b16 %v574, %v573
          %v590 = vpack.c.b16 %v576, %v575
          %v591 = vpack.c.b16 %v578, %v577
          %v592 = vpack.c.b16 %v580, %v579
          %v593 = vpack.c.b16 %v582, %v581
          %v594 = vpack.c.b16 %v584, %v583
          %v595 = vpack.c.b16 %v586, %v585
          %v596 = vpack.c.b16 %v588, %v587
          %605 = vmatprep.subr.bf16.mxu0 0
          %606 = vmatpush1.bf16.msra.mxu0 %v589
          %607 = vmatprep.subr.bf16.mxu0 0
          %608 = vmatpush1.bf16.msra.mxu0 %v590
          %609 = vmatprep.subr.bf16.mxu0 0
          %610 = vmatpush1.bf16.msra.mxu0 %v591
          %611 = vmatprep.subr.bf16.mxu0 0
          %612 = vmatpush1.bf16.msra.mxu0 %v592
          %613 = vmatprep.subr.bf16.mxu0 0
          %614 = vmatpush1.bf16.msra.mxu0 %v593
          %615 = vmatprep.subr.bf16.mxu0 0
          %616 = vmatpush1.bf16.msra.mxu0 %v594
          %617 = vmatprep.subr.bf16.mxu0 0
          %618 = vmatpush1.bf16.msra.mxu0 %v595
          %619 = vmatprep.subr.bf16.mxu0 0
          %620 = vmatpush1.bf16.msra.mxu0 %v596
          %621 = vmatprep.subr.bf16.mxu0 0
          %622 = vmatpush1.bf16.msra.mxu0 0
          %623 = vmatprep.subr.bf16.mxu0 0
          %624 = vmatpush1.bf16.msra.mxu0 0
          %625 = vmatprep.subr.bf16.mxu0 0
          %626 = vmatpush1.bf16.msra.mxu0 0
          %627 = vmatprep.subr.bf16.mxu0 0
          %628 = vmatpush1.bf16.msra.mxu0 0
          %629 = vmatprep.subr.bf16.mxu0 0
          %630 = vmatpush1.bf16.msra.mxu0 0
          %631 = vmatprep.subr.bf16.mxu0 0
          %632 = vmatpush1.bf16.msra.mxu0 0
          %633 = vmatprep.subr.bf16.mxu0 0
          %634 = vmatpush1.bf16.msra.mxu0 0
          %635 = vmatprep.subr.bf16.mxu0 0
          %636 = vmatpush1.bf16.msra.mxu0 0
          %637 = vmatprep.mubr.bf16.mxu0 0
          %638 = vmatmul.mubr.bf16.gmra.mrb[0].mxu0 %v530
          %v639 = vpop.f32.mrb[0].mxu0
          %v640 = vadd.f32 %v555, %v639
          %v641 = vpop.f32.mrb[0].mxu0
          %v642 = vpop.f32.mrb[0].mxu0
          %v643 = vadd.f32 %v555, %v642
          %v644 = vpop.f32.mrb[0].mxu0
          %645 = vmatprep.mubr.bf16.mxu0 0
          %646 = vmatmul.mubr.bf16.gmra.mrb[0].mxu0 %v531
          %v647 = vpop.f32.mrb[0].mxu0
          %v648 = vadd.f32 %v555, %v647
          %v649 = vpop.f32.mrb[0].mxu0
          %v650 = vpop.f32.mrb[0].mxu0
          %v651 = vadd.f32 %v555, %v650
          %v652 = vpop.f32.mrb[0].mxu0
          %653 = vdwg.mxu0
          %v654 = vpack.c.bf16 %v643, %v640
          %v655 = vpack.c.bf16 %v651, %v648
          %656 = vst [vmem:[#allocation3] sm:$0xff] %v654
          %657 = vst [vmem:[#allocation3 + $0x8] sm:$0xff] %v655
          %s658 = scalar_lea.vmem [#allocation6], 384
          %v659 = vld [vmem:[%s658] sm:$0xf]
          %v660 = vld [vmem:[%s658 + $0x4] sm:$0xf]
          %v661 = vld [vmem:[%s658 + $0x8] sm:$0xf]
          %v662 = vld [vmem:[%s658 + $0xc] sm:$0xf]
          %v663 = vld [vmem:[%s658 + $0x10] sm:$0xf]
          %v664 = vld [vmem:[%s658 + $0x14] sm:$0xf]
          %v665 = vld [vmem:[%s658 + $0x18] sm:$0xf]
          %v666 = vld [vmem:[%s658 + $0x1c] sm:$0xf]
          %v667 = vld [vmem:[%s658 + $0x20] sm:$0xf]
          %v668 = vld [vmem:[%s658 + $0x24] sm:$0xf]
          %v669 = vld [vmem:[%s658 + $0x28] sm:$0xf]
          %v670 = vld [vmem:[%s658 + $0x2c] sm:$0xf]
          %v671 = vld [vmem:[%s658 + $0x30] sm:$0xf]
          %v672 = vld [vmem:[%s658 + $0x34] sm:$0xf]
          %v673 = vld [vmem:[%s658 + $0x38] sm:$0xf]
          %v674 = vld [vmem:[%s658 + $0x3c] sm:$0xf]
          %s675 = scalar_lea.vmem %s5, 6
          %v676 = vld [vmem:[%s675] sm:$0x1]
          %v678 = vlaneseq
          %v679 = vshrl.u32 %v678, 7
          %v680 = vsub.s32 0, %v679
          %v681 = vrot.slane %v676, %v680
          %v687 = vunpack.c.l.b16 %v510
          %v688 = vunpack.c.l.b16 %v511
          %v689 = vunpack.c.l.b16 %v512
          %v690 = vunpack.c.l.b16 %v513
          %v691 = vpack.c.b16 %v688, %v687
          %v692 = vpack.c.b16 %v690, %v689
          %v711 = vunpack.c.l.b16 %v659
          %v712 = vunpack.c.l.b16 %v660
          %v713 = vunpack.c.l.b16 %v661
          %v714 = vunpack.c.l.b16 %v662
          %v715 = vunpack.c.l.b16 %v663
          %v716 = vunpack.c.l.b16 %v664
          %v717 = vunpack.c.l.b16 %v665
          %v718 = vunpack.c.l.b16 %v666
          %v719 = vunpack.c.l.b16 %v667
          %v720 = vunpack.c.l.b16 %v668
          %v721 = vunpack.c.l.b16 %v669
          %v722 = vunpack.c.l.b16 %v670
          %v723 = vunpack.c.l.b16 %v671
          %v724 = vunpack.c.l.b16 %v672
          %v725 = vunpack.c.l.b16 %v673
          %v726 = vunpack.c.l.b16 %v674
          %v727 = vpack.c.b16 %v712, %v711
          %v728 = vpack.c.b16 %v714, %v713
          %v729 = vpack.c.b16 %v716, %v715
          %v730 = vpack.c.b16 %v718, %v717
          %v731 = vpack.c.b16 %v720, %v719
          %v732 = vpack.c.b16 %v722, %v721
          %v733 = vpack.c.b16 %v724, %v723
          %v734 = vpack.c.b16 %v726, %v725
          %743 = vmatprep.subr.bf16.mxu0 0
          %744 = vmatpush1.bf16.msra.mxu0 %v727
          %745 = vmatprep.subr.bf16.mxu0 0
          %746 = vmatpush1.bf16.msra.mxu0 %v728
          %747 = vmatprep.subr.bf16.mxu0 0
          %748 = vmatpush1.bf16.msra.mxu0 %v729
          %749 = vmatprep.subr.bf16.mxu0 0
          %750 = vmatpush1.bf16.msra.mxu0 %v730
          %751 = vmatprep.subr.bf16.mxu0 0
          %752 = vmatpush1.bf16.msra.mxu0 %v731
          %753 = vmatprep.subr.bf16.mxu0 0
          %754 = vmatpush1.bf16.msra.mxu0 %v732
          %755 = vmatprep.subr.bf16.mxu0 0
          %756 = vmatpush1.bf16.msra.mxu0 %v733
          %757 = vmatprep.subr.bf16.mxu0 0
          %758 = vmatpush1.bf16.msra.mxu0 %v734
          %759 = vmatprep.subr.bf16.mxu0 0
          %760 = vmatpush1.bf16.msra.mxu0 0
          %761 = vmatprep.subr.bf16.mxu0 0
          %762 = vmatpush1.bf16.msra.mxu0 0
          %763 = vmatprep.subr.bf16.mxu0 0
          %764 = vmatpush1.bf16.msra.mxu0 0
          %765 = vmatprep.subr.bf16.mxu0 0
          %766 = vmatpush1.bf16.msra.mxu0 0
          %767 = vmatprep.subr.bf16.mxu0 0
          %768 = vmatpush1.bf16.msra.mxu0 0
          %769 = vmatprep.subr.bf16.mxu0 0
          %770 = vmatpush1.bf16.msra.mxu0 0
          %771 = vmatprep.subr.bf16.mxu0 0
          %772 = vmatpush1.bf16.msra.mxu0 0
          %773 = vmatprep.subr.bf16.mxu0 0
          %774 = vmatpush1.bf16.msra.mxu0 0
          %775 = vmatprep.mubr.bf16.mxu0 0
          %776 = vmatmul.mubr.bf16.gmra.mrb[0].mxu0 %v691
          %v777 = vpop.f32.mrb[0].mxu0
          %v778 = vadd.f32 %v681, %v777
          %v779 = vpop.f32.mrb[0].mxu0
          %v780 = vpop.f32.mrb[0].mxu0
          %v781 = vadd.f32 %v681, %v780
          %v782 = vpop.f32.mrb[0].mxu0
          %783 = vmatprep.mubr.bf16.mxu0 0
          %784 = vmatmul.mubr.bf16.gmra.mrb[0].mxu0 %v692
          %v785 = vpop.f32.mrb[0].mxu0
          %v786 = vadd.f32 %v681, %v785
          %v787 = vpop.f32.mrb[0].mxu0
          %v788 = vpop.f32.mrb[0].mxu0
          %v789 = vadd.f32 %v681, %v788
          %v790 = vpop.f32.mrb[0].mxu0
          %791 = vdwg.mxu0
          %v792 = vpack.c.bf16 %v781, %v778
          %v793 = vpack.c.bf16 %v789, %v786
          %794 = vst [vmem:[#allocation4] sm:$0xff] %v792
          %795 = vst [vmem:[#allocation4 + $0x8] sm:$0xff] %v793
        $region76: #{transformer_decoder.1} parent=67 // pred_fallthru
          _
        %v796 = vld [vmem:[#allocation2] sm:$0xff]
        %v797 = vld [vmem:[#allocation2 + $0x8] sm:$0xff]
        %v798 = vld [vmem:[%s495] sm:$0xff]
        %v799 = vld [vmem:[%s495 + $0x8] sm:$0xff]
        %v800 = vadd.f32 %v796, %v798
        %v801 = vadd.f32 %v797, %v799
        %v802 = vpack.c.bf16 %v801, %v800
        %v803 = vpack.c.bf16 %v797, %v796
        %v804 = vld [vmem:[#allocation6] sm:$0xf]
        %v805 = vld [vmem:[#allocation6 + $0x4] sm:$0xf]
        %v806 = vld [vmem:[#allocation6 + $0x8] sm:$0xf]
        %v807 = vld [vmem:[#allocation6 + $0xc] sm:$0xf]
        %v808 = vld [vmem:[#allocation6 + $0x10] sm:$0xf]
        %v809 = vld [vmem:[#allocation6 + $0x14] sm:$0xf]
        %v810 = vld [vmem:[#allocation6 + $0x18] sm:$0xf]
        %v811 = vld [vmem:[#allocation6 + $0x1c] sm:$0xf]
        %v812 = vld [vmem:[#allocation6 + $0x20] sm:$0xf]
        %v813 = vld [vmem:[#allocation6 + $0x24] sm:$0xf]
        %v814 = vld [vmem:[#allocation6 + $0x28] sm:$0xf]
        %v815 = vld [vmem:[#allocation6 + $0x2c] sm:$0xf]
        %v816 = vld [vmem:[#allocation6 + $0x30] sm:$0xf]
        %v817 = vld [vmem:[#allocation6 + $0x34] sm:$0xf]
        %v818 = vld [vmem:[#allocation6 + $0x38] sm:$0xf]
        %v819 = vld [vmem:[#allocation6 + $0x3c] sm:$0xf]
        %v820 = vld [vmem:[%s5] sm:$0x1]
        %v822 = vlaneseq
        %v823 = vshrl.u32 %v822, 7
        %v824 = vsub.s32 0, %v823
        %v825 = vrot.slane %v820, %v824
        %v843 = vunpack.c.l.b16 %v804
        %v844 = vunpack.c.l.b16 %v805
        %v845 = vunpack.c.l.b16 %v806
        %v846 = vunpack.c.l.b16 %v807
        %v847 = vunpack.c.l.b16 %v808
        %v848 = vunpack.c.l.b16 %v809
        %v849 = vunpack.c.l.b16 %v810
        %v850 = vunpack.c.l.b16 %v811
        %v851 = vunpack.c.l.b16 %v812
        %v852 = vunpack.c.l.b16 %v813
        %v853 = vunpack.c.l.b16 %v814
        %v854 = vunpack.c.l.b16 %v815
        %v855 = vunpack.c.l.b16 %v816
        %v856 = vunpack.c.l.b16 %v817
        %v857 = vunpack.c.l.b16 %v818
        %v858 = vunpack.c.l.b16 %v819
        %v859 = vpack.c.b16 %v844, %v843
        %v860 = vpack.c.b16 %v846, %v845
        %v861 = vpack.c.b16 %v848, %v847
        %v862 = vpack.c.b16 %v850, %v849
        %v863 = vpack.c.b16 %v852, %v851
        %v864 = vpack.c.b16 %v854, %v853
        %v865 = vpack.c.b16 %v856, %v855
        %v866 = vpack.c.b16 %v858, %v857
        %875 = vmatprep.subr.bf16.mxu0 0
        %876 = vmatpush1.bf16.msra.mxu0 %v859
        %877 = vmatprep.subr.bf16.mxu0 0
        %878 = vmatpush1.bf16.msra.mxu0 %v860
        %879 = vmatprep.subr.bf16.mxu0 0
        %880 = vmatpush1.bf16.msra.mxu0 %v861
        %881 = vmatprep.subr.bf16.mxu0 0
        %882 = vmatpush1.bf16.msra.mxu0 %v862
        %883 = vmatprep.subr.bf16.mxu0 0
        %884 = vmatpush1.bf16.msra.mxu0 %v863
        %885 = vmatprep.subr.bf16.mxu0 0
        %886 = vmatpush1.bf16.msra.mxu0 %v864
        %887 = vmatprep.subr.bf16.mxu0 0
        %888 = vmatpush1.bf16.msra.mxu0 %v865
        %889 = vmatprep.subr.bf16.mxu0 0
        %890 = vmatpush1.bf16.msra.mxu0 %v866
        %891 = vmatprep.subr.bf16.mxu0 0
        %892 = vmatpush1.bf16.msra.mxu0 0
        %893 = vmatprep.subr.bf16.mxu0 0
        %894 = vmatpush1.bf16.msra.mxu0 0
        %895 = vmatprep.subr.bf16.mxu0 0
        %896 = vmatpush1.bf16.msra.mxu0 0
        %897 = vmatprep.subr.bf16.mxu0 0
        %898 = vmatpush1.bf16.msra.mxu0 0
        %899 = vmatprep.subr.bf16.mxu0 0
        %900 = vmatpush1.bf16.msra.mxu0 0
        %901 = vmatprep.subr.bf16.mxu0 0
        %902 = vmatpush1.bf16.msra.mxu0 0
        %903 = vmatprep.subr.bf16.mxu0 0
        %904 = vmatpush1.bf16.msra.mxu0 0
        %905 = vmatprep.subr.bf16.mxu0 0
        %906 = vmatpush1.bf16.msra.mxu0 0
        %907 = vmatprep.mubr.bf16.mxu0 0
        %908 = vmatmul.mubr.bf16.gmra.mrb[0].mxu0 %v802
        %v909 = vpop.f32.mrb[0].mxu0
        %v910 = vadd.f32 %v825, %v909
        %v911 = vpop.f32.mrb[0].mxu0
        %v912 = vpop.f32.mrb[0].mxu0
        %v913 = vadd.f32 %v825, %v912
        %v914 = vpop.f32.mrb[0].mxu0
        %915 = vdwg.mxu0
        %s916 = scalar_lea.vmem [#allocation6], 64
        %v917 = vld [vmem:[%s916] sm:$0xf]
        %v918 = vld [vmem:[%s916 + $0x4] sm:$0xf]
        %v919 = vld [vmem:[%s916 + $0x8] sm:$0xf]
        %v920 = vld [vmem:[%s916 + $0xc] sm:$0xf]
        %v921 = vld [vmem:[%s916 + $0x10] sm:$0xf]
        %v922 = vld [vmem:[%s916 + $0x14] sm:$0xf]
        %v923 = vld [vmem:[%s916 + $0x18] sm:$0xf]
        %v924 = vld [vmem:[%s916 + $0x1c] sm:$0xf]
        %v925 = vld [vmem:[%s916 + $0x20] sm:$0xf]
        %v926 = vld [vmem:[%s916 + $0x24] sm:$0xf]
        %v927 = vld [vmem:[%s916 + $0x28] sm:$0xf]
        %v928 = vld [vmem:[%s916 + $0x2c] sm:$0xf]
        %v929 = vld [vmem:[%s916 + $0x30] sm:$0xf]
        %v930 = vld [vmem:[%s916 + $0x34] sm:$0xf]
        %v931 = vld [vmem:[%s916 + $0x38] sm:$0xf]
        %v932 = vld [vmem:[%s916 + $0x3c] sm:$0xf]
        %s933 = scalar_lea.vmem %s5, 1
        %v934 = vld [vmem:[%s933] sm:$0x1]
        %v936 = vlaneseq
        %v937 = vshrl.u32 %v936, 7
        %v938 = vsub.s32 0, %v937
        %v939 = vrot.slane %v934, %v938
        %v957 = vunpack.c.l.b16 %v917
        %v958 = vunpack.c.l.b16 %v918
        %v959 = vunpack.c.l.b16 %v919
        %v960 = vunpack.c.l.b16 %v920
        %v961 = vunpack.c.l.b16 %v921
        %v962 = vunpack.c.l.b16 %v922
        %v963 = vunpack.c.l.b16 %v923
        %v964 = vunpack.c.l.b16 %v924
        %v965 = vunpack.c.l.b16 %v925
        %v966 = vunpack.c.l.b16 %v926
        %v967 = vunpack.c.l.b16 %v927
        %v968 = vunpack.c.l.b16 %v928
        %v969 = vunpack.c.l.b16 %v929
        %v970 = vunpack.c.l.b16 %v930
        %v971 = vunpack.c.l.b16 %v931
        %v972 = vunpack.c.l.b16 %v932
        %v973 = vpack.c.b16 %v958, %v957
        %v974 = vpack.c.b16 %v960, %v959
        %v975 = vpack.c.b16 %v962, %v961
        %v976 = vpack.c.b16 %v964, %v963
        %v977 = vpack.c.b16 %v966, %v965
        %v978 = vpack.c.b16 %v968, %v967
        %v979 = vpack.c.b16 %v970, %v969
        %v980 = vpack.c.b16 %v972, %v971
        %989 = vmatprep.subr.bf16.mxu0 0
        %990 = vmatpush1.bf16.msra.mxu0 %v973
        %991 = vmatprep.subr.bf16.mxu0 0
        %992 = vmatpush1.bf16.msra.mxu0 %v974
        %993 = vmatprep.subr.bf16.mxu0 0
        %994 = vmatpush1.bf16.msra.mxu0 %v975
        %995 = vmatprep.subr.bf16.mxu0 0
        %996 = vmatpush1.bf16.msra.mxu0 %v976
        %997 = vmatprep.subr.bf16.mxu0 0
        %998 = vmatpush1.bf16.msra.mxu0 %v977
        %999 = vmatprep.subr.bf16.mxu0 0
        %1000 = vmatpush1.bf16.msra.mxu0 %v978
        %1001 = vmatprep.subr.bf16.mxu0 0
        %1002 = vmatpush1.bf16.msra.mxu0 %v979
        %1003 = vmatprep.subr.bf16.mxu0 0
        %1004 = vmatpush1.bf16.msra.mxu0 %v980
        %1005 = vmatprep.subr.bf16.mxu0 0
        %1006 = vmatpush1.bf16.msra.mxu0 0
        %1007 = vmatprep.subr.bf16.mxu0 0
        %1008 = vmatpush1.bf16.msra.mxu0 0
        %1009 = vmatprep.subr.bf16.mxu0 0
        %1010 = vmatpush1.bf16.msra.mxu0 0
        %1011 = vmatprep.subr.bf16.mxu0 0
        %1012 = vmatpush1.bf16.msra.mxu0 0
        %1013 = vmatprep.subr.bf16.mxu0 0
        %1014 = vmatpush1.bf16.msra.mxu0 0
        %1015 = vmatprep.subr.bf16.mxu0 0
        %1016 = vmatpush1.bf16.msra.mxu0 0
        %1017 = vmatprep.subr.bf16.mxu0 0
        %1018 = vmatpush1.bf16.msra.mxu0 0
        %1019 = vmatprep.subr.bf16.mxu0 0
        %1020 = vmatpush1.bf16.msra.mxu0 0
        %1021 = vmatprep.mubr.bf16.mxu0 0
        %1022 = vmatmul.mubr.bf16.gmra.mrb[0].mxu0 %v802
        %v1023 = vpop.f32.mrb[0].mxu0
        %v1024 = vadd.f32 %v939, %v1023
        %v1025 = vpop.f32.mrb[0].mxu0
        %v1026 = vpop.f32.mrb[0].mxu0
        %v1027 = vadd.f32 %v939, %v1026
        %v1028 = vpop.f32.mrb[0].mxu0
        %1029 = vdwg.mxu0
        %v1030 = vpack.c.bf16 %v1027, %v1024
        %s1031 = scalar_lea.vmem [#allocation6], 128
        %v1032 = vld [vmem:[%s1031] sm:$0xf]
        %v1033 = vld [vmem:[%s1031 + $0x4] sm:$0xf]
        %v1034 = vld [vmem:[%s1031 + $0x8] sm:$0xf]
        %v1035 = vld [vmem:[%s1031 + $0xc] sm:$0xf]
        %v1036 = vld [vmem:[%s1031 + $0x10] sm:$0xf]
        %v1037 = vld [vmem:[%s1031 + $0x14] sm:$0xf]
        %v1038 = vld [vmem:[%s1031 + $0x18] sm:$0xf]
        %v1039 = vld [vmem:[%s1031 + $0x1c] sm:$0xf]
        %v1040 = vld [vmem:[%s1031 + $0x20] sm:$0xf]
        %v1041 = vld [vmem:[%s1031 + $0x24] sm:$0xf]
        %v1042 = vld [vmem:[%s1031 + $0x28] sm:$0xf]
        %v1043 = vld [vmem:[%s1031 + $0x2c] sm:$0xf]
        %v1044 = vld [vmem:[%s1031 + $0x30] sm:$0xf]
        %v1045 = vld [vmem:[%s1031 + $0x34] sm:$0xf]
        %v1046 = vld [vmem:[%s1031 + $0x38] sm:$0xf]
        %v1047 = vld [vmem:[%s1031 + $0x3c] sm:$0xf]
        %s1048 = scalar_lea.vmem %s5, 2
        %v1049 = vld [vmem:[%s1048] sm:$0x1]
        %v1051 = vlaneseq
        %v1052 = vshrl.u32 %v1051, 7
        %v1053 = vsub.s32 0, %v1052
        %v1054 = vrot.slane %v1049, %v1053
        %v1072 = vunpack.c.l.b16 %v1032
        %v1073 = vunpack.c.l.b16 %v1033
        %v1074 = vunpack.c.l.b16 %v1034
        %v1075 = vunpack.c.l.b16 %v1035
        %v1076 = vunpack.c.l.b16 %v1036
        %v1077 = vunpack.c.l.b16 %v1037
        %v1078 = vunpack.c.l.b16 %v1038
        %v1079 = vunpack.c.l.b16 %v1039
        %v1080 = vunpack.c.l.b16 %v1040
        %v1081 = vunpack.c.l.b16 %v1041
        %v1082 = vunpack.c.l.b16 %v1042
        %v1083 = vunpack.c.l.b16 %v1043
        %v1084 = vunpack.c.l.b16 %v1044
        %v1085 = vunpack.c.l.b16 %v1045
        %v1086 = vunpack.c.l.b16 %v1046
        %v1087 = vunpack.c.l.b16 %v1047
        %v1088 = vpack.c.b16 %v1073, %v1072
        %v1089 = vpack.c.b16 %v1075, %v1074
        %v1090 = vpack.c.b16 %v1077, %v1076
        %v1091 = vpack.c.b16 %v1079, %v1078
        %v1092 = vpack.c.b16 %v1081, %v1080
        %v1093 = vpack.c.b16 %v1083, %v1082
        %v1094 = vpack.c.b16 %v1085, %v1084
        %v1095 = vpack.c.b16 %v1087, %v1086
        %1104 = vmatprep.subr.bf16.mxu0 0
        %1105 = vmatpush1.bf16.msra.mxu0 %v1088
        %1106 = vmatprep.subr.bf16.mxu0 0
        %1107 = vmatpush1.bf16.msra.mxu0 %v1089
        %1108 = vmatprep.subr.bf16.mxu0 0
        %1109 = vmatpush1.bf16.msra.mxu0 %v1090
        %1110 = vmatprep.subr.bf16.mxu0 0
        %1111 = vmatpush1.bf16.msra.mxu0 %v1091
        %1112 = vmatprep.subr.bf16.mxu0 0
        %1113 = vmatpush1.bf16.msra.mxu0 %v1092
        %1114 = vmatprep.subr.bf16.mxu0 0
        %1115 = vmatpush1.bf16.msra.mxu0 %v1093
        %1116 = vmatprep.subr.bf16.mxu0 0
        %1117 = vmatpush1.bf16.msra.mxu0 %v1094
        %1118 = vmatprep.subr.bf16.mxu0 0
        %1119 = vmatpush1.bf16.msra.mxu0 %v1095
        %1120 = vmatprep.subr.bf16.mxu0 0
        %1121 = vmatpush1.bf16.msra.mxu0 0
        %1122 = vmatprep.subr.bf16.mxu0 0
        %1123 = vmatpush1.bf16.msra.mxu0 0
        %1124 = vmatprep.subr.bf16.mxu0 0
        %1125 = vmatpush1.bf16.msra.mxu0 0
        %1126 = vmatprep.subr.bf16.mxu0 0
        %1127 = vmatpush1.bf16.msra.mxu0 0
        %1128 = vmatprep.subr.bf16.mxu0 0
        %1129 = vmatpush1.bf16.msra.mxu0 0
        %1130 = vmatprep.subr.bf16.mxu0 0
        %1131 = vmatpush1.bf16.msra.mxu0 0
        %1132 = vmatprep.subr.bf16.mxu0 0
        %1133 = vmatpush1.bf16.msra.mxu0 0
        %1134 = vmatprep.subr.bf16.mxu0 0
        %1135 = vmatpush1.bf16.msra.mxu0 0
        %1136 = vmatprep.mubr.bf16.mxu0 0
        %1137 = vmatmul.mubr.bf16.gmra.mrb[0].mxu0 %v803
        %v1138 = vpop.f32.mrb[0].mxu0
        %v1139 = vadd.f32 %v1054, %v1138
        %v1140 = vpop.f32.mrb[0].mxu0
        %v1141 = vpop.f32.mrb[0].mxu0
        %v1142 = vadd.f32 %v1054, %v1141
        %v1143 = vpop.f32.mrb[0].mxu0
        %1144 = vdwg.mxu0
        %v1145 = vpack.c.bf16 %v1142, %v1139
        %v1146 = vpack.c.bf16 %v913, %v910
        %vm1147 = vcmask 261120
        %v1149 = vsel %vm1147, %v1146, 0
        %v1152 = vsel %vm1147, %v1030, 0
        %1154 = vmatprep.subr.bf16.mxu0 0
        %1155 = vmatpush1.bf16.xpose.msra.mxu0 %v1152
        %1156 = vmatprep.subr.bf16.mxu0 0
        %1157 = vmatpush1.bf16.xpose.msra.mxu0 0
        %1158 = vmatprep.subr.bf16.mxu0 0
        %1159 = vmatpush1.bf16.xpose.msra.mxu0 0
        %1160 = vmatprep.subr.bf16.mxu0 0
        %1161 = vmatpush1.bf16.xpose.msra.mxu0 0
        %1162 = vmatprep.subr.bf16.mxu0 0
        %1163 = vmatpush1.bf16.xpose.msra.mxu0 0
        %1164 = vmatprep.subr.bf16.mxu0 0
        %1165 = vmatpush1.bf16.xpose.msra.mxu0 0
        %1166 = vmatprep.subr.bf16.mxu0 0
        %1167 = vmatpush1.bf16.xpose.msra.mxu0 0
        %1168 = vmatprep.subr.bf16.mxu0 0
        %1169 = vmatpush1.bf16.xpose.msra.mxu0 0
        %1170 = vmatprep.subr.bf16.mxu0 0
        %1171 = vmatpush1.bf16.xpose.msra.mxu0 0
        %1172 = vmatprep.subr.bf16.mxu0 0
        %1173 = vmatpush1.bf16.xpose.msra.mxu0 0
        %1174 = vmatprep.subr.bf16.mxu0 0
        %1175 = vmatpush1.bf16.xpose.msra.mxu0 0
        %1176 = vmatprep.subr.bf16.mxu0 0
        %1177 = vmatpush1.bf16.xpose.msra.mxu0 0
        %1178 = vmatprep.subr.bf16.mxu0 0
        %1179 = vmatpush1.bf16.xpose.msra.mxu0 0
        %1180 = vmatprep.subr.bf16.mxu0 0
        %1181 = vmatpush1.bf16.xpose.msra.mxu0 0
        %1182 = vmatprep.subr.bf16.mxu0 0
        %1183 = vmatpush1.bf16.xpose.msra.mxu0 0
        %1184 = vmatprep.subr.bf16.mxu0 0
        %1185 = vmatpush1.bf16.xpose.msra.mxu0 0
        %1186 = vmatprep.mubr.bf16.mxu0 0
        %1187 = vmatmul.mubr.bf16.gmra.mrb[0].mxu0 %v1149
        %v1188 = vpop.f32.mrb[0].mxu0
        %v1189 = vadd.f32 0.0, %v1188
        %v1190 = vpop.f32.mrb[0].mxu0
        %v1191 = vpop.f32.mrb[0].mxu0
        %v1192 = vadd.f32 0.0, %v1191
        %v1193 = vpop.f32.mrb[0].mxu0
        %1194 = vdwg.mxu0
        %vm1195 = vcmask 130048
        %v1196 = vsel %vm1195, %v1189, -inf
        %1197 = vmax.xlane.f32.xlu0 %v1196
        %v1198 = vpop.xlane.xlu0 %1197
        %v1199 = vsel %vm1195, %v1192, -inf
        %1200 = vmax.xlane.f32.xlu0 %v1199
        %v1201 = vpop.xlane.xlu0 %1200
        %v1202 = vsub.f32 %v1189, %v1198
        %v1203 = vsub.f32 %v1192, %v1201
        %v1204 = vmul.f32 %v1202, 1.442695
        %v1205 = vpow.pop %v1204
        %v1206 = vmul.f32 %v1203, 1.442695
        %v1207 = vpow.pop %v1206
        %v1208 = vsel %vm1195, %v1205, 0.0
        %1209 = vadd.xlane.f32.xlu0 %v1208
        %v1210 = vpop.xlane.xlu0 %1209
        %v1211 = vsel %vm1195, %v1207, 0.0
        %1212 = vadd.xlane.f32.xlu0 %v1211
        %v1213 = vpop.xlane.xlu0 %1212
        %v1214 = vrcp.pop %v1210
        %v1215 = vrcp.pop %v1213
        %v1216 = vmul.f32 %v1205, %v1214
        %v1217 = vmul.f32 %v1207, %v1215
        %v1218 = vpack.c.bf16 %v1217, %v1216
        %v1220 = vsel %vm1195, %v1218, 0
        %1222 = vmatprep.subr.bf16.mxu0 0
        %1223 = vmatpush1.bf16.msra.mxu0 %v1145
        %1224 = vmatprep.subr.bf16.mxu0 0
        %1225 = vmatpush1.bf16.msra.mxu0 0
        %1226 = vmatprep.subr.bf16.mxu0 0
        %1227 = vmatpush1.bf16.msra.mxu0 0
        %1228 = vmatprep.subr.bf16.mxu0 0
        %1229 = vmatpush1.bf16.msra.mxu0 0
        %1230 = vmatprep.subr.bf16.mxu0 0
        %1231 = vmatpush1.bf16.msra.mxu0 0
        %1232 = vmatprep.subr.bf16.mxu0 0
        %1233 = vmatpush1.bf16.msra.mxu0 0
        %1234 = vmatprep.subr.bf16.mxu0 0
        %1235 = vmatpush1.bf16.msra.mxu0 0
        %1236 = vmatprep.subr.bf16.mxu0 0
        %1237 = vmatpush1.bf16.msra.mxu0 0
        %1238 = vmatprep.subr.bf16.mxu0 0
        %1239 = vmatpush1.bf16.msra.mxu0 0
        %1240 = vmatprep.subr.bf16.mxu0 0
        %1241 = vmatpush1.bf16.msra.mxu0 0
        %1242 = vmatprep.subr.bf16.mxu0 0
        %1243 = vmatpush1.bf16.msra.mxu0 0
        %1244 = vmatprep.subr.bf16.mxu0 0
        %1245 = vmatpush1.bf16.msra.mxu0 0
        %1246 = vmatprep.subr.bf16.mxu0 0
        %1247 = vmatpush1.bf16.msra.mxu0 0
        %1248 = vmatprep.subr.bf16.mxu0 0
        %1249 = vmatpush1.bf16.msra.mxu0 0
        %1250 = vmatprep.subr.bf16.mxu0 0
        %1251 = vmatpush1.bf16.msra.mxu0 0
        %1252 = vmatprep.subr.bf16.mxu0 0
        %1253 = vmatpush1.bf16.msra.mxu0 0
        %1254 = vmatprep.mubr.bf16.mxu0 0
        %1255 = vmatmul.mubr.bf16.gmra.mrb[0].mxu0 %v1220
        %v1256 = vpop.f32.mrb[0].mxu0
        %v1257 = vadd.f32 0.0, %v1256
        %v1258 = vpop.f32.mrb[0].mxu0
        %v1259 = vpop.f32.mrb[0].mxu0
        %v1260 = vadd.f32 0.0, %v1259
        %v1261 = vpop.f32.mrb[0].mxu0
        %1262 = vdwg.mxu0
        %1263 = vst.msk [vmem:[#allocation5] sm:$0xff] %vm1147, %v1257
        %1264 = vst.msk [vmem:[#allocation5 + $0x8] sm:$0xff] %vm1147, %v1260
        %1266 = vrot.lane.b32.xlu0 %v1146, 96
        %v1267 = vpop.permute.xlu0 %1266
        %1269 = vrot.lane.b32.xlu0 %v1030, 96
        %v1270 = vpop.permute.xlu0 %1269
        %v1272 = vsel %vm1147, %v1267, 0
        %v1275 = vsel %vm1147, %v1270, 0
        %1277 = vmatprep.subr.bf16.mxu0 0
        %1278 = vmatpush1.bf16.xpose.msra.mxu0 %v1275
        %1279 = vmatprep.subr.bf16.mxu0 0
        %1280 = vmatpush1.bf16.xpose.msra.mxu0 0
        %1281 = vmatprep.subr.bf16.mxu0 0
        %1282 = vmatpush1.bf16.xpose.msra.mxu0 0
        %1283 = vmatprep.subr.bf16.mxu0 0
        %1284 = vmatpush1.bf16.xpose.msra.mxu0 0
        %1285 = vmatprep.subr.bf16.mxu0 0
        %1286 = vmatpush1.bf16.xpose.msra.mxu0 0
        %1287 = vmatprep.subr.bf16.mxu0 0
        %1288 = vmatpush1.bf16.xpose.msra.mxu0 0
        %1289 = vmatprep.subr.bf16.mxu0 0
        %1290 = vmatpush1.bf16.xpose.msra.mxu0 0
        %1291 = vmatprep.subr.bf16.mxu0 0
        %1292 = vmatpush1.bf16.xpose.msra.mxu0 0
        %1293 = vmatprep.subr.bf16.mxu0 0
        %1294 = vmatpush1.bf16.xpose.msra.mxu0 0
        %1295 = vmatprep.subr.bf16.mxu0 0
        %1296 = vmatpush1.bf16.xpose.msra.mxu0 0
        %1297 = vmatprep.subr.bf16.mxu0 0
        %1298 = vmatpush1.bf16.xpose.msra.mxu0 0
        %1299 = vmatprep.subr.bf16.mxu0 0
        %1300 = vmatpush1.bf16.xpose.msra.mxu0 0
        %1301 = vmatprep.subr.bf16.mxu0 0
        %1302 = vmatpush1.bf16.xpose.msra.mxu0 0
        %1303 = vmatprep.subr.bf16.mxu0 0
        %1304 = vmatpush1.bf16.xpose.msra.mxu0 0
        %1305 = vmatprep.subr.bf16.mxu0 0
        %1306 = vmatpush1.bf16.xpose.msra.mxu0 0
        %1307 = vmatprep.subr.bf16.mxu0 0
        %1308 = vmatpush1.bf16.xpose.msra.mxu0 0
        %1309 = vmatprep.mubr.bf16.mxu0 0
        %1310 = vmatmul.mubr.bf16.gmra.mrb[0].mxu0 %v1272
        %v1311 = vpop.f32.mrb[0].mxu0
        %v1312 = vadd.f32 0.0, %v1311
        %v1313 = vpop.f32.mrb[0].mxu0
        %v1314 = vpop.f32.mrb[0].mxu0
        %v1315 = vadd.f32 0.0, %v1314
        %v1316 = vpop.f32.mrb[0].mxu0
        %1317 = vdwg.mxu0
        %v1318 = vsel %vm1195, %v1312, -inf
        %1319 = vmax.xlane.f32.xlu0 %v1318
        %v1320 = vpop.xlane.xlu0 %1319
        %v1321 = vsel %vm1195, %v1315, -inf
        %1322 = vmax.xlane.f32.xlu0 %v1321
        %v1323 = vpop.xlane.xlu0 %1322
        %v1324 = vsub.f32 %v1312, %v1320
        %v1325 = vsub.f32 %v1315, %v1323
        %v1326 = vmul.f32 %v1324, 1.442695
        %v1327 = vpow.pop %v1326
        %v1328 = vmul.f32 %v1325, 1.442695
        %v1329 = vpow.pop %v1328
        %v1330 = vsel %vm1195, %v1327, 0.0
        %1331 = vadd.xlane.f32.xlu0 %v1330
        %v1332 = vpop.xlane.xlu0 %1331
        %v1333 = vsel %vm1195, %v1329, 0.0
        %1334 = vadd.xlane.f32.xlu0 %v1333
        %v1335 = vpop.xlane.xlu0 %1334
        %v1336 = vrcp.pop %v1332
        %v1337 = vrcp.pop %v1335
        %v1338 = vmul.f32 %v1327, %v1336
        %v1339 = vmul.f32 %v1329, %v1337
        %v1340 = vpack.c.bf16 %v1339, %v1338
        %1342 = vrot.lane.b32.xlu0 %v1145, 96
        %v1343 = vpop.permute.xlu0 %1342
        %v1346 = vsel %vm1195, %v1340, 0
        %1348 = vmatprep.subr.bf16.mxu0 0
        %1349 = vmatpush1.bf16.msra.mxu0 %v1343
        %1350 = vmatprep.subr.bf16.mxu0 0
        %1351 = vmatpush1.bf16.msra.mxu0 0
        %1352 = vmatprep.subr.bf16.mxu0 0
        %1353 = vmatpush1.bf16.msra.mxu0 0
        %1354 = vmatprep.subr.bf16.mxu0 0
        %1355 = vmatpush1.bf16.msra.mxu0 0
        %1356 = vmatprep.subr.bf16.mxu0 0
        %1357 = vmatpush1.bf16.msra.mxu0 0
        %1358 = vmatprep.subr.bf16.mxu0 0
        %1359 = vmatpush1.bf16.msra.mxu0 0
        %1360 = vmatprep.subr.bf16.mxu0 0
        %1361 = vmatpush1.bf16.msra.mxu0 0
        %1362 = vmatprep.subr.bf16.mxu0 0
        %1363 = vmatpush1.bf16.msra.mxu0 0
        %1364 = vmatprep.subr.bf16.mxu0 0
        %1365 = vmatpush1.bf16.msra.mxu0 0
        %1366 = vmatprep.subr.bf16.mxu0 0
        %1367 = vmatpush1.bf16.msra.mxu0 0
        %1368 = vmatprep.subr.bf16.mxu0 0
        %1369 = vmatpush1.bf16.msra.mxu0 0
        %1370 = vmatprep.subr.bf16.mxu0 0
        %1371 = vmatpush1.bf16.msra.mxu0 0
        %1372 = vmatprep.subr.bf16.mxu0 0
        %1373 = vmatpush1.bf16.msra.mxu0 0
        %1374 = vmatprep.subr.bf16.mxu0 0
        %1375 = vmatpush1.bf16.msra.mxu0 0
        %1376 = vmatprep.subr.bf16.mxu0 0
        %1377 = vmatpush1.bf16.msra.mxu0 0
        %1378 = vmatprep.subr.bf16.mxu0 0
        %1379 = vmatpush1.bf16.msra.mxu0 0
        %1380 = vmatprep.mubr.bf16.mxu0 0
        %1381 = vmatmul.mubr.bf16.gmra.mrb[0].mxu0 %v1346
        %v1382 = vpop.f32.mrb[0].mxu0
        %v1383 = vadd.f32 0.0, %v1382
        %v1384 = vpop.f32.mrb[0].mxu0
        %v1385 = vpop.f32.mrb[0].mxu0
        %v1386 = vadd.f32 0.0, %v1385
        %v1387 = vpop.f32.mrb[0].mxu0
        %1388 = vdwg.mxu0
        %1391 = vrot.lane.b32.xlu0 %v1383, 32
        %v1392 = vpop.permute.xlu0 %1391
        %1393 = vrot.lane.b32.xlu0 %v1386, 32
        %v1394 = vpop.permute.xlu0 %1393
        %vm1397 = vcmask 523520
        %1398 = vst.msk [vmem:[#allocation5] sm:$0xff] %vm1397, %v1392
        %1399 = vst.msk [vmem:[#allocation5 + $0x8] sm:$0xff] %vm1397, %v1394
        %1400 = vrot.lane.b32.xlu0 %v1146, 64
        %v1401 = vpop.permute.xlu0 %1400
        %1402 = vrot.lane.b32.xlu0 %v1030, 64
        %v1403 = vpop.permute.xlu0 %1402
        %v1405 = vsel %vm1147, %v1401, 0
        %v1408 = vsel %vm1147, %v1403, 0
        %1410 = vmatprep.subr.bf16.mxu0 0
        %1411 = vmatpush1.bf16.xpose.msra.mxu0 %v1408
        %1412 = vmatprep.subr.bf16.mxu0 0
        %1413 = vmatpush1.bf16.xpose.msra.mxu0 0
        %1414 = vmatprep.subr.bf16.mxu0 0
        %1415 = vmatpush1.bf16.xpose.msra.mxu0 0
        %1416 = vmatprep.subr.bf16.mxu0 0
        %1417 = vmatpush1.bf16.xpose.msra.mxu0 0
        %1418 = vmatprep.subr.bf16.mxu0 0
        %1419 = vmatpush1.bf16.xpose.msra.mxu0 0
        %1420 = vmatprep.subr.bf16.mxu0 0
        %1421 = vmatpush1.bf16.xpose.msra.mxu0 0
        %1422 = vmatprep.subr.bf16.mxu0 0
        %1423 = vmatpush1.bf16.xpose.msra.mxu0 0
        %1424 = vmatprep.subr.bf16.mxu0 0
        %1425 = vmatpush1.bf16.xpose.msra.mxu0 0
        %1426 = vmatprep.subr.bf16.mxu0 0
        %1427 = vmatpush1.bf16.xpose.msra.mxu0 0
        %1428 = vmatprep.subr.bf16.mxu0 0
        %1429 = vmatpush1.bf16.xpose.msra.mxu0 0
        %1430 = vmatprep.subr.bf16.mxu0 0
        %1431 = vmatpush1.bf16.xpose.msra.mxu0 0
        %1432 = vmatprep.subr.bf16.mxu0 0
        %1433 = vmatpush1.bf16.xpose.msra.mxu0 0
        %1434 = vmatprep.subr.bf16.mxu0 0
        %1435 = vmatpush1.bf16.xpose.msra.mxu0 0
        %1436 = vmatprep.subr.bf16.mxu0 0
        %1437 = vmatpush1.bf16.xpose.msra.mxu0 0
        %1438 = vmatprep.subr.bf16.mxu0 0
        %1439 = vmatpush1.bf16.xpose.msra.mxu0 0
        %1440 = vmatprep.subr.bf16.mxu0 0
        %1441 = vmatpush1.bf16.xpose.msra.mxu0 0
        %1442 = vmatprep.mubr.bf16.mxu0 0
        %1443 = vmatmul.mubr.bf16.gmra.mrb[0].mxu0 %v1405
        %v1444 = vpop.f32.mrb[0].mxu0
        %v1445 = vadd.f32 0.0, %v1444
        %v1446 = vpop.f32.mrb[0].mxu0
        %v1447 = vpop.f32.mrb[0].mxu0
        %v1448 = vadd.f32 0.0, %v1447
        %v1449 = vpop.f32.mrb[0].mxu0
        %1450 = vdwg.mxu0
        %v1451 = vsel %vm1195, %v1445, -inf
        %1452 = vmax.xlane.f32.xlu0 %v1451
        %v1453 = vpop.xlane.xlu0 %1452
        %v1454 = vsel %vm1195, %v1448, -inf
        %1455 = vmax.xlane.f32.xlu0 %v1454
        %v1456 = vpop.xlane.xlu0 %1455
        %v1457 = vsub.f32 %v1445, %v1453
        %v1458 = vsub.f32 %v1448, %v1456
        %v1459 = vmul.f32 %v1457, 1.442695
        %v1460 = vpow.pop %v1459
        %v1461 = vmul.f32 %v1458, 1.442695
        %v1462 = vpow.pop %v1461
        %v1463 = vsel %vm1195, %v1460, 0.0
        %1464 = vadd.xlane.f32.xlu0 %v1463
        %v1465 = vpop.xlane.xlu0 %1464
        %v1466 = vsel %vm1195, %v1462, 0.0
        %1467 = vadd.xlane.f32.xlu0 %v1466
        %v1468 = vpop.xlane.xlu0 %1467
        %v1469 = vrcp.pop %v1465
        %v1470 = vrcp.pop %v1468
        %v1471 = vmul.f32 %v1460, %v1469
        %v1472 = vmul.f32 %v1462, %v1470
        %v1473 = vpack.c.bf16 %v1472, %v1471
        %1474 = vrot.lane.b32.xlu0 %v1145, 64
        %v1475 = vpop.permute.xlu0 %1474
        %v1478 = vsel %vm1195, %v1473, 0
        %1480 = vmatprep.subr.bf16.mxu0 0
        %1481 = vmatpush1.bf16.msra.mxu0 %v1475
        %1482 = vmatprep.subr.bf16.mxu0 0
        %1483 = vmatpush1.bf16.msra.mxu0 0
        %1484 = vmatprep.subr.bf16.mxu0 0
        %1485 = vmatpush1.bf16.msra.mxu0 0
        %1486 = vmatprep.subr.bf16.mxu0 0
        %1487 = vmatpush1.bf16.msra.mxu0 0
        %1488 = vmatprep.subr.bf16.mxu0 0
        %1489 = vmatpush1.bf16.msra.mxu0 0
        %1490 = vmatprep.subr.bf16.mxu0 0
        %1491 = vmatpush1.bf16.msra.mxu0 0
        %1492 = vmatprep.subr.bf16.mxu0 0
        %1493 = vmatpush1.bf16.msra.mxu0 0
        %1494 = vmatprep.subr.bf16.mxu0 0
        %1495 = vmatpush1.bf16.msra.mxu0 0
        %1496 = vmatprep.subr.bf16.mxu0 0
        %1497 = vmatpush1.bf16.msra.mxu0 0
        %1498 = vmatprep.subr.bf16.mxu0 0
        %1499 = vmatpush1.bf16.msra.mxu0 0
        %1500 = vmatprep.subr.bf16.mxu0 0
        %1501 = vmatpush1.bf16.msra.mxu0 0
        %1502 = vmatprep.subr.bf16.mxu0 0
        %1503 = vmatpush1.bf16.msra.mxu0 0
        %1504 = vmatprep.subr.bf16.mxu0 0
        %1505 = vmatpush1.bf16.msra.mxu0 0
        %1506 = vmatprep.subr.bf16.mxu0 0
        %1507 = vmatpush1.bf16.msra.mxu0 0
        %1508 = vmatprep.subr.bf16.mxu0 0
        %1509 = vmatpush1.bf16.msra.mxu0 0
        %1510 = vmatprep.subr.bf16.mxu0 0
        %1511 = vmatpush1.bf16.msra.mxu0 0
        %1512 = vmatprep.mubr.bf16.mxu0 0
        %1513 = vmatmul.mubr.bf16.gmra.mrb[0].mxu0 %v1478
        %v1514 = vpop.f32.mrb[0].mxu0
        %v1515 = vadd.f32 0.0, %v1514
        %v1516 = vpop.f32.mrb[0].mxu0
        %v1517 = vpop.f32.mrb[0].mxu0
        %v1518 = vadd.f32 0.0, %v1517
        %v1519 = vpop.f32.mrb[0].mxu0
        %1520 = vdwg.mxu0
        %1523 = vrot.lane.b32.xlu0 %v1515, 64
        %v1524 = vpop.permute.xlu0 %1523
        %1525 = vrot.lane.b32.xlu0 %v1518, 64
        %v1526 = vpop.permute.xlu0 %1525
        %vm1529 = vcmask 785920
        %1530 = vst.msk [vmem:[#allocation5] sm:$0xff] %vm1529, %v1524
        %1531 = vst.msk [vmem:[#allocation5 + $0x8] sm:$0xff] %vm1529, %v1526
        %1532 = vrot.lane.b32.xlu0 %v1146, 32
        %v1533 = vpop.permute.xlu0 %1532
        %1534 = vrot.lane.b32.xlu0 %v1030, 32
        %v1535 = vpop.permute.xlu0 %1534
        %v1537 = vsel %vm1147, %v1533, 0
        %v1540 = vsel %vm1147, %v1535, 0
        %1542 = vmatprep.subr.bf16.mxu0 0
        %1543 = vmatpush1.bf16.xpose.msra.mxu0 %v1540
        %1544 = vmatprep.subr.bf16.mxu0 0
        %1545 = vmatpush1.bf16.xpose.msra.mxu0 0
        %1546 = vmatprep.subr.bf16.mxu0 0
        %1547 = vmatpush1.bf16.xpose.msra.mxu0 0
        %1548 = vmatprep.subr.bf16.mxu0 0
        %1549 = vmatpush1.bf16.xpose.msra.mxu0 0
        %1550 = vmatprep.subr.bf16.mxu0 0
        %1551 = vmatpush1.bf16.xpose.msra.mxu0 0
        %1552 = vmatprep.subr.bf16.mxu0 0
        %1553 = vmatpush1.bf16.xpose.msra.mxu0 0
        %1554 = vmatprep.subr.bf16.mxu0 0
        %1555 = vmatpush1.bf16.xpose.msra.mxu0 0
        %1556 = vmatprep.subr.bf16.mxu0 0
        %1557 = vmatpush1.bf16.xpose.msra.mxu0 0
        %1558 = vmatprep.subr.bf16.mxu0 0
        %1559 = vmatpush1.bf16.xpose.msra.mxu0 0
        %1560 = vmatprep.subr.bf16.mxu0 0
        %1561 = vmatpush1.bf16.xpose.msra.mxu0 0
        %1562 = vmatprep.subr.bf16.mxu0 0
        %1563 = vmatpush1.bf16.xpose.msra.mxu0 0
        %1564 = vmatprep.subr.bf16.mxu0 0
        %1565 = vmatpush1.bf16.xpose.msra.mxu0 0
        %1566 = vmatprep.subr.bf16.mxu0 0
        %1567 = vmatpush1.bf16.xpose.msra.mxu0 0
        %1568 = vmatprep.subr.bf16.mxu0 0
        %1569 = vmatpush1.bf16.xpose.msra.mxu0 0
        %1570 = vmatprep.subr.bf16.mxu0 0
        %1571 = vmatpush1.bf16.xpose.msra.mxu0 0
        %1572 = vmatprep.subr.bf16.mxu0 0
        %1573 = vmatpush1.bf16.xpose.msra.mxu0 0
        %1574 = vmatprep.mubr.bf16.mxu0 0
        %1575 = vmatmul.mubr.bf16.gmra.mrb[0].mxu0 %v1537
        %v1576 = vpop.f32.mrb[0].mxu0
        %v1577 = vadd.f32 0.0, %v1576
        %v1578 = vpop.f32.mrb[0].mxu0
        %v1579 = vpop.f32.mrb[0].mxu0
        %v1580 = vadd.f32 0.0, %v1579
        %v1581 = vpop.f32.mrb[0].mxu0
        %1582 = vdwg.mxu0
        %v1583 = vsel %vm1195, %v1577, -inf
        %1584 = vmax.xlane.f32.xlu0 %v1583
        %v1585 = vpop.xlane.xlu0 %1584
        %v1586 = vsel %vm1195, %v1580, -inf
        %1587 = vmax.xlane.f32.xlu0 %v1586
        %v1588 = vpop.xlane.xlu0 %1587
        %v1589 = vsub.f32 %v1577, %v1585
        %v1590 = vsub.f32 %v1580, %v1588
        %v1591 = vmul.f32 %v1589, 1.442695
        %v1592 = vpow.pop %v1591
        %v1593 = vmul.f32 %v1590, 1.442695
        %v1594 = vpow.pop %v1593
        %v1595 = vsel %vm1195, %v1592, 0.0
        %1596 = vadd.xlane.f32.xlu0 %v1595
        %v1597 = vpop.xlane.xlu0 %1596
        %v1598 = vsel %vm1195, %v1594, 0.0
        %1599 = vadd.xlane.f32.xlu0 %v1598
        %v1600 = vpop.xlane.xlu0 %1599
        %v1601 = vrcp.pop %v1597
        %v1602 = vrcp.pop %v1600
        %v1603 = vmul.f32 %v1592, %v1601
        %v1604 = vmul.f32 %v1594, %v1602
        %v1605 = vpack.c.bf16 %v1604, %v1603
        %1606 = vrot.lane.b32.xlu0 %v1145, 32
        %v1607 = vpop.permute.xlu0 %1606
        %v1610 = vsel %vm1195, %v1605, 0
        %1612 = vmatprep.subr.bf16.mxu0 0
        %1613 = vmatpush1.bf16.msra.mxu0 %v1607
        %1614 = vmatprep.subr.bf16.mxu0 0
        %1615 = vmatpush1.bf16.msra.mxu0 0
        %1616 = vmatprep.subr.bf16.mxu0 0
        %1617 = vmatpush1.bf16.msra.mxu0 0
        %1618 = vmatprep.subr.bf16.mxu0 0
        %1619 = vmatpush1.bf16.msra.mxu0 0
        %1620 = vmatprep.subr.bf16.mxu0 0
        %1621 = vmatpush1.bf16.msra.mxu0 0
        %1622 = vmatprep.subr.bf16.mxu0 0
        %1623 = vmatpush1.bf16.msra.mxu0 0
        %1624 = vmatprep.subr.bf16.mxu0 0
        %1625 = vmatpush1.bf16.msra.mxu0 0
        %1626 = vmatprep.subr.bf16.mxu0 0
        %1627 = vmatpush1.bf16.msra.mxu0 0
        %1628 = vmatprep.subr.bf16.mxu0 0
        %1629 = vmatpush1.bf16.msra.mxu0 0
        %1630 = vmatprep.subr.bf16.mxu0 0
        %1631 = vmatpush1.bf16.msra.mxu0 0
        %1632 = vmatprep.subr.bf16.mxu0 0
        %1633 = vmatpush1.bf16.msra.mxu0 0
        %1634 = vmatprep.subr.bf16.mxu0 0
        %1635 = vmatpush1.bf16.msra.mxu0 0
        %1636 = vmatprep.subr.bf16.mxu0 0
        %1637 = vmatpush1.bf16.msra.mxu0 0
        %1638 = vmatprep.subr.bf16.mxu0 0
        %1639 = vmatpush1.bf16.msra.mxu0 0
        %1640 = vmatprep.subr.bf16.mxu0 0
        %1641 = vmatpush1.bf16.msra.mxu0 0
        %1642 = vmatprep.subr.bf16.mxu0 0
        %1643 = vmatpush1.bf16.msra.mxu0 0
        %1644 = vmatprep.mubr.bf16.mxu0 0
        %1645 = vmatmul.mubr.bf16.gmra.mrb[0].mxu0 %v1610
        %v1646 = vpop.f32.mrb[0].mxu0
        %v1647 = vadd.f32 0.0, %v1646
        %v1648 = vpop.f32.mrb[0].mxu0
        %v1649 = vpop.f32.mrb[0].mxu0
        %v1650 = vadd.f32 0.0, %v1649
        %v1651 = vpop.f32.mrb[0].mxu0
        %1652 = vdwg.mxu0
        %1655 = vrot.lane.b32.xlu0 %v1647, 96
        %v1656 = vpop.permute.xlu0 %1655
        %1657 = vrot.lane.b32.xlu0 %v1650, 96
        %v1658 = vpop.permute.xlu0 %1657
        %vm1661 = vcmask 1048320
        %1662 = vst.msk [vmem:[#allocation5] sm:$0xff] %vm1661, %v1656
        %1663 = vst.msk [vmem:[#allocation5 + $0x8] sm:$0xff] %vm1661, %v1658
        %v1664 = vld [vmem:[#allocation5] sm:$0xff]
        %v1665 = vld [vmem:[#allocation5 + $0x8] sm:$0xff]
        %v1666 = vpack.c.bf16 %v1665, %v1664
        %s1667 = scalar_lea.vmem [#allocation6], 192
        %v1668 = vld [vmem:[%s1667] sm:$0xf]
        %v1669 = vld [vmem:[%s1667 + $0x4] sm:$0xf]
        %v1670 = vld [vmem:[%s1667 + $0x8] sm:$0xf]
        %v1671 = vld [vmem:[%s1667 + $0xc] sm:$0xf]
        %v1672 = vld [vmem:[%s1667 + $0x10] sm:$0xf]
        %v1673 = vld [vmem:[%s1667 + $0x14] sm:$0xf]
        %v1674 = vld [vmem:[%s1667 + $0x18] sm:$0xf]
        %v1675 = vld [vmem:[%s1667 + $0x1c] sm:$0xf]
        %v1676 = vld [vmem:[%s1667 + $0x20] sm:$0xf]
        %v1677 = vld [vmem:[%s1667 + $0x24] sm:$0xf]
        %v1678 = vld [vmem:[%s1667 + $0x28] sm:$0xf]
        %v1679 = vld [vmem:[%s1667 + $0x2c] sm:$0xf]
        %v1680 = vld [vmem:[%s1667 + $0x30] sm:$0xf]
        %v1681 = vld [vmem:[%s1667 + $0x34] sm:$0xf]
        %v1682 = vld [vmem:[%s1667 + $0x38] sm:$0xf]
        %v1683 = vld [vmem:[%s1667 + $0x3c] sm:$0xf]
        %s1684 = scalar_lea.vmem %s5, 3
        %v1685 = vld [vmem:[%s1684] sm:$0x1]
        %v1687 = vlaneseq
        %v1688 = vshrl.u32 %v1687, 7
        %v1689 = vsub.s32 0, %v1688
        %v1690 = vrot.slane %v1685, %v1689
        %v1708 = vunpack.c.l.b16 %v1668
        %v1709 = vunpack.c.l.b16 %v1669
        %v1710 = vunpack.c.l.b16 %v1670
        %v1711 = vunpack.c.l.b16 %v1671
        %v1712 = vunpack.c.l.b16 %v1672
        %v1713 = vunpack.c.l.b16 %v1673
        %v1714 = vunpack.c.l.b16 %v1674
        %v1715 = vunpack.c.l.b16 %v1675
        %v1716 = vunpack.c.l.b16 %v1676
        %v1717 = vunpack.c.l.b16 %v1677
        %v1718 = vunpack.c.l.b16 %v1678
        %v1719 = vunpack.c.l.b16 %v1679
        %v1720 = vunpack.c.l.b16 %v1680
        %v1721 = vunpack.c.l.b16 %v1681
        %v1722 = vunpack.c.l.b16 %v1682
        %v1723 = vunpack.c.l.b16 %v1683
        %v1724 = vpack.c.b16 %v1709, %v1708
        %v1725 = vpack.c.b16 %v1711, %v1710
        %v1726 = vpack.c.b16 %v1713, %v1712
        %v1727 = vpack.c.b16 %v1715, %v1714
        %v1728 = vpack.c.b16 %v1717, %v1716
        %v1729 = vpack.c.b16 %v1719, %v1718
        %v1730 = vpack.c.b16 %v1721, %v1720
        %v1731 = vpack.c.b16 %v1723, %v1722
        %1740 = vmatprep.subr.bf16.mxu0 0
        %1741 = vmatpush1.bf16.msra.mxu0 %v1724
        %1742 = vmatprep.subr.bf16.mxu0 0
        %1743 = vmatpush1.bf16.msra.mxu0 %v1725
        %1744 = vmatprep.subr.bf16.mxu0 0
        %1745 = vmatpush1.bf16.msra.mxu0 %v1726
        %1746 = vmatprep.subr.bf16.mxu0 0
        %1747 = vmatpush1.bf16.msra.mxu0 %v1727
        %1748 = vmatprep.subr.bf16.mxu0 0
        %1749 = vmatpush1.bf16.msra.mxu0 %v1728
        %1750 = vmatprep.subr.bf16.mxu0 0
        %1751 = vmatpush1.bf16.msra.mxu0 %v1729
        %1752 = vmatprep.subr.bf16.mxu0 0
        %1753 = vmatpush1.bf16.msra.mxu0 %v1730
        %1754 = vmatprep.subr.bf16.mxu0 0
        %1755 = vmatpush1.bf16.msra.mxu0 %v1731
        %1756 = vmatprep.subr.bf16.mxu0 0
        %1757 = vmatpush1.bf16.msra.mxu0 0
        %1758 = vmatprep.subr.bf16.mxu0 0
        %1759 = vmatpush1.bf16.msra.mxu0 0
        %1760 = vmatprep.subr.bf16.mxu0 0
        %1761 = vmatpush1.bf16.msra.mxu0 0
        %1762 = vmatprep.subr.bf16.mxu0 0
        %1763 = vmatpush1.bf16.msra.mxu0 0
        %1764 = vmatprep.subr.bf16.mxu0 0
        %1765 = vmatpush1.bf16.msra.mxu0 0
        %1766 = vmatprep.subr.bf16.mxu0 0
        %1767 = vmatpush1.bf16.msra.mxu0 0
        %1768 = vmatprep.subr.bf16.mxu0 0
        %1769 = vmatpush1.bf16.msra.mxu0 0
        %1770 = vmatprep.subr.bf16.mxu0 0
        %1771 = vmatpush1.bf16.msra.mxu0 0
        %1772 = vmatprep.mubr.bf16.mxu0 0
        %1773 = vmatmul.mubr.bf16.gmra.mrb[0].mxu0 %v1666
        %v1774 = vpop.f32.mrb[0].mxu0
        %v1775 = vadd.f32 %v1690, %v1774
        %v1776 = vpop.f32.mrb[0].mxu0
        %v1777 = vpop.f32.mrb[0].mxu0
        %v1778 = vadd.f32 %v1690, %v1777
        %v1779 = vpop.f32.mrb[0].mxu0
        %1780 = vdwg.mxu0
        %v1781 = vadd.f32 %v1775, %v796
        %v1782 = vadd.f32 %v1778, %v797
        %v1783 = vld [vmem:[%s10] sm:$0x1]
        %v1784 = vld [vmem:[%s11] sm:$0x1]
        %1785 = vadd.xlane.f32.xlu0 %v1781
        %v1786 = vpop.xlane.xlu0 %1785
        %1787 = vadd.xlane.f32.xlu0 %v1782
        %v1788 = vpop.xlane.xlu0 %1787
        %v1789 = vrcp.pop 128.0
        %v1790 = vmul.f32 %v1786, %v1789
        %v1791 = vmul.f32 %v1788, %v1789
        %v1792 = vmul.f32 %v1781, %v1781
        %v1793 = vmul.f32 %v1782, %v1782
        %1794 = vadd.xlane.f32.xlu0 %v1792
        %v1795 = vpop.xlane.xlu0 %1794
        %1796 = vadd.xlane.f32.xlu0 %v1793
        %v1797 = vpop.xlane.xlu0 %1796
        %v1798 = vmul.f32 %v1795, %v1789
        %v1799 = vmul.f32 %v1797, %v1789
        %v1800 = vmul.f32 %v1790, %v1790
        %v1801 = vmul.f32 %v1791, %v1791
        %v1802 = vsub.f32 %v1798, %v1800
        %v1803 = vsub.f32 %v1799, %v1801
        %v1804 = vmax.f32 %v1802, 0.0
        %v1805 = vmax.f32 %v1803, 0.0
        %v1806 = vsub.f32 %v1781, %v1790
        %v1807 = vsub.f32 %v1782, %v1791
        %v1808 = vadd.f32 %v1804, 1e-05
        %v1809 = vadd.f32 %v1805, 1e-05
        %v1810 = vrsqrt.pop %v1808
        %v1811 = vrsqrt.pop %v1809
        %v1812 = vmul.f32 %v1806, %v1810
        %v1813 = vmul.f32 %v1807, %v1811
        %v1815 = vlaneseq
        %v1816 = vshrl.u32 %v1815, 7
        %v1817 = vsub.s32 0, %v1816
        %v1818 = vrot.slane %v1783, %v1817
        %v1820 = vmul.f32 %v1812, %v1818
        %v1821 = vmul.f32 %v1813, %v1818
        %v1823 = vlaneseq
        %v1824 = vshrl.u32 %v1823, 7
        %v1825 = vsub.s32 0, %v1824
        %v1826 = vrot.slane %v1784, %v1825
        %v1828 = vadd.f32 %v1820, %v1826
        %v1829 = vadd.f32 %v1821, %v1826
        %v1830 = vadd.f32 %v1828, %v798
        %v1831 = vadd.f32 %v1829, %v799
        %v1832 = vpack.c.bf16 %v1831, %v1830
        %s1833 = scalar_lea.vmem [#allocation6], 256
        %v1834 = vld [vmem:[%s1833] sm:$0xf]
        %v1835 = vld [vmem:[%s1833 + $0x4] sm:$0xf]
        %v1836 = vld [vmem:[%s1833 + $0x8] sm:$0xf]
        %v1837 = vld [vmem:[%s1833 + $0xc] sm:$0xf]
        %v1838 = vld [vmem:[%s1833 + $0x10] sm:$0xf]
        %v1839 = vld [vmem:[%s1833 + $0x14] sm:$0xf]
        %v1840 = vld [vmem:[%s1833 + $0x18] sm:$0xf]
        %v1841 = vld [vmem:[%s1833 + $0x1c] sm:$0xf]
        %v1842 = vld [vmem:[%s1833 + $0x20] sm:$0xf]
        %v1843 = vld [vmem:[%s1833 + $0x24] sm:$0xf]
        %v1844 = vld [vmem:[%s1833 + $0x28] sm:$0xf]
        %v1845 = vld [vmem:[%s1833 + $0x2c] sm:$0xf]
        %v1846 = vld [vmem:[%s1833 + $0x30] sm:$0xf]
        %v1847 = vld [vmem:[%s1833 + $0x34] sm:$0xf]
        %v1848 = vld [vmem:[%s1833 + $0x38] sm:$0xf]
        %v1849 = vld [vmem:[%s1833 + $0x3c] sm:$0xf]
        %s1850 = scalar_lea.vmem %s5, 4
        %v1851 = vld [vmem:[%s1850] sm:$0x1]
        %v1853 = vlaneseq
        %v1854 = vshrl.u32 %v1853, 7
        %v1855 = vsub.s32 0, %v1854
        %v1856 = vrot.slane %v1851, %v1855
        %v1874 = vunpack.c.l.b16 %v1834
        %v1875 = vunpack.c.l.b16 %v1835
        %v1876 = vunpack.c.l.b16 %v1836
        %v1877 = vunpack.c.l.b16 %v1837
        %v1878 = vunpack.c.l.b16 %v1838
        %v1879 = vunpack.c.l.b16 %v1839
        %v1880 = vunpack.c.l.b16 %v1840
        %v1881 = vunpack.c.l.b16 %v1841
        %v1882 = vunpack.c.l.b16 %v1842
        %v1883 = vunpack.c.l.b16 %v1843
        %v1884 = vunpack.c.l.b16 %v1844
        %v1885 = vunpack.c.l.b16 %v1845
        %v1886 = vunpack.c.l.b16 %v1846
        %v1887 = vunpack.c.l.b16 %v1847
        %v1888 = vunpack.c.l.b16 %v1848
        %v1889 = vunpack.c.l.b16 %v1849
        %v1890 = vpack.c.b16 %v1875, %v1874
        %v1891 = vpack.c.b16 %v1877, %v1876
        %v1892 = vpack.c.b16 %v1879, %v1878
        %v1893 = vpack.c.b16 %v1881, %v1880
        %v1894 = vpack.c.b16 %v1883, %v1882
        %v1895 = vpack.c.b16 %v1885, %v1884
        %v1896 = vpack.c.b16 %v1887, %v1886
        %v1897 = vpack.c.b16 %v1889, %v1888
        %1906 = vmatprep.subr.bf16.mxu0 0
        %1907 = vmatpush1.bf16.msra.mxu0 %v1890
        %1908 = vmatprep.subr.bf16.mxu0 0
        %1909 = vmatpush1.bf16.msra.mxu0 %v1891
        %1910 = vmatprep.subr.bf16.mxu0 0
        %1911 = vmatpush1.bf16.msra.mxu0 %v1892
        %1912 = vmatprep.subr.bf16.mxu0 0
        %1913 = vmatpush1.bf16.msra.mxu0 %v1893
        %1914 = vmatprep.subr.bf16.mxu0 0
        %1915 = vmatpush1.bf16.msra.mxu0 %v1894
        %1916 = vmatprep.subr.bf16.mxu0 0
        %1917 = vmatpush1.bf16.msra.mxu0 %v1895
        %1918 = vmatprep.subr.bf16.mxu0 0
        %1919 = vmatpush1.bf16.msra.mxu0 %v1896
        %1920 = vmatprep.subr.bf16.mxu0 0
        %1921 = vmatpush1.bf16.msra.mxu0 %v1897
        %1922 = vmatprep.subr.bf16.mxu0 0
        %1923 = vmatpush1.bf16.msra.mxu0 0
        %1924 = vmatprep.subr.bf16.mxu0 0
        %1925 = vmatpush1.bf16.msra.mxu0 0
        %1926 = vmatprep.subr.bf16.mxu0 0
        %1927 = vmatpush1.bf16.msra.mxu0 0
        %1928 = vmatprep.subr.bf16.mxu0 0
        %1929 = vmatpush1.bf16.msra.mxu0 0
        %1930 = vmatprep.subr.bf16.mxu0 0
        %1931 = vmatpush1.bf16.msra.mxu0 0
        %1932 = vmatprep.subr.bf16.mxu0 0
        %1933 = vmatpush1.bf16.msra.mxu0 0
        %1934 = vmatprep.subr.bf16.mxu0 0
        %1935 = vmatpush1.bf16.msra.mxu0 0
        %1936 = vmatprep.subr.bf16.mxu0 0
        %1937 = vmatpush1.bf16.msra.mxu0 0
        %1938 = vmatprep.mubr.bf16.mxu0 0
        %1939 = vmatmul.mubr.bf16.gmra.mrb[0].mxu0 %v1832
        %v1940 = vpop.f32.mrb[0].mxu0
        %v1941 = vadd.f32 %v1856, %v1940
        %v1942 = vpop.f32.mrb[0].mxu0
        %v1943 = vpop.f32.mrb[0].mxu0
        %v1944 = vadd.f32 %v1856, %v1943
        %v1945 = vpop.f32.mrb[0].mxu0
        %1946 = vdwg.mxu0
        %v1947 = vld [vmem:[#allocation3] sm:$0xff]
        %v1948 = vld [vmem:[#allocation3 + $0x8] sm:$0xff]
        %v1949 = vld [vmem:[#allocation4] sm:$0xff]
        %v1950 = vld [vmem:[#allocation4 + $0x8] sm:$0xff]
        %v1951 = vpack.c.bf16 %v1944, %v1941
        %v1953 = vsel %vm1147, %v1951, 0
        %v1956 = vsel %vm1147, %v1947, 0
        %v1959 = vsel %vm1147, %v1948, 0
        %1961 = vmatprep.subr.bf16.mxu0 0
        %1962 = vmatpush1.bf16.xpose.msra.mxu0 %v1956
        %1963 = vmatprep.subr.bf16.mxu0 0
        %1964 = vmatpush1.bf16.xpose.msra.mxu0 %v1959
        %1965 = vmatprep.subr.bf16.mxu0 0
        %1966 = vmatpush1.bf16.xpose.msra.mxu0 0
        %1967 = vmatprep.subr.bf16.mxu0 0
        %1968 = vmatpush1.bf16.xpose.msra.mxu0 0
        %1969 = vmatprep.subr.bf16.mxu0 0
        %1970 = vmatpush1.bf16.xpose.msra.mxu0 0
        %1971 = vmatprep.subr.bf16.mxu0 0
        %1972 = vmatpush1.bf16.xpose.msra.mxu0 0
        %1973 = vmatprep.subr.bf16.mxu0 0
        %1974 = vmatpush1.bf16.xpose.msra.mxu0 0
        %1975 = vmatprep.subr.bf16.mxu0 0
        %1976 = vmatpush1.bf16.xpose.msra.mxu0 0
        %1977 = vmatprep.subr.bf16.mxu0 0
        %1978 = vmatpush1.bf16.xpose.msra.mxu0 0
        %1979 = vmatprep.subr.bf16.mxu0 0
        %1980 = vmatpush1.bf16.xpose.msra.mxu0 0
        %1981 = vmatprep.subr.bf16.mxu0 0
        %1982 = vmatpush1.bf16.xpose.msra.mxu0 0
        %1983 = vmatprep.subr.bf16.mxu0 0
        %1984 = vmatpush1.bf16.xpose.msra.mxu0 0
        %1985 = vmatprep.subr.bf16.mxu0 0
        %1986 = vmatpush1.bf16.xpose.msra.mxu0 0
        %1987 = vmatprep.subr.bf16.mxu0 0
        %1988 = vmatpush1.bf16.xpose.msra.mxu0 0
        %1989 = vmatprep.subr.bf16.mxu0 0
        %1990 = vmatpush1.bf16.xpose.msra.mxu0 0
        %1991 = vmatprep.subr.bf16.mxu0 0
        %1992 = vmatpush1.bf16.xpose.msra.mxu0 0
        %1993 = vmatprep.mubr.bf16.mxu0 0
        %1994 = vmatmul.mubr.bf16.gmra.mrb[0].mxu0 %v1953
        %v1995 = vpop.f32.mrb[0].mxu0
        %v1996 = vadd.f32 0.0, %v1995
        %v1997 = vpop.f32.mrb[0].mxu0
        %v1998 = vpop.f32.mrb[0].mxu0
        %v1999 = vadd.f32 0.0, %v1998
        %v2000 = vpop.f32.mrb[0].mxu0
        %2001 = vdwg.mxu0
        %v2002 = vsel %vm1147, %v1996, -inf
        %2003 = vmax.xlane.f32.xlu0 %v2002
        %v2004 = vpop.xlane.xlu0 %2003
        %v2005 = vsel %vm1147, %v1999, -inf
        %2006 = vmax.xlane.f32.xlu0 %v2005
        %v2007 = vpop.xlane.xlu0 %2006
        %v2008 = vsub.f32 %v1996, %v2004
        %v2009 = vsub.f32 %v1999, %v2007
        %v2010 = vmul.f32 %v2008, 1.442695
        %v2011 = vpow.pop %v2010
        %v2012 = vmul.f32 %v2009, 1.442695
        %v2013 = vpow.pop %v2012
        %v2014 = vsel %vm1147, %v2011, 0.0
        %2015 = vadd.xlane.f32.xlu0 %v2014
        %v2016 = vpop.xlane.xlu0 %2015
        %v2017 = vsel %vm1147, %v2013, 0.0
        %2018 = vadd.xlane.f32.xlu0 %v2017
        %v2019 = vpop.xlane.xlu0 %2018
        %v2020 = vrcp.pop %v2016
        %v2021 = vrcp.pop %v2019
        %v2022 = vmul.f32 %v2011, %v2020
        %v2023 = vmul.f32 %v2013, %v2021
        %v2024 = vpack.c.bf16 %v2023, %v2022
        %v2026 = vsel %vm1147, %v2024, 0
        %2028 = vmatprep.subr.bf16.mxu0 0
        %2029 = vmatpush1.bf16.msra.mxu0 %v1949
        %2030 = vmatprep.subr.bf16.mxu0 0
        %2031 = vmatpush1.bf16.msra.mxu0 %v1950
        %2032 = vmatprep.subr.bf16.mxu0 0
        %2033 = vmatpush1.bf16.msra.mxu0 0
        %2034 = vmatprep.subr.bf16.mxu0 0
        %2035 = vmatpush1.bf16.msra.mxu0 0
        %2036 = vmatprep.subr.bf16.mxu0 0
        %2037 = vmatpush1.bf16.msra.mxu0 0
        %2038 = vmatprep.subr.bf16.mxu0 0
        %2039 = vmatpush1.bf16.msra.mxu0 0
        %2040 = vmatprep.subr.bf16.mxu0 0
        %2041 = vmatpush1.bf16.msra.mxu0 0
        %2042 = vmatprep.subr.bf16.mxu0 0
        %2043 = vmatpush1.bf16.msra.mxu0 0
        %2044 = vmatprep.subr.bf16.mxu0 0
        %2045 = vmatpush1.bf16.msra.mxu0 0
        %2046 = vmatprep.subr.bf16.mxu0 0
        %2047 = vmatpush1.bf16.msra.mxu0 0
        %2048 = vmatprep.subr.bf16.mxu0 0
        %2049 = vmatpush1.bf16.msra.mxu0 0
        %2050 = vmatprep.subr.bf16.mxu0 0
        %2051 = vmatpush1.bf16.msra.mxu0 0
        %2052 = vmatprep.subr.bf16.mxu0 0
        %2053 = vmatpush1.bf16.msra.mxu0 0
        %2054 = vmatprep.subr.bf16.mxu0 0
        %2055 = vmatpush1.bf16.msra.mxu0 0
        %2056 = vmatprep.subr.bf16.mxu0 0
        %2057 = vmatpush1.bf16.msra.mxu0 0
        %2058 = vmatprep.subr.bf16.mxu0 0
        %2059 = vmatpush1.bf16.msra.mxu0 0
        %2060 = vmatprep.mubr.bf16.mxu0 0
        %2061 = vmatmul.mubr.bf16.gmra.mrb[0].mxu0 %v2026
        %v2062 = vpop.f32.mrb[0].mxu0
        %v2063 = vadd.f32 0.0, %v2062
        %v2064 = vpop.f32.mrb[0].mxu0
        %v2065 = vpop.f32.mrb[0].mxu0
        %v2066 = vadd.f32 0.0, %v2065
        %v2067 = vpop.f32.mrb[0].mxu0
        %2068 = vdwg.mxu0
        %2069 = vst.msk [vmem:[#allocation5] sm:$0xff] %vm1147, %v2063
        %2070 = vst.msk [vmem:[#allocation5 + $0x8] sm:$0xff] %vm1147, %v2066
        %2072 = vrot.lane.b32.xlu0 %v1951, 96
        %v2073 = vpop.permute.xlu0 %2072
        %2076 = vrot.lane.b32.xlu0 %v1947, 96
        %v2077 = vpop.permute.xlu0 %2076
        %2078 = vrot.lane.b32.xlu0 %v1948, 96
        %v2079 = vpop.permute.xlu0 %2078
        %v2081 = vsel %vm1147, %v2073, 0
        %v2084 = vsel %vm1147, %v2077, 0
        %v2087 = vsel %vm1147, %v2079, 0
        %2089 = vmatprep.subr.bf16.mxu0 0
        %2090 = vmatpush1.bf16.xpose.msra.mxu0 %v2084
        %2091 = vmatprep.subr.bf16.mxu0 0
        %2092 = vmatpush1.bf16.xpose.msra.mxu0 %v2087
        %2093 = vmatprep.subr.bf16.mxu0 0
        %2094 = vmatpush1.bf16.xpose.msra.mxu0 0
        %2095 = vmatprep.subr.bf16.mxu0 0
        %2096 = vmatpush1.bf16.xpose.msra.mxu0 0
        %2097 = vmatprep.subr.bf16.mxu0 0
        %2098 = vmatpush1.bf16.xpose.msra.mxu0 0
        %2099 = vmatprep.subr.bf16.mxu0 0
        %2100 = vmatpush1.bf16.xpose.msra.mxu0 0
        %2101 = vmatprep.subr.bf16.mxu0 0
        %2102 = vmatpush1.bf16.xpose.msra.mxu0 0
        %2103 = vmatprep.subr.bf16.mxu0 0
        %2104 = vmatpush1.bf16.xpose.msra.mxu0 0
        %2105 = vmatprep.subr.bf16.mxu0 0
        %2106 = vmatpush1.bf16.xpose.msra.mxu0 0
        %2107 = vmatprep.subr.bf16.mxu0 0
        %2108 = vmatpush1.bf16.xpose.msra.mxu0 0
        %2109 = vmatprep.subr.bf16.mxu0 0
        %2110 = vmatpush1.bf16.xpose.msra.mxu0 0
        %2111 = vmatprep.subr.bf16.mxu0 0
        %2112 = vmatpush1.bf16.xpose.msra.mxu0 0
        %2113 = vmatprep.subr.bf16.mxu0 0
        %2114 = vmatpush1.bf16.xpose.msra.mxu0 0
        %2115 = vmatprep.subr.bf16.mxu0 0
        %2116 = vmatpush1.bf16.xpose.msra.mxu0 0
        %2117 = vmatprep.subr.bf16.mxu0 0
        %2118 = vmatpush1.bf16.xpose.msra.mxu0 0
        %2119 = vmatprep.subr.bf16.mxu0 0
        %2120 = vmatpush1.bf16.xpose.msra.mxu0 0
        %2121 = vmatprep.mubr.bf16.mxu0 0
        %2122 = vmatmul.mubr.bf16.gmra.mrb[0].mxu0 %v2081
        %v2123 = vpop.f32.mrb[0].mxu0
        %v2124 = vadd.f32 0.0, %v2123
        %v2125 = vpop.f32.mrb[0].mxu0
        %v2126 = vpop.f32.mrb[0].mxu0
        %v2127 = vadd.f32 0.0, %v2126
        %v2128 = vpop.f32.mrb[0].mxu0
        %2129 = vdwg.mxu0
        %v2130 = vsel %vm1147, %v2124, -inf
        %2131 = vmax.xlane.f32.xlu0 %v2130
        %v2132 = vpop.xlane.xlu0 %2131
        %v2133 = vsel %vm1147, %v2127, -inf
        %2134 = vmax.xlane.f32.xlu0 %v2133
        %v2135 = vpop.xlane.xlu0 %2134
        %v2136 = vsub.f32 %v2124, %v2132
        %v2137 = vsub.f32 %v2127, %v2135
        %v2138 = vmul.f32 %v2136, 1.442695
        %v2139 = vpow.pop %v2138
        %v2140 = vmul.f32 %v2137, 1.442695
        %v2141 = vpow.pop %v2140
        %v2142 = vsel %vm1147, %v2139, 0.0
        %2143 = vadd.xlane.f32.xlu0 %v2142
        %v2144 = vpop.xlane.xlu0 %2143
        %v2145 = vsel %vm1147, %v2141, 0.0
        %2146 = vadd.xlane.f32.xlu0 %v2145
        %v2147 = vpop.xlane.xlu0 %2146
        %v2148 = vrcp.pop %v2144
        %v2149 = vrcp.pop %v2147
        %v2150 = vmul.f32 %v2139, %v2148
        %v2151 = vmul.f32 %v2141, %v2149
        %v2152 = vpack.c.bf16 %v2151, %v2150
        %2155 = vrot.lane.b32.xlu0 %v1949, 96
        %v2156 = vpop.permute.xlu0 %2155
        %2157 = vrot.lane.b32.xlu0 %v1950, 96
        %v2158 = vpop.permute.xlu0 %2157
        %v2162 = vsel %vm1147, %v2152, 0
        %2164 = vmatprep.subr.bf16.mxu0 0
        %2165 = vmatpush1.bf16.msra.mxu0 %v2156
        %2166 = vmatprep.subr.bf16.mxu0 0
        %2167 = vmatpush1.bf16.msra.mxu0 %v2158
        %2168 = vmatprep.subr.bf16.mxu0 0
        %2169 = vmatpush1.bf16.msra.mxu0 0
        %2170 = vmatprep.subr.bf16.mxu0 0
        %2171 = vmatpush1.bf16.msra.mxu0 0
        %2172 = vmatprep.subr.bf16.mxu0 0
        %2173 = vmatpush1.bf16.msra.mxu0 0
        %2174 = vmatprep.subr.bf16.mxu0 0
        %2175 = vmatpush1.bf16.msra.mxu0 0
        %2176 = vmatprep.subr.bf16.mxu0 0
        %2177 = vmatpush1.bf16.msra.mxu0 0
        %2178 = vmatprep.subr.bf16.mxu0 0
        %2179 = vmatpush1.bf16.msra.mxu0 0
        %2180 = vmatprep.subr.bf16.mxu0 0
        %2181 = vmatpush1.bf16.msra.mxu0 0
        %2182 = vmatprep.subr.bf16.mxu0 0
        %2183 = vmatpush1.bf16.msra.mxu0 0
        %2184 = vmatprep.subr.bf16.mxu0 0
        %2185 = vmatpush1.bf16.msra.mxu0 0
        %2186 = vmatprep.subr.bf16.mxu0 0
        %2187 = vmatpush1.bf16.msra.mxu0 0
        %2188 = vmatprep.subr.bf16.mxu0 0
        %2189 = vmatpush1.bf16.msra.mxu0 0
        %2190 = vmatprep.subr.bf16.mxu0 0
        %2191 = vmatpush1.bf16.msra.mxu0 0
        %2192 = vmatprep.subr.bf16.mxu0 0
        %2193 = vmatpush1.bf16.msra.mxu0 0
        %2194 = vmatprep.subr.bf16.mxu0 0
        %2195 = vmatpush1.bf16.msra.mxu0 0
        %2196 = vmatprep.mubr.bf16.mxu0 0
        %2197 = vmatmul.mubr.bf16.gmra.mrb[0].mxu0 %v2162
        %v2198 = vpop.f32.mrb[0].mxu0
        %v2199 = vadd.f32 0.0, %v2198
        %v2200 = vpop.f32.mrb[0].mxu0
        %v2201 = vpop.f32.mrb[0].mxu0
        %v2202 = vadd.f32 0.0, %v2201
        %v2203 = vpop.f32.mrb[0].mxu0
        %2204 = vdwg.mxu0
        %2207 = vrot.lane.b32.xlu0 %v2199, 32
        %v2208 = vpop.permute.xlu0 %2207
        %2209 = vrot.lane.b32.xlu0 %v2202, 32
        %v2210 = vpop.permute.xlu0 %2209
        %2213 = vst.msk [vmem:[#allocation5] sm:$0xff] %vm1397, %v2208
        %2214 = vst.msk [vmem:[#allocation5 + $0x8] sm:$0xff] %vm1397, %v2210
        %2215 = vrot.lane.b32.xlu0 %v1951, 64
        %v2216 = vpop.permute.xlu0 %2215
        %2217 = vrot.lane.b32.xlu0 %v1947, 64
        %v2218 = vpop.permute.xlu0 %2217
        %2219 = vrot.lane.b32.xlu0 %v1948, 64
        %v2220 = vpop.permute.xlu0 %2219
        %v2222 = vsel %vm1147, %v2216, 0
        %v2225 = vsel %vm1147, %v2218, 0
        %v2228 = vsel %vm1147, %v2220, 0
        %2230 = vmatprep.subr.bf16.mxu0 0
        %2231 = vmatpush1.bf16.xpose.msra.mxu0 %v2225
        %2232 = vmatprep.subr.bf16.mxu0 0
        %2233 = vmatpush1.bf16.xpose.msra.mxu0 %v2228
        %2234 = vmatprep.subr.bf16.mxu0 0
        %2235 = vmatpush1.bf16.xpose.msra.mxu0 0
        %2236 = vmatprep.subr.bf16.mxu0 0
        %2237 = vmatpush1.bf16.xpose.msra.mxu0 0
        %2238 = vmatprep.subr.bf16.mxu0 0
        %2239 = vmatpush1.bf16.xpose.msra.mxu0 0
        %2240 = vmatprep.subr.bf16.mxu0 0
        %2241 = vmatpush1.bf16.xpose.msra.mxu0 0
        %2242 = vmatprep.subr.bf16.mxu0 0
        %2243 = vmatpush1.bf16.xpose.msra.mxu0 0
        %2244 = vmatprep.subr.bf16.mxu0 0
        %2245 = vmatpush1.bf16.xpose.msra.mxu0 0
        %2246 = vmatprep.subr.bf16.mxu0 0
        %2247 = vmatpush1.bf16.xpose.msra.mxu0 0
        %2248 = vmatprep.subr.bf16.mxu0 0
        %2249 = vmatpush1.bf16.xpose.msra.mxu0 0
        %2250 = vmatprep.subr.bf16.mxu0 0
        %2251 = vmatpush1.bf16.xpose.msra.mxu0 0
        %2252 = vmatprep.subr.bf16.mxu0 0
        %2253 = vmatpush1.bf16.xpose.msra.mxu0 0
        %2254 = vmatprep.subr.bf16.mxu0 0
        %2255 = vmatpush1.bf16.xpose.msra.mxu0 0
        %2256 = vmatprep.subr.bf16.mxu0 0
        %2257 = vmatpush1.bf16.xpose.msra.mxu0 0
        %2258 = vmatprep.subr.bf16.mxu0 0
        %2259 = vmatpush1.bf16.xpose.msra.mxu0 0
        %2260 = vmatprep.subr.bf16.mxu0 0
        %2261 = vmatpush1.bf16.xpose.msra.mxu0 0
        %2262 = vmatprep.mubr.bf16.mxu0 0
        %2263 = vmatmul.mubr.bf16.gmra.mrb[0].mxu0 %v2222
        %v2264 = vpop.f32.mrb[0].mxu0
        %v2265 = vadd.f32 0.0, %v2264
        %v2266 = vpop.f32.mrb[0].mxu0
        %v2267 = vpop.f32.mrb[0].mxu0
        %v2268 = vadd.f32 0.0, %v2267
        %v2269 = vpop.f32.mrb[0].mxu0
        %2270 = vdwg.mxu0
        %v2271 = vsel %vm1147, %v2265, -inf
        %2272 = vmax.xlane.f32.xlu0 %v2271
        %v2273 = vpop.xlane.xlu0 %2272
        %v2274 = vsel %vm1147, %v2268, -inf
        %2275 = vmax.xlane.f32.xlu0 %v2274
        %v2276 = vpop.xlane.xlu0 %2275
        %v2277 = vsub.f32 %v2265, %v2273
        %v2278 = vsub.f32 %v2268, %v2276
        %v2279 = vmul.f32 %v2277, 1.442695
        %v2280 = vpow.pop %v2279
        %v2281 = vmul.f32 %v2278, 1.442695
        %v2282 = vpow.pop %v2281
        %v2283 = vsel %vm1147, %v2280, 0.0
        %2284 = vadd.xlane.f32.xlu0 %v2283
        %v2285 = vpop.xlane.xlu0 %2284
        %v2286 = vsel %vm1147, %v2282, 0.0
        %2287 = vadd.xlane.f32.xlu0 %v2286
        %v2288 = vpop.xlane.xlu0 %2287
        %v2289 = vrcp.pop %v2285
        %v2290 = vrcp.pop %v2288
        %v2291 = vmul.f32 %v2280, %v2289
        %v2292 = vmul.f32 %v2282, %v2290
        %v2293 = vpack.c.bf16 %v2292, %v2291
        %2294 = vrot.lane.b32.xlu0 %v1949, 64
        %v2295 = vpop.permute.xlu0 %2294
        %2296 = vrot.lane.b32.xlu0 %v1950, 64
        %v2297 = vpop.permute.xlu0 %2296
        %v2301 = vsel %vm1147, %v2293, 0
        %2303 = vmatprep.subr.bf16.mxu0 0
        %2304 = vmatpush1.bf16.msra.mxu0 %v2295
        %2305 = vmatprep.subr.bf16.mxu0 0
        %2306 = vmatpush1.bf16.msra.mxu0 %v2297
        %2307 = vmatprep.subr.bf16.mxu0 0
        %2308 = vmatpush1.bf16.msra.mxu0 0
        %2309 = vmatprep.subr.bf16.mxu0 0
        %2310 = vmatpush1.bf16.msra.mxu0 0
        %2311 = vmatprep.subr.bf16.mxu0 0
        %2312 = vmatpush1.bf16.msra.mxu0 0
        %2313 = vmatprep.subr.bf16.mxu0 0
        %2314 = vmatpush1.bf16.msra.mxu0 0
        %2315 = vmatprep.subr.bf16.mxu0 0
        %2316 = vmatpush1.bf16.msra.mxu0 0
        %2317 = vmatprep.subr.bf16.mxu0 0
        %2318 = vmatpush1.bf16.msra.mxu0 0
        %2319 = vmatprep.subr.bf16.mxu0 0
        %2320 = vmatpush1.bf16.msra.mxu0 0
        %2321 = vmatprep.subr.bf16.mxu0 0
        %2322 = vmatpush1.bf16.msra.mxu0 0
        %2323 = vmatprep.subr.bf16.mxu0 0
        %2324 = vmatpush1.bf16.msra.mxu0 0
        %2325 = vmatprep.subr.bf16.mxu0 0
        %2326 = vmatpush1.bf16.msra.mxu0 0
        %2327 = vmatprep.subr.bf16.mxu0 0
        %2328 = vmatpush1.bf16.msra.mxu0 0
        %2329 = vmatprep.subr.bf16.mxu0 0
        %2330 = vmatpush1.bf16.msra.mxu0 0
        %2331 = vmatprep.subr.bf16.mxu0 0
        %2332 = vmatpush1.bf16.msra.mxu0 0
        %2333 = vmatprep.subr.bf16.mxu0 0
        %2334 = vmatpush1.bf16.msra.mxu0 0
        %2335 = vmatprep.mubr.bf16.mxu0 0
        %2336 = vmatmul.mubr.bf16.gmra.mrb[0].mxu0 %v2301
        %v2337 = vpop.f32.mrb[0].mxu0
        %v2338 = vadd.f32 0.0, %v2337
        %v2339 = vpop.f32.mrb[0].mxu0
        %v2340 = vpop.f32.mrb[0].mxu0
        %v2341 = vadd.f32 0.0, %v2340
        %v2342 = vpop.f32.mrb[0].mxu0
        %2343 = vdwg.mxu0
        %2346 = vrot.lane.b32.xlu0 %v2338, 64
        %v2347 = vpop.permute.xlu0 %2346
        %2348 = vrot.lane.b32.xlu0 %v2341, 64
        %v2349 = vpop.permute.xlu0 %2348
        %2352 = vst.msk [vmem:[#allocation5] sm:$0xff] %vm1529, %v2347
        %2353 = vst.msk [vmem:[#allocation5 + $0x8] sm:$0xff] %vm1529, %v2349
        %2354 = vrot.lane.b32.xlu0 %v1951, 32
        %v2355 = vpop.permute.xlu0 %2354
        %2356 = vrot.lane.b32.xlu0 %v1947, 32
        %v2357 = vpop.permute.xlu0 %2356
        %2358 = vrot.lane.b32.xlu0 %v1948, 32
        %v2359 = vpop.permute.xlu0 %2358
        %v2361 = vsel %vm1147, %v2355, 0
        %v2364 = vsel %vm1147, %v2357, 0
        %v2367 = vsel %vm1147, %v2359, 0
        %2369 = vmatprep.subr.bf16.mxu0 0
        %2370 = vmatpush1.bf16.xpose.msra.mxu0 %v2364
        %2371 = vmatprep.subr.bf16.mxu0 0
        %2372 = vmatpush1.bf16.xpose.msra.mxu0 %v2367
        %2373 = vmatprep.subr.bf16.mxu0 0
        %2374 = vmatpush1.bf16.xpose.msra.mxu0 0
        %2375 = vmatprep.subr.bf16.mxu0 0
        %2376 = vmatpush1.bf16.xpose.msra.mxu0 0
        %2377 = vmatprep.subr.bf16.mxu0 0
        %2378 = vmatpush1.bf16.xpose.msra.mxu0 0
        %2379 = vmatprep.subr.bf16.mxu0 0
        %2380 = vmatpush1.bf16.xpose.msra.mxu0 0
        %2381 = vmatprep.subr.bf16.mxu0 0
        %2382 = vmatpush1.bf16.xpose.msra.mxu0 0
        %2383 = vmatprep.subr.bf16.mxu0 0
        %2384 = vmatpush1.bf16.xpose.msra.mxu0 0
        %2385 = vmatprep.subr.bf16.mxu0 0
        %2386 = vmatpush1.bf16.xpose.msra.mxu0 0
        %2387 = vmatprep.subr.bf16.mxu0 0
        %2388 = vmatpush1.bf16.xpose.msra.mxu0 0
        %2389 = vmatprep.subr.bf16.mxu0 0
        %2390 = vmatpush1.bf16.xpose.msra.mxu0 0
        %2391 = vmatprep.subr.bf16.mxu0 0
        %2392 = vmatpush1.bf16.xpose.msra.mxu0 0
        %2393 = vmatprep.subr.bf16.mxu0 0
        %2394 = vmatpush1.bf16.xpose.msra.mxu0 0
        %2395 = vmatprep.subr.bf16.mxu0 0
        %2396 = vmatpush1.bf16.xpose.msra.mxu0 0
        %2397 = vmatprep.subr.bf16.mxu0 0
        %2398 = vmatpush1.bf16.xpose.msra.mxu0 0
        %2399 = vmatprep.subr.bf16.mxu0 0
        %2400 = vmatpush1.bf16.xpose.msra.mxu0 0
        %2401 = vmatprep.mubr.bf16.mxu0 0
        %2402 = vmatmul.mubr.bf16.gmra.mrb[0].mxu0 %v2361
        %v2403 = vpop.f32.mrb[0].mxu0
        %v2404 = vadd.f32 0.0, %v2403
        %v2405 = vpop.f32.mrb[0].mxu0
        %v2406 = vpop.f32.mrb[0].mxu0
        %v2407 = vadd.f32 0.0, %v2406
        %v2408 = vpop.f32.mrb[0].mxu0
        %2409 = vdwg.mxu0
        %v2410 = vsel %vm1147, %v2404, -inf
        %2411 = vmax.xlane.f32.xlu0 %v2410
        %v2412 = vpop.xlane.xlu0 %2411
        %v2413 = vsel %vm1147, %v2407, -inf
        %2414 = vmax.xlane.f32.xlu0 %v2413
        %v2415 = vpop.xlane.xlu0 %2414
        %v2416 = vsub.f32 %v2404, %v2412
        %v2417 = vsub.f32 %v2407, %v2415
        %v2418 = vmul.f32 %v2416, 1.442695
        %v2419 = vpow.pop %v2418
        %v2420 = vmul.f32 %v2417, 1.442695
        %v2421 = vpow.pop %v2420
        %v2422 = vsel %vm1147, %v2419, 0.0
        %2423 = vadd.xlane.f32.xlu0 %v2422
        %v2424 = vpop.xlane.xlu0 %2423
        %v2425 = vsel %vm1147, %v2421, 0.0
        %2426 = vadd.xlane.f32.xlu0 %v2425
        %v2427 = vpop.xlane.xlu0 %2426
        %v2428 = vrcp.pop %v2424
        %v2429 = vrcp.pop %v2427
        %v2430 = vmul.f32 %v2419, %v2428
        %v2431 = vmul.f32 %v2421, %v2429
        %v2432 = vpack.c.bf16 %v2431, %v2430
        %2433 = vrot.lane.b32.xlu0 %v1949, 32
        %v2434 = vpop.permute.xlu0 %2433
        %2435 = vrot.lane.b32.xlu0 %v1950, 32
        %v2436 = vpop.permute.xlu0 %2435
        %v2440 = vsel %vm1147, %v2432, 0
        %2442 = vmatprep.subr.bf16.mxu0 0
        %2443 = vmatpush1.bf16.msra.mxu0 %v2434
        %2444 = vmatprep.subr.bf16.mxu0 0
        %2445 = vmatpush1.bf16.msra.mxu0 %v2436
        %2446 = vmatprep.subr.bf16.mxu0 0
        %2447 = vmatpush1.bf16.msra.mxu0 0
        %2448 = vmatprep.subr.bf16.mxu0 0
        %2449 = vmatpush1.bf16.msra.mxu0 0
        %2450 = vmatprep.subr.bf16.mxu0 0
        %2451 = vmatpush1.bf16.msra.mxu0 0
        %2452 = vmatprep.subr.bf16.mxu0 0
        %2453 = vmatpush1.bf16.msra.mxu0 0
        %2454 = vmatprep.subr.bf16.mxu0 0
        %2455 = vmatpush1.bf16.msra.mxu0 0
        %2456 = vmatprep.subr.bf16.mxu0 0
        %2457 = vmatpush1.bf16.msra.mxu0 0
        %2458 = vmatprep.subr.bf16.mxu0 0
        %2459 = vmatpush1.bf16.msra.mxu0 0
        %2460 = vmatprep.subr.bf16.mxu0 0
        %2461 = vmatpush1.bf16.msra.mxu0 0
        %2462 = vmatprep.subr.bf16.mxu0 0
        %2463 = vmatpush1.bf16.msra.mxu0 0
        %2464 = vmatprep.subr.bf16.mxu0 0
        %2465 = vmatpush1.bf16.msra.mxu0 0
        %2466 = vmatprep.subr.bf16.mxu0 0
        %2467 = vmatpush1.bf16.msra.mxu0 0
        %2468 = vmatprep.subr.bf16.mxu0 0
        %2469 = vmatpush1.bf16.msra.mxu0 0
        %2470 = vmatprep.subr.bf16.mxu0 0
        %2471 = vmatpush1.bf16.msra.mxu0 0
        %2472 = vmatprep.subr.bf16.mxu0 0
        %2473 = vmatpush1.bf16.msra.mxu0 0
        %2474 = vmatprep.mubr.bf16.mxu0 0
        %2475 = vmatmul.mubr.bf16.gmra.mrb[0].mxu0 %v2440
        %v2476 = vpop.f32.mrb[0].mxu0
        %v2477 = vadd.f32 0.0, %v2476
        %v2478 = vpop.f32.mrb[0].mxu0
        %v2479 = vpop.f32.mrb[0].mxu0
        %v2480 = vadd.f32 0.0, %v2479
        %v2481 = vpop.f32.mrb[0].mxu0
        %2482 = vdwg.mxu0
        %2485 = vrot.lane.b32.xlu0 %v2477, 96
        %v2486 = vpop.permute.xlu0 %2485
        %2487 = vrot.lane.b32.xlu0 %v2480, 96
        %v2488 = vpop.permute.xlu0 %2487
        %2491 = vst.msk [vmem:[#allocation5] sm:$0xff] %vm1661, %v2486
        %2492 = vst.msk [vmem:[#allocation5 + $0x8] sm:$0xff] %vm1661, %v2488
        %v2493 = vld [vmem:[#allocation5] sm:$0xff]
        %v2494 = vld [vmem:[#allocation5 + $0x8] sm:$0xff]
        %v2495 = vpack.c.bf16 %v2494, %v2493
        %s2496 = scalar_lea.vmem [#allocation6], 448
        %v2497 = vld [vmem:[%s2496] sm:$0xf]
        %v2498 = vld [vmem:[%s2496 + $0x4] sm:$0xf]
        %v2499 = vld [vmem:[%s2496 + $0x8] sm:$0xf]
        %v2500 = vld [vmem:[%s2496 + $0xc] sm:$0xf]
        %v2501 = vld [vmem:[%s2496 + $0x10] sm:$0xf]
        %v2502 = vld [vmem:[%s2496 + $0x14] sm:$0xf]
        %v2503 = vld [vmem:[%s2496 + $0x18] sm:$0xf]
        %v2504 = vld [vmem:[%s2496 + $0x1c] sm:$0xf]
        %v2505 = vld [vmem:[%s2496 + $0x20] sm:$0xf]
        %v2506 = vld [vmem:[%s2496 + $0x24] sm:$0xf]
        %v2507 = vld [vmem:[%s2496 + $0x28] sm:$0xf]
        %v2508 = vld [vmem:[%s2496 + $0x2c] sm:$0xf]
        %v2509 = vld [vmem:[%s2496 + $0x30] sm:$0xf]
        %v2510 = vld [vmem:[%s2496 + $0x34] sm:$0xf]
        %v2511 = vld [vmem:[%s2496 + $0x38] sm:$0xf]
        %v2512 = vld [vmem:[%s2496 + $0x3c] sm:$0xf]
        %s2513 = scalar_lea.vmem %s5, 7
        %v2514 = vld [vmem:[%s2513] sm:$0x1]
        %v2516 = vlaneseq
        %v2517 = vshrl.u32 %v2516, 7
        %v2518 = vsub.s32 0, %v2517
        %v2519 = vrot.slane %v2514, %v2518
        %v2537 = vunpack.c.l.b16 %v2497
        %v2538 = vunpack.c.l.b16 %v2498
        %v2539 = vunpack.c.l.b16 %v2499
        %v2540 = vunpack.c.l.b16 %v2500
        %v2541 = vunpack.c.l.b16 %v2501
        %v2542 = vunpack.c.l.b16 %v2502
        %v2543 = vunpack.c.l.b16 %v2503
        %v2544 = vunpack.c.l.b16 %v2504
        %v2545 = vunpack.c.l.b16 %v2505
        %v2546 = vunpack.c.l.b16 %v2506
        %v2547 = vunpack.c.l.b16 %v2507
        %v2548 = vunpack.c.l.b16 %v2508
        %v2549 = vunpack.c.l.b16 %v2509
        %v2550 = vunpack.c.l.b16 %v2510
        %v2551 = vunpack.c.l.b16 %v2511
        %v2552 = vunpack.c.l.b16 %v2512
        %v2553 = vpack.c.b16 %v2538, %v2537
        %v2554 = vpack.c.b16 %v2540, %v2539
        %v2555 = vpack.c.b16 %v2542, %v2541
        %v2556 = vpack.c.b16 %v2544, %v2543
        %v2557 = vpack.c.b16 %v2546, %v2545
        %v2558 = vpack.c.b16 %v2548, %v2547
        %v2559 = vpack.c.b16 %v2550, %v2549
        %v2560 = vpack.c.b16 %v2552, %v2551
        %2569 = vmatprep.subr.bf16.mxu0 0
        %2570 = vmatpush1.bf16.msra.mxu0 %v2553
        %2571 = vmatprep.subr.bf16.mxu0 0
        %2572 = vmatpush1.bf16.msra.mxu0 %v2554
        %2573 = vmatprep.subr.bf16.mxu0 0
        %2574 = vmatpush1.bf16.msra.mxu0 %v2555
        %2575 = vmatprep.subr.bf16.mxu0 0
        %2576 = vmatpush1.bf16.msra.mxu0 %v2556
        %2577 = vmatprep.subr.bf16.mxu0 0
        %2578 = vmatpush1.bf16.msra.mxu0 %v2557
        %2579 = vmatprep.subr.bf16.mxu0 0
        %2580 = vmatpush1.bf16.msra.mxu0 %v2558
        %2581 = vmatprep.subr.bf16.mxu0 0
        %2582 = vmatpush1.bf16.msra.mxu0 %v2559
        %2583 = vmatprep.subr.bf16.mxu0 0
        %2584 = vmatpush1.bf16.msra.mxu0 %v2560
        %2585 = vmatprep.subr.bf16.mxu0 0
        %2586 = vmatpush1.bf16.msra.mxu0 0
        %2587 = vmatprep.subr.bf16.mxu0 0
        %2588 = vmatpush1.bf16.msra.mxu0 0
        %2589 = vmatprep.subr.bf16.mxu0 0
        %2590 = vmatpush1.bf16.msra.mxu0 0
        %2591 = vmatprep.subr.bf16.mxu0 0
        %2592 = vmatpush1.bf16.msra.mxu0 0
        %2593 = vmatprep.subr.bf16.mxu0 0
        %2594 = vmatpush1.bf16.msra.mxu0 0
        %2595 = vmatprep.subr.bf16.mxu0 0
        %2596 = vmatpush1.bf16.msra.mxu0 0
        %2597 = vmatprep.subr.bf16.mxu0 0
        %2598 = vmatpush1.bf16.msra.mxu0 0
        %2599 = vmatprep.subr.bf16.mxu0 0
        %2600 = vmatpush1.bf16.msra.mxu0 0
        %2601 = vmatprep.mubr.bf16.mxu0 0
        %2602 = vmatmul.mubr.bf16.gmra.mrb[0].mxu0 %v2495
        %v2603 = vpop.f32.mrb[0].mxu0
        %v2604 = vadd.f32 %v2519, %v2603
        %v2605 = vpop.f32.mrb[0].mxu0
        %v2606 = vpop.f32.mrb[0].mxu0
        %v2607 = vadd.f32 %v2519, %v2606
        %v2608 = vpop.f32.mrb[0].mxu0
        %2609 = vdwg.mxu0
        %v2610 = vadd.f32 %v2604, %v1828
        %v2611 = vadd.f32 %v2607, %v1829
        %s2612 = scalar_lea.vmem %s10, 1
        %v2613 = vld [vmem:[%s2612] sm:$0x1]
        %s2614 = scalar_lea.vmem %s11, 1
        %v2615 = vld [vmem:[%s2614] sm:$0x1]
        %2616 = vadd.xlane.f32.xlu0 %v2610
        %v2617 = vpop.xlane.xlu0 %2616
        %2618 = vadd.xlane.f32.xlu0 %v2611
        %v2619 = vpop.xlane.xlu0 %2618
        %v2620 = vmul.f32 %v2617, %v1789
        %v2621 = vmul.f32 %v2619, %v1789
        %v2622 = vmul.f32 %v2610, %v2610
        %v2623 = vmul.f32 %v2611, %v2611
        %2624 = vadd.xlane.f32.xlu0 %v2622
        %v2625 = vpop.xlane.xlu0 %2624
        %2626 = vadd.xlane.f32.xlu0 %v2623
        %v2627 = vpop.xlane.xlu0 %2626
        %v2628 = vmul.f32 %v2625, %v1789
        %v2629 = vmul.f32 %v2627, %v1789
        %v2630 = vmul.f32 %v2620, %v2620
        %v2631 = vmul.f32 %v2621, %v2621
        %v2632 = vsub.f32 %v2628, %v2630
        %v2633 = vsub.f32 %v2629, %v2631
        %v2634 = vmax.f32 %v2632, 0.0
        %v2635 = vmax.f32 %v2633, 0.0
        %v2636 = vsub.f32 %v2610, %v2620
        %v2637 = vsub.f32 %v2611, %v2621
        %v2638 = vadd.f32 %v2634, 1e-05
        %v2639 = vadd.f32 %v2635, 1e-05
        %v2640 = vrsqrt.pop %v2638
        %v2641 = vrsqrt.pop %v2639
        %v2642 = vmul.f32 %v2636, %v2640
        %v2643 = vmul.f32 %v2637, %v2641
        %v2645 = vlaneseq
        %v2646 = vshrl.u32 %v2645, 7
        %v2647 = vsub.s32 0, %v2646
        %v2648 = vrot.slane %v2613, %v2647
        %v2650 = vmul.f32 %v2642, %v2648
        %v2651 = vmul.f32 %v2643, %v2648
        %v2653 = vlaneseq
        %v2654 = vshrl.u32 %v2653, 7
        %v2655 = vsub.s32 0, %v2654
        %v2656 = vrot.slane %v2615, %v2655
        %v2658 = vadd.f32 %v2650, %v2656
        %v2659 = vadd.f32 %v2651, %v2656
        %v2660 = vpack.c.bf16 %v2659, %v2658
        %v2661 = vld [vmem:[%s6] sm:$0xff]
        %v2662 = vld [vmem:[%s6 + $0x8] sm:$0xff]
        %v2663 = vld [vmem:[%s6 + $0x10] sm:$0xff]
        %v2664 = vld [vmem:[%s6 + $0x18] sm:$0xff]
        %v2665 = vld [vmem:[%s6 + $0x20] sm:$0xff]
        %v2666 = vld [vmem:[%s6 + $0x28] sm:$0xff]
        %v2667 = vld [vmem:[%s6 + $0x30] sm:$0xff]
        %v2668 = vld [vmem:[%s6 + $0x38] sm:$0xff]
        %v2669 = vld [vmem:[%s6 + $0x40] sm:$0xff]
        %v2670 = vld [vmem:[%s6 + $0x48] sm:$0xff]
        %v2671 = vld [vmem:[%s6 + $0x50] sm:$0xff]
        %v2672 = vld [vmem:[%s6 + $0x58] sm:$0xff]
        %v2673 = vld [vmem:[%s6 + $0x60] sm:$0xff]
        %v2674 = vld [vmem:[%s6 + $0x68] sm:$0xff]
        %v2675 = vld [vmem:[%s6 + $0x70] sm:$0xff]
        %v2676 = vld [vmem:[%s6 + $0x78] sm:$0xff]
        %v2677 = vld [vmem:[%s7] sm:$0x3]
        %v2679 = vlaneseq
        %v2680 = vshrl.u32 %v2679, 7
        %v2681 = vsub.s32 0, %v2680
        %v2682 = vrot.slane %v2677, %v2681
        %v2683 = vlaneseq
        %v2684 = vshrl.u32 %v2683, 7
        %v2685 = vsub.s32 1, %v2684
        %v2686 = vrot.slane %v2677, %v2685
        %v2705 = vunpack.c.l.b16 %v2661
        %v2706 = vunpack.c.h.b16 %v2661
        %v2707 = vunpack.c.l.b16 %v2662
        %v2708 = vunpack.c.h.b16 %v2662
        %v2709 = vunpack.c.l.b16 %v2663
        %v2710 = vunpack.c.h.b16 %v2663
        %v2711 = vunpack.c.l.b16 %v2664
        %v2712 = vunpack.c.h.b16 %v2664
        %v2713 = vunpack.c.l.b16 %v2665
        %v2714 = vunpack.c.h.b16 %v2665
        %v2715 = vunpack.c.l.b16 %v2666
        %v2716 = vunpack.c.h.b16 %v2666
        %v2717 = vunpack.c.l.b16 %v2667
        %v2718 = vunpack.c.h.b16 %v2667
        %v2719 = vunpack.c.l.b16 %v2668
        %v2720 = vunpack.c.h.b16 %v2668
        %v2721 = vunpack.c.l.b16 %v2669
        %v2722 = vunpack.c.h.b16 %v2669
        %v2723 = vunpack.c.l.b16 %v2670
        %v2724 = vunpack.c.h.b16 %v2670
        %v2725 = vunpack.c.l.b16 %v2671
        %v2726 = vunpack.c.h.b16 %v2671
        %v2727 = vunpack.c.l.b16 %v2672
        %v2728 = vunpack.c.h.b16 %v2672
        %v2729 = vunpack.c.l.b16 %v2673
        %v2730 = vunpack.c.h.b16 %v2673
        %v2731 = vunpack.c.l.b16 %v2674
        %v2732 = vunpack.c.h.b16 %v2674
        %v2733 = vunpack.c.l.b16 %v2675
        %v2734 = vunpack.c.h.b16 %v2675
        %v2735 = vunpack.c.l.b16 %v2676
        %v2736 = vunpack.c.h.b16 %v2676
        %v2737 = vpack.c.b16 %v2707, %v2705
        %v2738 = vpack.c.b16 %v2708, %v2706
        %v2739 = vpack.c.b16 %v2711, %v2709
        %v2740 = vpack.c.b16 %v2712, %v2710
        %v2741 = vpack.c.b16 %v2715, %v2713
        %v2742 = vpack.c.b16 %v2716, %v2714
        %v2743 = vpack.c.b16 %v2719, %v2717
        %v2744 = vpack.c.b16 %v2720, %v2718
        %v2745 = vpack.c.b16 %v2723, %v2721
        %v2746 = vpack.c.b16 %v2724, %v2722
        %v2747 = vpack.c.b16 %v2727, %v2725
        %v2748 = vpack.c.b16 %v2728, %v2726
        %v2749 = vpack.c.b16 %v2731, %v2729
        %v2750 = vpack.c.b16 %v2732, %v2730
        %v2751 = vpack.c.b16 %v2735, %v2733
        %v2752 = vpack.c.b16 %v2736, %v2734
        %2769 = vmatprep.subr.bf16.mxu0 %v2738
        %2770 = vmatpush1.bf16.msra.mxu0 %v2737
        %2771 = vmatprep.subr.bf16.mxu0 %v2740
        %2772 = vmatpush1.bf16.msra.mxu0 %v2739
        %2773 = vmatprep.subr.bf16.mxu0 %v2742
        %2774 = vmatpush1.bf16.msra.mxu0 %v2741
        %2775 = vmatprep.subr.bf16.mxu0 %v2744
        %2776 = vmatpush1.bf16.msra.mxu0 %v2743
        %2777 = vmatprep.subr.bf16.mxu0 %v2746
        %2778 = vmatpush1.bf16.msra.mxu0 %v2745
        %2779 = vmatprep.subr.bf16.mxu0 %v2748
        %2780 = vmatpush1.bf16.msra.mxu0 %v2747
        %2781 = vmatprep.subr.bf16.mxu0 %v2750
        %2782 = vmatpush1.bf16.msra.mxu0 %v2749
        %2783 = vmatprep.subr.bf16.mxu0 %v2752
        %2784 = vmatpush1.bf16.msra.mxu0 %v2751
        %2785 = vmatprep.subr.bf16.mxu0 0
        %2786 = vmatpush1.bf16.msra.mxu0 0
        %2787 = vmatprep.subr.bf16.mxu0 0
        %2788 = vmatpush1.bf16.msra.mxu0 0
        %2789 = vmatprep.subr.bf16.mxu0 0
        %2790 = vmatpush1.bf16.msra.mxu0 0
        %2791 = vmatprep.subr.bf16.mxu0 0
        %2792 = vmatpush1.bf16.msra.mxu0 0
        %2793 = vmatprep.subr.bf16.mxu0 0
        %2794 = vmatpush1.bf16.msra.mxu0 0
        %2795 = vmatprep.subr.bf16.mxu0 0
        %2796 = vmatpush1.bf16.msra.mxu0 0
        %2797 = vmatprep.subr.bf16.mxu0 0
        %2798 = vmatpush1.bf16.msra.mxu0 0
        %2799 = vmatprep.subr.bf16.mxu0 0
        %2800 = vmatpush1.bf16.msra.mxu0 0
        %2801 = vmatprep.mubr.bf16.mxu0 0
        %2802 = vmatmul.mubr.bf16.gmra.mrb[0].mxu0 %v2660
        %v2803 = vpop.f32.mrb[0].mxu0
        %v2804 = vadd.f32 %v2682, %v2803
        %v2805 = vpop.f32.mrb[0].mxu0
        %v2806 = vadd.f32 %v2686, %v2805
        %v2807 = vpop.f32.mrb[0].mxu0
        %v2808 = vadd.f32 %v2682, %v2807
        %v2809 = vpop.f32.mrb[0].mxu0
        %v2810 = vadd.f32 %v2686, %v2809
        %2811 = vdwg.mxu0
        %v2812 = vmax.f32 %v2804, 0.0
        %v2813 = vmax.f32 %v2806, 0.0
        %v2814 = vmax.f32 %v2808, 0.0
        %v2815 = vmax.f32 %v2810, 0.0
        %v2816 = vpack.c.bf16 %v2814, %v2812
        %v2817 = vpack.c.bf16 %v2815, %v2813
        %v2818 = vld [vmem:[%s8] sm:$0xf]
        %v2819 = vld [vmem:[%s8 + $0x4] sm:$0xf]
        %v2820 = vld [vmem:[%s8 + $0x8] sm:$0xf]
        %v2821 = vld [vmem:[%s8 + $0xc] sm:$0xf]
        %v2822 = vld [vmem:[%s8 + $0x10] sm:$0xf]
        %v2823 = vld [vmem:[%s8 + $0x14] sm:$0xf]
        %v2824 = vld [vmem:[%s8 + $0x18] sm:$0xf]
        %v2825 = vld [vmem:[%s8 + $0x1c] sm:$0xf]
        %v2826 = vld [vmem:[%s8 + $0x20] sm:$0xf]
        %v2827 = vld [vmem:[%s8 + $0x24] sm:$0xf]
        %v2828 = vld [vmem:[%s8 + $0x28] sm:$0xf]
        %v2829 = vld [vmem:[%s8 + $0x2c] sm:$0xf]
        %v2830 = vld [vmem:[%s8 + $0x30] sm:$0xf]
        %v2831 = vld [vmem:[%s8 + $0x34] sm:$0xf]
        %v2832 = vld [vmem:[%s8 + $0x38] sm:$0xf]
        %v2833 = vld [vmem:[%s8 + $0x3c] sm:$0xf]
        %v2834 = vld [vmem:[%s8 + $0x40] sm:$0xf]
        %v2835 = vld [vmem:[%s8 + $0x44] sm:$0xf]
        %v2836 = vld [vmem:[%s8 + $0x48] sm:$0xf]
        %v2837 = vld [vmem:[%s8 + $0x4c] sm:$0xf]
        %v2838 = vld [vmem:[%s8 + $0x50] sm:$0xf]
        %v2839 = vld [vmem:[%s8 + $0x54] sm:$0xf]
        %v2840 = vld [vmem:[%s8 + $0x58] sm:$0xf]
        %v2841 = vld [vmem:[%s8 + $0x5c] sm:$0xf]
        %v2842 = vld [vmem:[%s8 + $0x60] sm:$0xf]
        %v2843 = vld [vmem:[%s8 + $0x64] sm:$0xf]
        %v2844 = vld [vmem:[%s8 + $0x68] sm:$0xf]
        %v2845 = vld [vmem:[%s8 + $0x6c] sm:$0xf]
        %v2846 = vld [vmem:[%s8 + $0x70] sm:$0xf]
        %v2847 = vld [vmem:[%s8 + $0x74] sm:$0xf]
        %v2848 = vld [vmem:[%s8 + $0x78] sm:$0xf]
        %v2849 = vld [vmem:[%s8 + $0x7c] sm:$0xf]
        %v2850 = vld [vmem:[%s9] sm:$0x1]
        %v2852 = vlaneseq
        %v2853 = vshrl.u32 %v2852, 7
        %v2854 = vsub.s32 0, %v2853
        %v2855 = vrot.slane %v2850, %v2854
        %v2889 = vunpack.c.l.b16 %v2818
        %v2890 = vunpack.c.l.b16 %v2819
        %v2891 = vunpack.c.l.b16 %v2820
        %v2892 = vunpack.c.l.b16 %v2821
        %v2893 = vunpack.c.l.b16 %v2822
        %v2894 = vunpack.c.l.b16 %v2823
        %v2895 = vunpack.c.l.b16 %v2824
        %v2896 = vunpack.c.l.b16 %v2825
        %v2897 = vunpack.c.l.b16 %v2826
        %v2898 = vunpack.c.l.b16 %v2827
        %v2899 = vunpack.c.l.b16 %v2828
        %v2900 = vunpack.c.l.b16 %v2829
        %v2901 = vunpack.c.l.b16 %v2830
        %v2902 = vunpack.c.l.b16 %v2831
        %v2903 = vunpack.c.l.b16 %v2832
        %v2904 = vunpack.c.l.b16 %v2833
        %v2905 = vunpack.c.l.b16 %v2834
        %v2906 = vunpack.c.l.b16 %v2835
        %v2907 = vunpack.c.l.b16 %v2836
        %v2908 = vunpack.c.l.b16 %v2837
        %v2909 = vunpack.c.l.b16 %v2838
        %v2910 = vunpack.c.l.b16 %v2839
        %v2911 = vunpack.c.l.b16 %v2840
        %v2912 = vunpack.c.l.b16 %v2841
        %v2913 = vunpack.c.l.b16 %v2842
        %v2914 = vunpack.c.l.b16 %v2843
        %v2915 = vunpack.c.l.b16 %v2844
        %v2916 = vunpack.c.l.b16 %v2845
        %v2917 = vunpack.c.l.b16 %v2846
        %v2918 = vunpack.c.l.b16 %v2847
        %v2919 = vunpack.c.l.b16 %v2848
        %v2920 = vunpack.c.l.b16 %v2849
        %v2921 = vpack.c.b16 %v2890, %v2889
        %v2922 = vpack.c.b16 %v2892, %v2891
        %v2923 = vpack.c.b16 %v2894, %v2893
        %v2924 = vpack.c.b16 %v2896, %v2895
        %v2925 = vpack.c.b16 %v2898, %v2897
        %v2926 = vpack.c.b16 %v2900, %v2899
        %v2927 = vpack.c.b16 %v2902, %v2901
        %v2928 = vpack.c.b16 %v2904, %v2903
        %v2929 = vpack.c.b16 %v2906, %v2905
        %v2930 = vpack.c.b16 %v2908, %v2907
        %v2931 = vpack.c.b16 %v2910, %v2909
        %v2932 = vpack.c.b16 %v2912, %v2911
        %v2933 = vpack.c.b16 %v2914, %v2913
        %v2934 = vpack.c.b16 %v2916, %v2915
        %v2935 = vpack.c.b16 %v2918, %v2917
        %v2936 = vpack.c.b16 %v2920, %v2919
        %2953 = vmatprep.subr.bf16.mxu0 0
        %2954 = vmatpush1.bf16.msra.mxu0 %v2921
        %2955 = vmatprep.subr.bf16.mxu0 0
        %2956 = vmatpush1.bf16.msra.mxu0 %v2922
        %2957 = vmatprep.subr.bf16.mxu0 0
        %2958 = vmatpush1.bf16.msra.mxu0 %v2923
        %2959 = vmatprep.subr.bf16.mxu0 0
        %2960 = vmatpush1.bf16.msra.mxu0 %v2924
        %2961 = vmatprep.subr.bf16.mxu0 0
        %2962 = vmatpush1.bf16.msra.mxu0 %v2925
        %2963 = vmatprep.subr.bf16.mxu0 0
        %2964 = vmatpush1.bf16.msra.mxu0 %v2926
        %2965 = vmatprep.subr.bf16.mxu0 0
        %2966 = vmatpush1.bf16.msra.mxu0 %v2927
        %2967 = vmatprep.subr.bf16.mxu0 0
        %2968 = vmatpush1.bf16.msra.mxu0 %v2928
        %2969 = vmatprep.subr.bf16.mxu0 0
        %2970 = vmatpush1.bf16.msra.mxu0 %v2929
        %2971 = vmatprep.subr.bf16.mxu0 0
        %2972 = vmatpush1.bf16.msra.mxu0 %v2930
        %2973 = vmatprep.subr.bf16.mxu0 0
        %2974 = vmatpush1.bf16.msra.mxu0 %v2931
        %2975 = vmatprep.subr.bf16.mxu0 0
        %2976 = vmatpush1.bf16.msra.mxu0 %v2932
        %2977 = vmatprep.subr.bf16.mxu0 0
        %2978 = vmatpush1.bf16.msra.mxu0 %v2933
        %2979 = vmatprep.subr.bf16.mxu0 0
        %2980 = vmatpush1.bf16.msra.mxu0 %v2934
        %2981 = vmatprep.subr.bf16.mxu0 0
        %2982 = vmatpush1.bf16.msra.mxu0 %v2935
        %2983 = vmatprep.subr.bf16.mxu0 0
        %2984 = vmatpush1.bf16.msra.mxu0 %v2936
        %2985 = vmatprep.mubr.bf16.mxu0 %v2817
        %2986 = vmatmul.mubr.bf16.gmra.mrb[0].mxu0 %v2816
        %v2987 = vpop.f32.mrb[0].mxu0
        %v2988 = vadd.f32 %v2855, %v2987
        %v2989 = vpop.f32.mrb[0].mxu0
        %v2990 = vpop.f32.mrb[0].mxu0
        %v2991 = vadd.f32 %v2855, %v2990
        %v2992 = vpop.f32.mrb[0].mxu0
        %2993 = vdwg.mxu0
        %v2994 = vadd.f32 %v2988, %v2658
        %v2995 = vadd.f32 %v2991, %v2659
        %s2996 = scalar_lea.vmem %s10, 2
        %v2997 = vld [vmem:[%s2996] sm:$0x1]
        %s2998 = scalar_lea.vmem %s11, 2
        %v2999 = vld [vmem:[%s2998] sm:$0x1]
        %3000 = vadd.xlane.f32.xlu0 %v2994
        %v3001 = vpop.xlane.xlu0 %3000
        %3002 = vadd.xlane.f32.xlu0 %v2995
        %v3003 = vpop.xlane.xlu0 %3002
        %v3004 = vmul.f32 %v3001, %v1789
        %v3005 = vmul.f32 %v3003, %v1789
        %v3006 = vmul.f32 %v2994, %v2994
        %v3007 = vmul.f32 %v2995, %v2995
        %3008 = vadd.xlane.f32.xlu0 %v3006
        %v3009 = vpop.xlane.xlu0 %3008
        %3010 = vadd.xlane.f32.xlu0 %v3007
        %v3011 = vpop.xlane.xlu0 %3010
        %v3012 = vmul.f32 %v3009, %v1789
        %v3013 = vmul.f32 %v3011, %v1789
        %v3014 = vmul.f32 %v3004, %v3004
        %v3015 = vmul.f32 %v3005, %v3005
        %v3016 = vsub.f32 %v3012, %v3014
        %v3017 = vsub.f32 %v3013, %v3015
        %v3018 = vmax.f32 %v3016, 0.0
        %v3019 = vmax.f32 %v3017, 0.0
        %v3020 = vsub.f32 %v2994, %v3004
        %v3021 = vsub.f32 %v2995, %v3005
        %v3022 = vadd.f32 %v3018, 1e-05
        %v3023 = vadd.f32 %v3019, 1e-05
        %v3024 = vrsqrt.pop %v3022
        %v3025 = vrsqrt.pop %v3023
        %v3026 = vmul.f32 %v3020, %v3024
        %v3027 = vmul.f32 %v3021, %v3025
        %v3029 = vlaneseq
        %v3030 = vshrl.u32 %v3029, 7
        %v3031 = vsub.s32 0, %v3030
        %v3032 = vrot.slane %v2997, %v3031
        %v3034 = vmul.f32 %v3026, %v3032
        %v3035 = vmul.f32 %v3027, %v3032
        %v3037 = vlaneseq
        %v3038 = vshrl.u32 %v3037, 7
        %v3039 = vsub.s32 0, %v3038
        %v3040 = vrot.slane %v2999, %v3039
        %v3042 = vadd.f32 %v3034, %v3040
        %v3043 = vadd.f32 %v3035, %v3040
        %3044 = vst [vmem:[#allocation2] sm:$0xff] %v3042
        %3045 = vst [vmem:[#allocation2 + $0x8] sm:$0xff] %v3043
        %p3046 = scmp.eq.s32.totalorder %s29, 1
        // Predicated region
        $region77: #{transformer_decoder.1} parent=67 // pred_check
          %p3047 = pneg %p3046
        $region78: #{transformer_decoder.1} parent=67 // pred_check_branch
          %3049 = sbr.rel (%p3047) target = $region80
        $region79: #{transformer_decoder.1} parent=67 // pred_region
          %s3050 = scalar_lea.vmem %s10, 3
          %v3051 = vld [vmem:[%s3050] sm:$0x1]
          %s3052 = scalar_lea.vmem %s11, 3
          %v3053 = vld [vmem:[%s3052] sm:$0x1]
          %3054 = vadd.xlane.f32.xlu0 %v3042
          %v3055 = vpop.xlane.xlu0 %3054
          %3056 = vadd.xlane.f32.xlu0 %v3043
          %v3057 = vpop.xlane.xlu0 %3056
          %v3058 = vmul.f32 %v3055, %v1789
          %v3059 = vmul.f32 %v3057, %v1789
          %v3060 = vmul.f32 %v3042, %v3042
          %v3061 = vmul.f32 %v3043, %v3043
          %3062 = vadd.xlane.f32.xlu0 %v3060
          %v3063 = vpop.xlane.xlu0 %3062
          %3064 = vadd.xlane.f32.xlu0 %v3061
          %v3065 = vpop.xlane.xlu0 %3064
          %v3066 = vmul.f32 %v3063, %v1789
          %v3067 = vmul.f32 %v3065, %v1789
          %v3068 = vmul.f32 %v3058, %v3058
          %v3069 = vmul.f32 %v3059, %v3059
          %v3070 = vsub.f32 %v3066, %v3068
          %v3071 = vsub.f32 %v3067, %v3069
          %v3072 = vmax.f32 %v3070, 0.0
          %v3073 = vmax.f32 %v3071, 0.0
          %v3074 = vsub.f32 %v3042, %v3058
          %v3075 = vsub.f32 %v3043, %v3059
          %v3076 = vadd.f32 %v3072, 1e-05
          %v3077 = vadd.f32 %v3073, 1e-05
          %v3078 = vrsqrt.pop %v3076
          %v3079 = vrsqrt.pop %v3077
          %v3080 = vmul.f32 %v3074, %v3078
          %v3081 = vmul.f32 %v3075, %v3079
          %v3083 = vlaneseq
          %v3084 = vshrl.u32 %v3083, 7
          %v3085 = vsub.s32 0, %v3084
          %v3086 = vrot.slane %v3051, %v3085
          %v3088 = vmul.f32 %v3080, %v3086
          %v3089 = vmul.f32 %v3081, %v3086
          %v3091 = vlaneseq
          %v3092 = vshrl.u32 %v3091, 7
          %v3093 = vsub.s32 0, %v3092
          %v3094 = vrot.slane %v3053, %v3093
          %v3096 = vadd.f32 %v3088, %v3094
          %v3097 = vadd.f32 %v3089, %v3094
          %3098 = vst [vmem:[%s500] sm:$0xff] %v3096
          %3099 = vst [vmem:[%s500 + $0x8] sm:$0xff] %v3097
        $region80: #{transformer_decoder.1} parent=67 // pred_fallthru
          _
        %p3100 = scmp.lt.s32.totalorder %s28, 1
        %s3101 = scalar_select %p3100, %s28, 1
        %s3102 = smul.addr %s3101, 2
        %s3103 = smul.addr %s3102, 8
        %s3104 = scalar_lea.vmem %s12, %s3103
        // Predicated region
        $region81: #{transformer_decoder.1} parent=67 // pred_check
          %p3105 = pneg %p326
        $region82: #{transformer_decoder.1} parent=67 // pred_check_branch
          %3107 = sbr.rel (%p3105) target = $region84
        $region83: #{transformer_decoder.1} parent=67 // pred_region
          _
        $region84: #{transformer_decoder.1} parent=67 // pred_fallthru
          _
      $region68: #{transformer_decoder.1} parent=5 // pred_fallthru
        _
      %p3108 = scmp.le.s32.totalorder 2, %s19
      // Predicated region
      $region85: #{transformer_decoder.1} parent=5 // pred_check
        %p3109 = pneg %p3108
      $region86: #{transformer_decoder.1} parent=5 // pred_check_branch
        %3111 = sbr.rel (%p3109) target = $region88
      $region87: #{transformer_decoder.1} parent=5 // pred_region
        %s3112 = ssub.s32 %s19, 2
        // Predicated region
        $region89: #{transformer_decoder.1} parent=87 // pred_check
          %p3113 = pneg %p332
        $region90: #{transformer_decoder.1} parent=87 // pred_check_branch
          %3115 = sbr.rel (%p3113) target = $region92
        $region91: #{transformer_decoder.1} parent=87 // pred_region
          %p3116 = scmp.lt.s32.totalorder %s30, 1
          %s3117 = scalar_select %p3116, %s30, 1
          %s3118 = smul.addr %s3117, 2
          %s3119 = smul.addr %s3118, 8
          %s3120 = scalar_lea.vmem %s12, %s3119
        $region92: #{transformer_decoder.1} parent=87 // pred_fallthru
          _
      $region88: #{transformer_decoder.1} parent=5 // pred_fallthru
        _
    $region6: #{transformer_decoder.1} parent=1 // loop_footer
      %s23 = sadd.s32 1, %s19
    $region7: #{transformer_decoder.1} parent=1 // loop_footer_branch
      %18 = sbr.rel target = $region3
    $region8: #{transformer_decoder.1} parent=1 // loop_exit
      _
    %3121 = vsyncpa [#allocation7], 1
    %s3122 = scalar_lea.sflag [#allocation7], 1
    %3123 = vsyncpa %s3122, 1

</llo_original>
